<compile_context>
chip_gen: v6e
topology: v6e:2x2x1
jax: 0.10.0
libtpu: 0.0.40
codegen_flags: <defaults>
</compile_context>

<pallas_src>
import functools
import math

import numpy as np

import jax
import jax.numpy as jnp
from jax import lax
from jax.experimental import pallas as pl
from jax.experimental.pallas import tpu as pltpu


def _upsample_kernel(wwt_ref, wh_ref, x_ref, o_ref):
    # wwt_ref: (W, OW)     column (width) interpolation matrix, pre-transposed
    # wh_ref:  (OH, H)     row (height) interpolation matrix
    # x_ref:   (B, H, W)   block of B input planes
    # o_ref:   (B, OH, OW) block of B output planes
    B, H, W = x_ref.shape
    OH = wh_ref.shape[0]
    OW = wwt_ref.shape[1]

    # Column pass for all B planes at once as one 2-D MXU matmul.  The
    # (B, H, W) <-> (B*H, W) relabelling is free because H is a multiple of 8
    # (no (8,128) tile is split).
    x2 = x_ref[...].reshape(B * H, W)
    t = jnp.dot(
        x2,
        wwt_ref[...],
        precision=lax.Precision.HIGHEST,
        preferred_element_type=jnp.float32,
    )                                      # (B*H, OW)
    t3 = t.reshape(B, H, OW)               # free (H % 8 == 0)

    # Row pass as a batched matmul over the plane axis.  The small (OH, H)
    # weight is broadcast across B in VMEM (16 KiB here) instead of DMA'ing a
    # kron(I_B, Wh) block-diagonal: no O(B^2) weight term, no zero-multiplies.
    wh_b = jnp.broadcast_to(wh_ref[...], (B, OH, H))
    o = lax.dot_general(
        wh_b,
        t3,
        dimension_numbers=(((2,), (1,)), ((0,), (0,))),   # -> (B, OH, OW)
        precision=lax.Precision.HIGHEST,
        preferred_element_type=jnp.float32,
    )
    o_ref[...] = o.astype(o_ref.dtype)


@functools.lru_cache(maxsize=None)
def _interp_matrix(out_size, in_size):
    """(out_size, in_size) align_corners=True interpolation matrix (host numpy).

    Reproduces the fx-graph index math:
      coord = arange(out) * (in-1)/(out-1); lo = trunc(coord);
      hi = min(ceil(coord), in-1); frac = coord - lo.
    Built with numpy so it is a compile-time constant (no one_hot/kron/eye XLA
    ops per call).  A size-1 output maps to source index 0 (PyTorch semantics;
    the raw formula would divide by zero).
    """
    scale = (in_size - 1) / (out_size - 1) if out_size > 1 else 0.0
    coords = np.arange(out_size, dtype=np.float32) * np.float32(scale)
    lo = coords.astype(np.int64)
    hi = np.minimum(np.ceil(coords), in_size - 1).astype(np.int64)
    frac = coords - lo.astype(np.float32)
    m = np.zeros((out_size, in_size), dtype=np.float32)
    rows = np.arange(out_size)
    m[rows, lo] += 1.0 - frac
    m[rows, hi] += frac
    return m


def _vmem_budget_bytes():
    """Generation-aware VMEM working-set budget for the block-size search."""
    try:
        cap = int(pltpu.get_tpu_info().vmem_capacity_bytes)
    except Exception:
        cap = 64 << 20  # v7x per-TensorCore physical VMEM (smallest current gen)
    # Stay well under the scoped-VMEM defaults (quarter of physical).
    return max(cap // 4, 8 << 20)


def _pick_plane_block(nc, h, oh, w, ow, budget_bytes):
    """Largest divisor B of nc whose padded VMEM working set fits the budget.

    Accounts for (8,128) lane/sublane padding, pipeline double-buffering of
    the I/O blocks, and the in-kernel temporaries (t, broadcast Wh).  Only
    caps B below nc (i.e. grid >= 2, enabling the 2-TC split on v7x) when the
    payload is large enough that splitting beats the ~0.35us per-step cost.
    """
    lane = 128

    def pad8(n):
        return ((n + 7) // 8) * 8

    def padlane(n):
        return max(((n + lane - 1) // lane) * lane, lane)

    def block_bytes(b):
        x_blk = b * pad8(h) * padlane(w)           # input block
        o_blk = b * pad8(oh) * padlane(ow)         # output block
        t_tmp = b * pad8(h) * padlane(ow)          # column-pass result
        whb = b * pad8(oh) * padlane(h)            # broadcast Wh
        wts = pad8(oh) * padlane(h) + pad8(w) * padlane(ow)
        # I/O blocks and weights double-buffered by the pipeline; temps single.
        return 4 * (2 * (x_blk + o_blk + wts) + t_tmp + whb)

    max_b = nc
    total_payload = 4 * nc * (h * w + oh * ow)
    if total_payload >= (4 << 20) and nc >= 2:
        max_b = max(1, nc // 2)      # ensure >= 2 grid steps for 2-TC sharding

    b = max(1, min(nc, max_b))
    while b > 1:
        if nc % b == 0 and block_bytes(b) <= budget_bytes:
            break
        b -= 1
    return max(b, 1)


def bilinear_upsample_align_corners(x, out_h, out_w):
    """x: (N, C, H, W) float32; returns (N, C, out_h, out_w) float32."""
    N, C, H, W = x.shape
    # sub/truediv/ceil applied to the scalar output sizes in the fx graph.
    OH = math.ceil((out_h - 0) / 1)
    OW = math.ceil((out_w - 0) / 1)
    NC = N * C

    B = _pick_plane_block(NC, H, OH, W, OW, _vmem_budget_bytes())
    grid_steps = NC // B
    # TODO(synk): for planes so large that a single-plane block exceeds the
    # VMEM budget, add an extra grid axis tiling OH and set vmem_limit_bytes
    # (matters first on v7x's 64 MiB VMEM); unnecessary at these sizes.

    wh = _interp_matrix(OH, H)                        # (OH, H)  ~2 KiB const
    wwt = np.ascontiguousarray(_interp_matrix(OW, W).T)   # (W, OW) ~1.5 KiB

    x3 = x.reshape(NC, H, W)                          # contiguous -> free

    cost = pl.CostEstimate(
        flops=2 * NC * H * W * OW + 2 * NC * OH * H * OW,
        transcendentals=0,
        bytes_accessed=4 * (NC * H * W + NC * OH * OW + OH * H + W * OW),
    )

    out = pl.pallas_call(
        _upsample_kernel,
        out_shape=jax.ShapeDtypeStruct((NC, OH, OW), jnp.float32),
        grid_spec=pltpu.PrefetchScalarGridSpec(
            num_scalar_prefetch=0,
            grid=(grid_steps,),
            in_specs=[
                # Grid-invariant weights: DMA'd exactly once at grid=(1,);
                # with a larger grid they could be single-buffered
                # (pipeline_mode=pl.Buffered(1)) or copied to scratch once.
                pl.BlockSpec((W, OW), lambda i: (0, 0)),
                pl.BlockSpec((OH, H), lambda i: (0, 0)),
                pl.BlockSpec((B, H, W), lambda i: (i, 0, 0)),
            ],
            out_specs=pl.BlockSpec((B, OH, OW), lambda i: (i, 0, 0)),
        ),
        compiler_params=pltpu.CompilerParams(
            # No-op at grid=(1,) (whole problem ~35 KiB, below per-step
            # overhead); once NC grows past the payload threshold in
            # _pick_plane_block the plane axis yields >=2 independent steps
            # and this shards them across v7x's two TensorCores.
            dimension_semantics=("parallel",),
        ),
        cost_estimate=cost,
    )(wwt, wh, x3)
    return out.reshape(N, C, OH, OW)


def _ref_upsample(x, out_h, out_w):
    # Pure-JAX gather-based reference following the fx graph exactly
    # (with the out_size==1 guard matching PyTorch semantics).
    N, C, H, W = x.shape
    sh = (H - 1) / (out_h - 1) if out_h > 1 else 0.0
    sw = (W - 1) / (out_w - 1) if out_w > 1 else 0.0
    ch = jnp.arange(out_h, dtype=jnp.float32) * jnp.float32(sh)
    cw = jnp.arange(out_w, dtype=jnp.float32) * jnp.float32(sw)
    h0 = ch.astype(jnp.int32)
    h1 = jnp.minimum(jnp.ceil(ch), H - 1).astype(jnp.int32)
    w0 = cw.astype(jnp.int32)
    w1 = jnp.minimum(jnp.ceil(cw), W - 1).astype(jnp.int32)
    fh = (ch - h0.astype(jnp.float32))[:, None]
    fw = (cw - w0.astype(jnp.float32))[None, :]
    x00 = x[:, :, h0][:, :, :, w0]
    x10 = x[:, :, h1][:, :, :, w0]
    x01 = x[:, :, h0][:, :, :, w1]
    x11 = x[:, :, h1][:, :, :, w1]
    left = x00 * (1.0 - fh) + x10 * fh
    right = x01 * (1.0 - fh) + x11 * fh
    return left * (1.0 - fw) + right * fw


if __name__ == "__main__":
    key = jax.random.PRNGKey(0)
    N, C, H, W = 2, 4, 16, 16        # arg3_1 (NCHW)
    out_h, out_w = 32, 24            # arg4_1, arg5_1 (scalar output sizes)
    # arg0_1, arg1_1, arg2_1 are unused by the fx graph.
    x = jax.random.normal(key, (N, C, H, W), dtype=jnp.float32)

    y = bilinear_upsample_align_corners(x, out_h, out_w)
    y = jax.block_until_ready(y)

    y_ref = _ref_upsample(x, out_h, out_w)
    assert y.shape == (N, C, out_h, out_w)
    assert y.dtype == jnp.float32
    assert jnp.allclose(y, y_ref, atol=1e-5, rtol=1e-5)
    print("KERNEL_OK")
</pallas_src>

<mosaic_0001>
module attributes {stable_mosaic.version = 11 : i64} {
  func.func @_upsample_kernel(%arg0: i32, %arg1: memref<16x24xf32, #tpu.memory_space<vmem>>, %arg2: memref<32x16xf32, #tpu.memory_space<vmem>>, %arg3: memref<8x16x16xf32, #tpu.memory_space<vmem>>, %arg4: memref<8x32x24xf32, #tpu.memory_space<vmem>>) attributes {dimension_semantics = [#tpu.dimension_semantics<parallel>], iteration_bounds = array<i64: 1>, scalar_prefetch = 0 : i64, scratch_operands = 0 : i64, tpu.core_type = #tpu.core_type<tc>, window_params = [{pipeline_mode = #tpu.pipeline_mode<synchronous>, transform_indices = @transform_0, window_bounds = array<i64: 16, 24>}, {pipeline_mode = #tpu.pipeline_mode<synchronous>, transform_indices = @transform_1, window_bounds = array<i64: 32, 16>}, {transform_indices = @transform_2, window_bounds = array<i64: 8, 16, 16>}, {transform_indices = @transform_3, window_bounds = array<i64: 8, 32, 24>}]} {
    %c0 = arith.constant 0 : index
    %c0_0 = arith.constant 0 : index
    %c0_1 = arith.constant 0 : index
    %0 = vector.load %arg3[%c0, %c0_0, %c0_1] : memref<8x16x16xf32, #tpu.memory_space<vmem>>, vector<8x16x16xf32>
    %1 = vector.shape_cast %0 : vector<8x16x16xf32> to vector<128x16xf32>
    %c0_2 = arith.constant 0 : index
    %c0_3 = arith.constant 0 : index
    %2 = vector.load %arg1[%c0_2, %c0_3] : memref<16x24xf32, #tpu.memory_space<vmem>>, vector<16x24xf32>
    %cst = arith.constant dense<0.000000e+00> : vector<128x24xf32>
    %3 = tpu.matmul %1, %2, %cst {dimension_numbers = #tpu.dot_dimension_numbers<[1], [0], [0], [1], [0, 0, 1, 1], [], []>, precision = #tpu.contract_precision<fp32>} : vector<128x16xf32>, vector<16x24xf32>, vector<128x24xf32> -> vector<128x24xf32>
    %4 = vector.shape_cast %3 : vector<128x24xf32> to vector<8x16x24xf32>
    %c0_4 = arith.constant 0 : index
    %c0_5 = arith.constant 0 : index
    %5 = vector.load %arg2[%c0_4, %c0_5] : memref<32x16xf32, #tpu.memory_space<vmem>>, vector<32x16xf32>
    %6 = vector.shape_cast %5 : vector<32x16xf32> to vector<1x32x16xf32>
    %7 = vector.broadcast %6 : vector<1x32x16xf32> to vector<8x32x16xf32>
    %cst_6 = arith.constant dense<0.000000e+00> : vector<8x32x24xf32>
    %8 = tpu.matmul %7, %4, %cst_6 {dimension_numbers = #tpu.dot_dimension_numbers<[2], [1], [1], [2], [0, 0, 0, 1, 1, 2], [0], [0]>, precision = #tpu.contract_precision<fp32>} : vector<8x32x16xf32>, vector<8x16x24xf32>, vector<8x32x24xf32> -> vector<8x32x24xf32>
    %c0_7 = arith.constant 0 : index
    %c0_8 = arith.constant 0 : index
    %c0_9 = arith.constant 0 : index
    %9 = vector.load %arg4[%c0_7, %c0_8, %c0_9] : memref<8x32x24xf32, #tpu.memory_space<vmem>>, vector<8x32x24xf32>
    tpu.vector_store %arg4[%c0_7, %c0_8, %c0_9], %8 {strides = array<i32>} : memref<8x32x24xf32, #tpu.memory_space<vmem>>, vector<8x32x24xf32>,
    return
  }
  func.func @transform_0(%arg0: i32) -> (i32, i32) {
    %c0_i32 = arith.constant 0 : i32
    %c0_i32_0 = arith.constant 0 : i32
    %c0_i32_1 = arith.constant 0 : i32
    return %c0_i32, %c0_i32_0 : i32, i32
  }
  func.func @transform_1(%arg0: i32) -> (i32, i32) {
    %c0_i32 = arith.constant 0 : i32
    %c0_i32_0 = arith.constant 0 : i32
    %c0_i32_1 = arith.constant 0 : i32
    return %c0_i32, %c0_i32_0 : i32, i32
  }
  func.func @transform_2(%arg0: i32) -> (i32, i32, i32) {
    %c0_i32 = arith.constant 0 : i32
    %c0_i32_0 = arith.constant 0 : i32
    %c0_i32_1 = arith.constant 0 : i32
    return %arg0, %c0_i32, %c0_i32_0 : i32, i32, i32
  }
  func.func @transform_3(%arg0: i32) -> (i32, i32, i32) {
    %c0_i32 = arith.constant 0 : i32
    %c0_i32_0 = arith.constant 0 : i32
    %c0_i32_1 = arith.constant 0 : i32
    return %arg0, %c0_i32, %c0_i32_0 : i32, i32, i32
  }
}

</mosaic_0001>

<llo_original>
// kernel: tpu_custom_call.1
$region0: #{tpu_custom_call.1}
  #allocation0 [shape = 'u32[]', space=smem, size = 0x4, offset = 0x4, fixed_abs, tag = 'smem constant byte address 0x4 - core index']
  #allocation1 [shape = 'u32[144,128]{1,0:T(1,128)}', space=vmem, size = 0x12000, scoped, tag = 'internal scratch']
  %s0 = inlined_call_operand.vmem [shape: f32[16,24], index: 0, kind: input, shape index: {}]
  %s1 = inlined_call_operand.vmem [shape: f32[32,16], index: 1, kind: input, shape index: {}]
  %s2 = inlined_call_operand.hbm [shape: f32[8,16,16], index: 2, kind: input, shape index: {}]
  %s3 = inlined_call_operand.vmem [shape: f32[8,32,24], index: 3, kind: output, shape index: {}]
  %s4 = sld [smem:[#allocation0]]
  $region26: #{tpu_custom_call.1} parent=0
    _
  %s6 = ssub.s32 1, %s4
  %s7 = scalar_select 0, %s6, %s4
  $region1: #{tpu_custom_call.1} parent=0
    #allocation2 [shape = 'u8[65536]{0}', space=vmem, size = 0x10000, scoped, tag = 'input window, operand 2, single buffered']
    #allocation3 [shape = 's32[1]{0}', space=sflag, size = 0x4, scoped, tag = 'scoped memory for tpu_custom_call.1']
    %8 = vsyncpa [#allocation3], 0
    // Predicated region
    $region2: #{tpu_custom_call.1} parent=1 // pred_check
      _
    $region3: #{tpu_custom_call.1} parent=1 // pred_check_branch
      %10 = sbr.rel (0) target = $region5
    $region4: #{tpu_custom_call.1} parent=1 // pred_region
      _
    $region5: #{tpu_custom_call.1} parent=1 // pred_fallthru
      _
    // Predicated region
    $region6: #{tpu_custom_call.1} parent=1 // pred_check
      _
    $region7: #{tpu_custom_call.1} parent=1 // pred_check_branch
      %12 = sbr.rel (0) target = $region9
    $region8: #{tpu_custom_call.1} parent=1 // pred_region
      _
    $region9: #{tpu_custom_call.1} parent=1 // pred_fallthru
      _
    // Predicated region
    $region10: #{tpu_custom_call.1} parent=1 // pred_check
      _
    $region11: #{tpu_custom_call.1} parent=1 // pred_check_branch
      %14 = sbr.rel (0) target = $region13
    $region12: #{tpu_custom_call.1} parent=1 // pred_region
      %s16 = ssub.s32 2048, 2048
      %17 = vsyncadd [#allocation3], %s16
      %s18 = sshll.u32 [#allocation2], 4
      %s19 = int_to_ptr.vmem [resolvable:$true] %s18
      %24 = dma.hbm_to_vmem [thread:$0]  %s2, 2048, %s19, [#allocation3], 128, 128, 8
    $region13: #{tpu_custom_call.1} parent=1 // pred_fallthru
      _
    // Predicated region
    $region14: #{tpu_custom_call.1} parent=1 // pred_check
      _
    $region15: #{tpu_custom_call.1} parent=1 // pred_check_branch
      %26 = sbr.rel (0) target = $region17
    $region16: #{tpu_custom_call.1} parent=1 // pred_region
      %27 = dma.done [#allocation3], 2048
    $region17: #{tpu_custom_call.1} parent=1 // pred_fallthru
      _
    %v28 = vld [vmem:[#allocation2] sm:$0xff]
    %v29 = vld [vmem:[#allocation2 + $0x8] sm:$0xff]
    %v30 = vld [vmem:[#allocation2 + $0x10] sm:$0xff]
    %v31 = vld [vmem:[#allocation2 + $0x18] sm:$0xff]
    %v32 = vld [vmem:[#allocation2 + $0x20] sm:$0xff]
    %v33 = vld [vmem:[#allocation2 + $0x28] sm:$0xff]
    %v34 = vld [vmem:[#allocation2 + $0x30] sm:$0xff]
    %v35 = vld [vmem:[#allocation2 + $0x38] sm:$0xff]
    %v36 = vld [vmem:[#allocation2 + $0x40] sm:$0xff]
    %v37 = vld [vmem:[#allocation2 + $0x48] sm:$0xff]
    %v38 = vld [vmem:[#allocation2 + $0x50] sm:$0xff]
    %v39 = vld [vmem:[#allocation2 + $0x58] sm:$0xff]
    %v40 = vld [vmem:[#allocation2 + $0x60] sm:$0xff]
    %v41 = vld [vmem:[#allocation2 + $0x68] sm:$0xff]
    %v42 = vld [vmem:[#allocation2 + $0x70] sm:$0xff]
    %v43 = vld [vmem:[#allocation2 + $0x78] sm:$0xff]
    %v44 = vld [vmem:[%s0] sm:$0xff]
    %v45 = vld [vmem:[%s0 + $0x8] sm:$0xff]
    %vm46 = vcmask 130048
    %v48 = vsel %vm46, %v28, 0
    %v51 = vsel %vm46, %v29, 0
    %v54 = vsel %vm46, %v30, 0
    %v57 = vsel %vm46, %v31, 0
    %v60 = vsel %vm46, %v32, 0
    %v63 = vsel %vm46, %v33, 0
    %v66 = vsel %vm46, %v34, 0
    %v69 = vsel %vm46, %v35, 0
    %v72 = vsel %vm46, %v36, 0
    %v75 = vsel %vm46, %v37, 0
    %v78 = vsel %vm46, %v38, 0
    %v81 = vsel %vm46, %v39, 0
    %v84 = vsel %vm46, %v40, 0
    %v87 = vsel %vm46, %v41, 0
    %v90 = vsel %vm46, %v42, 0
    %v93 = vsel %vm46, %v43, 0
    %95 = vmatprep.subr.mxu0 0.0
    %96 = vmatpush1.msra.mxu0 0.0
    %97 = vmatprep.subr.mxu0 0.0
    %98 = vmatpush1.msra.mxu0 0.0
    %99 = vmatprep.subr.mxu0 0.0
    %100 = vmatpush1.msra.mxu0 0.0
    %101 = vmatprep.subr.mxu0 0.0
    %102 = vmatpush1.msra.mxu0 0.0
    %103 = vmatprep.subr.mxu0 0.0
    %104 = vmatpush1.msra.mxu0 0.0
    %105 = vmatprep.subr.mxu0 0.0
    %106 = vmatpush1.msra.mxu0 0.0
    %107 = vmatprep.subr.mxu0 0.0
    %108 = vmatpush1.msra.mxu0 0.0
    %109 = vmatprep.subr.mxu0 0.0
    %110 = vmatpush1.msra.mxu0 0.0
    %111 = vmatprep.subr.mxu0 0.0
    %112 = vmatpush1.msra.mxu0 0.0
    %113 = vmatprep.subr.mxu0 0.0
    %114 = vmatpush1.msra.mxu0 0.0
    %115 = vmatprep.subr.mxu0 0.0
    %116 = vmatpush1.msra.mxu0 0.0
    %117 = vmatprep.subr.mxu0 0.0
    %118 = vmatpush1.msra.mxu0 0.0
    %119 = vmatprep.subr.mxu0 0.0
    %120 = vmatpush1.msra.mxu0 0.0
    %121 = vmatprep.subr.mxu0 0.0
    %122 = vmatpush1.msra.mxu0 0.0
    %123 = vmatprep.subr.mxu0 0.0
    %v124 = vand.u32 %v45, 4294901760
    %125 = vmatpush1.msra.mxu0 %v124
    %126 = vmatprep.subr.mxu0 0.0
    %v127 = vand.u32 %v44, 4294901760
    %128 = vmatpush1.msra.mxu0 %v127
    %129 = vmatprep.subr.mxu0 0.0
    %130 = vmatpush2.msra.mxu0 0.0
    %131 = vmatprep.subr.mxu0 0.0
    %132 = vmatpush2.msra.mxu0 0.0
    %133 = vmatprep.subr.mxu0 0.0
    %134 = vmatpush2.msra.mxu0 0.0
    %135 = vmatprep.subr.mxu0 0.0
    %136 = vmatpush2.msra.mxu0 0.0
    %137 = vmatprep.subr.mxu0 0.0
    %138 = vmatpush2.msra.mxu0 0.0
    %139 = vmatprep.subr.mxu0 0.0
    %140 = vmatpush2.msra.mxu0 0.0
    %141 = vmatprep.subr.mxu0 0.0
    %142 = vmatpush2.msra.mxu0 0.0
    %143 = vmatprep.subr.mxu0 0.0
    %144 = vmatpush2.msra.mxu0 0.0
    %145 = vmatprep.subr.mxu0 0.0
    %146 = vmatpush2.msra.mxu0 0.0
    %147 = vmatprep.subr.mxu0 0.0
    %148 = vmatpush2.msra.mxu0 0.0
    %149 = vmatprep.subr.mxu0 0.0
    %150 = vmatpush2.msra.mxu0 0.0
    %151 = vmatprep.subr.mxu0 0.0
    %152 = vmatpush2.msra.mxu0 0.0
    %153 = vmatprep.subr.mxu0 0.0
    %154 = vmatpush2.msra.mxu0 0.0
    %155 = vmatprep.subr.mxu0 0.0
    %156 = vmatpush2.msra.mxu0 0.0
    %157 = vmatprep.subr.mxu0 0.0
    %158 = vmatpush2.msra.mxu0 0.0
    %159 = vmatprep.subr.mxu0 0.0
    %160 = vmatpush2.msra.mxu0 0.0
    %161 = vmatprep.mubr.f32.mxu0 0.0
    %v162 = vand.u32 %v48, 4294901760
    %v163 = vsub.f32 %v48, %v162
    %v164 = vand.u32 %v163, 4294901760
    %v165 = vsub.f32 %v163, %v164
    %v166 = vand.u32 %v165, 4294901760
    %167 = vmatmul.mubr.f32.gmra.mxu0 %v166
    %v168 = vpop.f32.mrf.mxu0
    %v169 = vadd.f32 0.0, %v168
    %v170 = vpop.f32.mrf.mxu0
    %171 = vmatprep.mubr.f32.mxu0 0.0
    %v172 = vand.u32 %v51, 4294901760
    %v173 = vsub.f32 %v51, %v172
    %v174 = vand.u32 %v173, 4294901760
    %v175 = vsub.f32 %v173, %v174
    %v176 = vand.u32 %v175, 4294901760
    %177 = vmatmul.mubr.f32.gmra.mxu0 %v176
    %v178 = vpop.f32.mrf.mxu0
    %v179 = vadd.f32 0.0, %v178
    %v180 = vpop.f32.mrf.mxu0
    %181 = vmatprep.mubr.f32.mxu0 0.0
    %v182 = vand.u32 %v54, 4294901760
    %v183 = vsub.f32 %v54, %v182
    %v184 = vand.u32 %v183, 4294901760
    %v185 = vsub.f32 %v183, %v184
    %v186 = vand.u32 %v185, 4294901760
    %187 = vmatmul.mubr.f32.gmra.mxu0 %v186
    %v188 = vpop.f32.mrf.mxu0
    %v189 = vadd.f32 0.0, %v188
    %v190 = vpop.f32.mrf.mxu0
    %191 = vmatprep.mubr.f32.mxu0 0.0
    %v192 = vand.u32 %v57, 4294901760
    %v193 = vsub.f32 %v57, %v192
    %v194 = vand.u32 %v193, 4294901760
    %v195 = vsub.f32 %v193, %v194
    %v196 = vand.u32 %v195, 4294901760
    %197 = vmatmul.mubr.f32.gmra.mxu0 %v196
    %v198 = vpop.f32.mrf.mxu0
    %v199 = vadd.f32 0.0, %v198
    %v200 = vpop.f32.mrf.mxu0
    %201 = vmatprep.mubr.f32.mxu0 0.0
    %v202 = vand.u32 %v60, 4294901760
    %v203 = vsub.f32 %v60, %v202
    %v204 = vand.u32 %v203, 4294901760
    %v205 = vsub.f32 %v203, %v204
    %v206 = vand.u32 %v205, 4294901760
    %207 = vmatmul.mubr.f32.gmra.mxu0 %v206
    %v208 = vpop.f32.mrf.mxu0
    %v209 = vadd.f32 0.0, %v208
    %v210 = vpop.f32.mrf.mxu0
    %211 = vmatprep.mubr.f32.mxu0 0.0
    %v212 = vand.u32 %v63, 4294901760
    %v213 = vsub.f32 %v63, %v212
    %v214 = vand.u32 %v213, 4294901760
    %v215 = vsub.f32 %v213, %v214
    %v216 = vand.u32 %v215, 4294901760
    %217 = vmatmul.mubr.f32.gmra.mxu0 %v216
    %v218 = vpop.f32.mrf.mxu0
    %v219 = vadd.f32 0.0, %v218
    %v220 = vpop.f32.mrf.mxu0
    %221 = vmatprep.mubr.f32.mxu0 0.0
    %v222 = vand.u32 %v66, 4294901760
    %v223 = vsub.f32 %v66, %v222
    %v224 = vand.u32 %v223, 4294901760
    %v225 = vsub.f32 %v223, %v224
    %v226 = vand.u32 %v225, 4294901760
    %227 = vmatmul.mubr.f32.gmra.mxu0 %v226
    %v228 = vpop.f32.mrf.mxu0
    %v229 = vadd.f32 0.0, %v228
    %v230 = vpop.f32.mrf.mxu0
    %231 = vmatprep.mubr.f32.mxu0 0.0
    %v232 = vand.u32 %v69, 4294901760
    %v233 = vsub.f32 %v69, %v232
    %v234 = vand.u32 %v233, 4294901760
    %v235 = vsub.f32 %v233, %v234
    %v236 = vand.u32 %v235, 4294901760
    %237 = vmatmul.mubr.f32.gmra.mxu0 %v236
    %v238 = vpop.f32.mrf.mxu0
    %v239 = vadd.f32 0.0, %v238
    %v240 = vpop.f32.mrf.mxu0
    %241 = vmatprep.mubr.f32.mxu0 0.0
    %v242 = vand.u32 %v72, 4294901760
    %v243 = vsub.f32 %v72, %v242
    %v244 = vand.u32 %v243, 4294901760
    %v245 = vsub.f32 %v243, %v244
    %v246 = vand.u32 %v245, 4294901760
    %247 = vmatmul.mubr.f32.gmra.mxu0 %v246
    %v248 = vpop.f32.mrf.mxu0
    %v249 = vadd.f32 0.0, %v248
    %v250 = vpop.f32.mrf.mxu0
    %251 = vmatprep.mubr.f32.mxu0 0.0
    %v252 = vand.u32 %v75, 4294901760
    %v253 = vsub.f32 %v75, %v252
    %v254 = vand.u32 %v253, 4294901760
    %v255 = vsub.f32 %v253, %v254
    %v256 = vand.u32 %v255, 4294901760
    %257 = vmatmul.mubr.f32.gmra.mxu0 %v256
    %v258 = vpop.f32.mrf.mxu0
    %v259 = vadd.f32 0.0, %v258
    %v260 = vpop.f32.mrf.mxu0
    %261 = vmatprep.mubr.f32.mxu0 0.0
    %v262 = vand.u32 %v78, 4294901760
    %v263 = vsub.f32 %v78, %v262
    %v264 = vand.u32 %v263, 4294901760
    %v265 = vsub.f32 %v263, %v264
    %v266 = vand.u32 %v265, 4294901760
    %267 = vmatmul.mubr.f32.gmra.mxu0 %v266
    %v268 = vpop.f32.mrf.mxu0
    %v269 = vadd.f32 0.0, %v268
    %v270 = vpop.f32.mrf.mxu0
    %271 = vmatprep.mubr.f32.mxu0 0.0
    %v272 = vand.u32 %v81, 4294901760
    %v273 = vsub.f32 %v81, %v272
    %v274 = vand.u32 %v273, 4294901760
    %v275 = vsub.f32 %v273, %v274
    %v276 = vand.u32 %v275, 4294901760
    %277 = vmatmul.mubr.f32.gmra.mxu0 %v276
    %v278 = vpop.f32.mrf.mxu0
    %v279 = vadd.f32 0.0, %v278
    %v280 = vpop.f32.mrf.mxu0
    %281 = vmatprep.mubr.f32.mxu0 0.0
    %v282 = vand.u32 %v84, 4294901760
    %v283 = vsub.f32 %v84, %v282
    %v284 = vand.u32 %v283, 4294901760
    %v285 = vsub.f32 %v283, %v284
    %v286 = vand.u32 %v285, 4294901760
    %287 = vmatmul.mubr.f32.gmra.mxu0 %v286
    %v288 = vpop.f32.mrf.mxu0
    %v289 = vadd.f32 0.0, %v288
    %v290 = vpop.f32.mrf.mxu0
    %291 = vmatprep.mubr.f32.mxu0 0.0
    %v292 = vand.u32 %v87, 4294901760
    %v293 = vsub.f32 %v87, %v292
    %v294 = vand.u32 %v293, 4294901760
    %v295 = vsub.f32 %v293, %v294
    %v296 = vand.u32 %v295, 4294901760
    %297 = vmatmul.mubr.f32.gmra.mxu0 %v296
    %v298 = vpop.f32.mrf.mxu0
    %v299 = vadd.f32 0.0, %v298
    %v300 = vpop.f32.mrf.mxu0
    %301 = vmatprep.mubr.f32.mxu0 0.0
    %v302 = vand.u32 %v90, 4294901760
    %v303 = vsub.f32 %v90, %v302
    %v304 = vand.u32 %v303, 4294901760
    %v305 = vsub.f32 %v303, %v304
    %v306 = vand.u32 %v305, 4294901760
    %307 = vmatmul.mubr.f32.gmra.mxu0 %v306
    %v308 = vpop.f32.mrf.mxu0
    %v309 = vadd.f32 0.0, %v308
    %v310 = vpop.f32.mrf.mxu0
    %311 = vmatprep.mubr.f32.mxu0 0.0
    %v312 = vand.u32 %v93, 4294901760
    %v313 = vsub.f32 %v93, %v312
    %v314 = vand.u32 %v313, 4294901760
    %v315 = vsub.f32 %v313, %v314
    %v316 = vand.u32 %v315, 4294901760
    %317 = vmatmul.mubr.f32.gmra.mxu0 %v316
    %v318 = vpop.f32.mrf.mxu0
    %v319 = vadd.f32 0.0, %v318
    %v320 = vpop.f32.mrf.mxu0
    %321 = vdwg.mxu0
    %322 = vmatprep.subr.mxu0 0.0
    %323 = vmatpush1.msra.mxu0 0.0
    %324 = vmatprep.subr.mxu0 0.0
    %325 = vmatpush1.msra.mxu0 0.0
    %326 = vmatprep.subr.mxu0 0.0
    %327 = vmatpush1.msra.mxu0 0.0
    %328 = vmatprep.subr.mxu0 0.0
    %329 = vmatpush1.msra.mxu0 0.0
    %330 = vmatprep.subr.mxu0 0.0
    %331 = vmatpush1.msra.mxu0 0.0
    %332 = vmatprep.subr.mxu0 0.0
    %333 = vmatpush1.msra.mxu0 0.0
    %334 = vmatprep.subr.mxu0 0.0
    %335 = vmatpush1.msra.mxu0 0.0
    %336 = vmatprep.subr.mxu0 0.0
    %337 = vmatpush1.msra.mxu0 0.0
    %338 = vmatprep.subr.mxu0 0.0
    %339 = vmatpush1.msra.mxu0 0.0
    %340 = vmatprep.subr.mxu0 0.0
    %341 = vmatpush1.msra.mxu0 0.0
    %342 = vmatprep.subr.mxu0 0.0
    %343 = vmatpush1.msra.mxu0 0.0
    %344 = vmatprep.subr.mxu0 0.0
    %345 = vmatpush1.msra.mxu0 0.0
    %346 = vmatprep.subr.mxu0 0.0
    %347 = vmatpush1.msra.mxu0 0.0
    %348 = vmatprep.subr.mxu0 0.0
    %349 = vmatpush1.msra.mxu0 0.0
    %350 = vmatprep.subr.mxu0 0.0
    %v351 = vand.u32 %v45, 4294901760
    %v352 = vsub.f32 %v45, %v351
    %v353 = vand.u32 %v352, 4294901760
    %v354 = vsub.f32 %v352, %v353
    %v355 = vand.u32 %v354, 4294901760
    %356 = vmatpush1.msra.mxu0 %v355
    %357 = vmatprep.subr.mxu0 0.0
    %v358 = vand.u32 %v44, 4294901760
    %v359 = vsub.f32 %v44, %v358
    %v360 = vand.u32 %v359, 4294901760
    %v361 = vsub.f32 %v359, %v360
    %v362 = vand.u32 %v361, 4294901760
    %363 = vmatpush1.msra.mxu0 %v362
    %364 = vmatprep.subr.mxu0 0.0
    %365 = vmatpush2.msra.mxu0 0.0
    %366 = vmatprep.subr.mxu0 0.0
    %367 = vmatpush2.msra.mxu0 0.0
    %368 = vmatprep.subr.mxu0 0.0
    %369 = vmatpush2.msra.mxu0 0.0
    %370 = vmatprep.subr.mxu0 0.0
    %371 = vmatpush2.msra.mxu0 0.0
    %372 = vmatprep.subr.mxu0 0.0
    %373 = vmatpush2.msra.mxu0 0.0
    %374 = vmatprep.subr.mxu0 0.0
    %375 = vmatpush2.msra.mxu0 0.0
    %376 = vmatprep.subr.mxu0 0.0
    %377 = vmatpush2.msra.mxu0 0.0
    %378 = vmatprep.subr.mxu0 0.0
    %379 = vmatpush2.msra.mxu0 0.0
    %380 = vmatprep.subr.mxu0 0.0
    %381 = vmatpush2.msra.mxu0 0.0
    %382 = vmatprep.subr.mxu0 0.0
    %383 = vmatpush2.msra.mxu0 0.0
    %384 = vmatprep.subr.mxu0 0.0
    %385 = vmatpush2.msra.mxu0 0.0
    %386 = vmatprep.subr.mxu0 0.0
    %387 = vmatpush2.msra.mxu0 0.0
    %388 = vmatprep.subr.mxu0 0.0
    %389 = vmatpush2.msra.mxu0 0.0
    %390 = vmatprep.subr.mxu0 0.0
    %391 = vmatpush2.msra.mxu0 0.0
    %392 = vmatprep.subr.mxu0 0.0
    %393 = vmatpush2.msra.mxu0 0.0
    %394 = vmatprep.subr.mxu0 0.0
    %395 = vmatpush2.msra.mxu0 0.0
    %396 = vmatprep.mubr.f32.mxu0 0.0
    %v397 = vand.u32 %v48, 4294901760
    %398 = vmatmul.mubr.f32.gmra.mxu0 %v397
    %v399 = vpop.f32.mrf.mxu0
    %v400 = vadd.f32 %v169, %v399
    %v401 = vpop.f32.mrf.mxu0
    %402 = vmatprep.mubr.f32.mxu0 0.0
    %v403 = vand.u32 %v51, 4294901760
    %404 = vmatmul.mubr.f32.gmra.mxu0 %v403
    %v405 = vpop.f32.mrf.mxu0
    %v406 = vadd.f32 %v179, %v405
    %v407 = vpop.f32.mrf.mxu0
    %408 = vmatprep.mubr.f32.mxu0 0.0
    %v409 = vand.u32 %v54, 4294901760
    %410 = vmatmul.mubr.f32.gmra.mxu0 %v409
    %v411 = vpop.f32.mrf.mxu0
    %v412 = vadd.f32 %v189, %v411
    %v413 = vpop.f32.mrf.mxu0
    %414 = vmatprep.mubr.f32.mxu0 0.0
    %v415 = vand.u32 %v57, 4294901760
    %416 = vmatmul.mubr.f32.gmra.mxu0 %v415
    %v417 = vpop.f32.mrf.mxu0
    %v418 = vadd.f32 %v199, %v417
    %v419 = vpop.f32.mrf.mxu0
    %420 = vmatprep.mubr.f32.mxu0 0.0
    %v421 = vand.u32 %v60, 4294901760
    %422 = vmatmul.mubr.f32.gmra.mxu0 %v421
    %v423 = vpop.f32.mrf.mxu0
    %v424 = vadd.f32 %v209, %v423
    %v425 = vpop.f32.mrf.mxu0
    %426 = vmatprep.mubr.f32.mxu0 0.0
    %v427 = vand.u32 %v63, 4294901760
    %428 = vmatmul.mubr.f32.gmra.mxu0 %v427
    %v429 = vpop.f32.mrf.mxu0
    %v430 = vadd.f32 %v219, %v429
    %v431 = vpop.f32.mrf.mxu0
    %432 = vmatprep.mubr.f32.mxu0 0.0
    %v433 = vand.u32 %v66, 4294901760
    %434 = vmatmul.mubr.f32.gmra.mxu0 %v433
    %v435 = vpop.f32.mrf.mxu0
    %v436 = vadd.f32 %v229, %v435
    %v437 = vpop.f32.mrf.mxu0
    %438 = vmatprep.mubr.f32.mxu0 0.0
    %v439 = vand.u32 %v69, 4294901760
    %440 = vmatmul.mubr.f32.gmra.mxu0 %v439
    %v441 = vpop.f32.mrf.mxu0
    %v442 = vadd.f32 %v239, %v441
    %v443 = vpop.f32.mrf.mxu0
    %444 = vmatprep.mubr.f32.mxu0 0.0
    %v445 = vand.u32 %v72, 4294901760
    %446 = vmatmul.mubr.f32.gmra.mxu0 %v445
    %v447 = vpop.f32.mrf.mxu0
    %v448 = vadd.f32 %v249, %v447
    %v449 = vpop.f32.mrf.mxu0
    %450 = vmatprep.mubr.f32.mxu0 0.0
    %v451 = vand.u32 %v75, 4294901760
    %452 = vmatmul.mubr.f32.gmra.mxu0 %v451
    %v453 = vpop.f32.mrf.mxu0
    %v454 = vadd.f32 %v259, %v453
    %v455 = vpop.f32.mrf.mxu0
    %456 = vmatprep.mubr.f32.mxu0 0.0
    %v457 = vand.u32 %v78, 4294901760
    %458 = vmatmul.mubr.f32.gmra.mxu0 %v457
    %v459 = vpop.f32.mrf.mxu0
    %v460 = vadd.f32 %v269, %v459
    %v461 = vpop.f32.mrf.mxu0
    %462 = vmatprep.mubr.f32.mxu0 0.0
    %v463 = vand.u32 %v81, 4294901760
    %464 = vmatmul.mubr.f32.gmra.mxu0 %v463
    %v465 = vpop.f32.mrf.mxu0
    %v466 = vadd.f32 %v279, %v465
    %v467 = vpop.f32.mrf.mxu0
    %468 = vmatprep.mubr.f32.mxu0 0.0
    %v469 = vand.u32 %v84, 4294901760
    %470 = vmatmul.mubr.f32.gmra.mxu0 %v469
    %v471 = vpop.f32.mrf.mxu0
    %v472 = vadd.f32 %v289, %v471
    %v473 = vpop.f32.mrf.mxu0
    %474 = vmatprep.mubr.f32.mxu0 0.0
    %v475 = vand.u32 %v87, 4294901760
    %476 = vmatmul.mubr.f32.gmra.mxu0 %v475
    %v477 = vpop.f32.mrf.mxu0
    %v478 = vadd.f32 %v299, %v477
    %v479 = vpop.f32.mrf.mxu0
    %480 = vmatprep.mubr.f32.mxu0 0.0
    %v481 = vand.u32 %v90, 4294901760
    %482 = vmatmul.mubr.f32.gmra.mxu0 %v481
    %v483 = vpop.f32.mrf.mxu0
    %v484 = vadd.f32 %v309, %v483
    %v485 = vpop.f32.mrf.mxu0
    %486 = vmatprep.mubr.f32.mxu0 0.0
    %v487 = vand.u32 %v93, 4294901760
    %488 = vmatmul.mubr.f32.gmra.mxu0 %v487
    %v489 = vpop.f32.mrf.mxu0
    %v490 = vadd.f32 %v319, %v489
    %v491 = vpop.f32.mrf.mxu0
    %492 = vdwg.mxu0
    %493 = vmatprep.subr.mxu0 0.0
    %494 = vmatpush1.msra.mxu0 0.0
    %495 = vmatprep.subr.mxu0 0.0
    %496 = vmatpush1.msra.mxu0 0.0
    %497 = vmatprep.subr.mxu0 0.0
    %498 = vmatpush1.msra.mxu0 0.0
    %499 = vmatprep.subr.mxu0 0.0
    %500 = vmatpush1.msra.mxu0 0.0
    %501 = vmatprep.subr.mxu0 0.0
    %502 = vmatpush1.msra.mxu0 0.0
    %503 = vmatprep.subr.mxu0 0.0
    %504 = vmatpush1.msra.mxu0 0.0
    %505 = vmatprep.subr.mxu0 0.0
    %506 = vmatpush1.msra.mxu0 0.0
    %507 = vmatprep.subr.mxu0 0.0
    %508 = vmatpush1.msra.mxu0 0.0
    %509 = vmatprep.subr.mxu0 0.0
    %510 = vmatpush1.msra.mxu0 0.0
    %511 = vmatprep.subr.mxu0 0.0
    %512 = vmatpush1.msra.mxu0 0.0
    %513 = vmatprep.subr.mxu0 0.0
    %514 = vmatpush1.msra.mxu0 0.0
    %515 = vmatprep.subr.mxu0 0.0
    %516 = vmatpush1.msra.mxu0 0.0
    %517 = vmatprep.subr.mxu0 0.0
    %518 = vmatpush1.msra.mxu0 0.0
    %519 = vmatprep.subr.mxu0 0.0
    %520 = vmatpush1.msra.mxu0 0.0
    %521 = vmatprep.subr.mxu0 0.0
    %v522 = vand.u32 %v45, 4294901760
    %v523 = vsub.f32 %v45, %v522
    %524 = vmatpush1.msra.mxu0 %v523
    %525 = vmatprep.subr.mxu0 0.0
    %v526 = vand.u32 %v44, 4294901760
    %v527 = vsub.f32 %v44, %v526
    %528 = vmatpush1.msra.mxu0 %v527
    %529 = vmatprep.subr.mxu0 0.0
    %530 = vmatpush2.msra.mxu0 0.0
    %531 = vmatprep.subr.mxu0 0.0
    %532 = vmatpush2.msra.mxu0 0.0
    %533 = vmatprep.subr.mxu0 0.0
    %534 = vmatpush2.msra.mxu0 0.0
    %535 = vmatprep.subr.mxu0 0.0
    %536 = vmatpush2.msra.mxu0 0.0
    %537 = vmatprep.subr.mxu0 0.0
    %538 = vmatpush2.msra.mxu0 0.0
    %539 = vmatprep.subr.mxu0 0.0
    %540 = vmatpush2.msra.mxu0 0.0
    %541 = vmatprep.subr.mxu0 0.0
    %542 = vmatpush2.msra.mxu0 0.0
    %543 = vmatprep.subr.mxu0 0.0
    %544 = vmatpush2.msra.mxu0 0.0
    %545 = vmatprep.subr.mxu0 0.0
    %546 = vmatpush2.msra.mxu0 0.0
    %547 = vmatprep.subr.mxu0 0.0
    %548 = vmatpush2.msra.mxu0 0.0
    %549 = vmatprep.subr.mxu0 0.0
    %550 = vmatpush2.msra.mxu0 0.0
    %551 = vmatprep.subr.mxu0 0.0
    %552 = vmatpush2.msra.mxu0 0.0
    %553 = vmatprep.subr.mxu0 0.0
    %554 = vmatpush2.msra.mxu0 0.0
    %555 = vmatprep.subr.mxu0 0.0
    %556 = vmatpush2.msra.mxu0 0.0
    %557 = vmatprep.subr.mxu0 0.0
    %558 = vmatpush2.msra.mxu0 0.0
    %559 = vmatprep.subr.mxu0 0.0
    %560 = vmatpush2.msra.mxu0 0.0
    %561 = vmatprep.mubr.f32.mxu0 0.0
    %v562 = vand.u32 %v48, 4294901760
    %v563 = vsub.f32 %v48, %v562
    %564 = vmatmul.mubr.f32.gmra.mxu0 %v563
    %v565 = vpop.f32.mrf.mxu0
    %v566 = vadd.f32 %v400, %v565
    %v567 = vpop.f32.mrf.mxu0
    %568 = vmatprep.mubr.f32.mxu0 0.0
    %v569 = vand.u32 %v51, 4294901760
    %v570 = vsub.f32 %v51, %v569
    %571 = vmatmul.mubr.f32.gmra.mxu0 %v570
    %v572 = vpop.f32.mrf.mxu0
    %v573 = vadd.f32 %v406, %v572
    %v574 = vpop.f32.mrf.mxu0
    %575 = vmatprep.mubr.f32.mxu0 0.0
    %v576 = vand.u32 %v54, 4294901760
    %v577 = vsub.f32 %v54, %v576
    %578 = vmatmul.mubr.f32.gmra.mxu0 %v577
    %v579 = vpop.f32.mrf.mxu0
    %v580 = vadd.f32 %v412, %v579
    %v581 = vpop.f32.mrf.mxu0
    %582 = vmatprep.mubr.f32.mxu0 0.0
    %v583 = vand.u32 %v57, 4294901760
    %v584 = vsub.f32 %v57, %v583
    %585 = vmatmul.mubr.f32.gmra.mxu0 %v584
    %v586 = vpop.f32.mrf.mxu0
    %v587 = vadd.f32 %v418, %v586
    %v588 = vpop.f32.mrf.mxu0
    %589 = vmatprep.mubr.f32.mxu0 0.0
    %v590 = vand.u32 %v60, 4294901760
    %v591 = vsub.f32 %v60, %v590
    %592 = vmatmul.mubr.f32.gmra.mxu0 %v591
    %v593 = vpop.f32.mrf.mxu0
    %v594 = vadd.f32 %v424, %v593
    %v595 = vpop.f32.mrf.mxu0
    %596 = vmatprep.mubr.f32.mxu0 0.0
    %v597 = vand.u32 %v63, 4294901760
    %v598 = vsub.f32 %v63, %v597
    %599 = vmatmul.mubr.f32.gmra.mxu0 %v598
    %v600 = vpop.f32.mrf.mxu0
    %v601 = vadd.f32 %v430, %v600
    %v602 = vpop.f32.mrf.mxu0
    %603 = vmatprep.mubr.f32.mxu0 0.0
    %v604 = vand.u32 %v66, 4294901760
    %v605 = vsub.f32 %v66, %v604
    %606 = vmatmul.mubr.f32.gmra.mxu0 %v605
    %v607 = vpop.f32.mrf.mxu0
    %v608 = vadd.f32 %v436, %v607
    %v609 = vpop.f32.mrf.mxu0
    %610 = vmatprep.mubr.f32.mxu0 0.0
    %v611 = vand.u32 %v69, 4294901760
    %v612 = vsub.f32 %v69, %v611
    %613 = vmatmul.mubr.f32.gmra.mxu0 %v612
    %v614 = vpop.f32.mrf.mxu0
    %v615 = vadd.f32 %v442, %v614
    %v616 = vpop.f32.mrf.mxu0
    %617 = vmatprep.mubr.f32.mxu0 0.0
    %v618 = vand.u32 %v72, 4294901760
    %v619 = vsub.f32 %v72, %v618
    %620 = vmatmul.mubr.f32.gmra.mxu0 %v619
    %v621 = vpop.f32.mrf.mxu0
    %v622 = vadd.f32 %v448, %v621
    %v623 = vpop.f32.mrf.mxu0
    %624 = vmatprep.mubr.f32.mxu0 0.0
    %v625 = vand.u32 %v75, 4294901760
    %v626 = vsub.f32 %v75, %v625
    %627 = vmatmul.mubr.f32.gmra.mxu0 %v626
    %v628 = vpop.f32.mrf.mxu0
    %v629 = vadd.f32 %v454, %v628
    %v630 = vpop.f32.mrf.mxu0
    %631 = vmatprep.mubr.f32.mxu0 0.0
    %v632 = vand.u32 %v78, 4294901760
    %v633 = vsub.f32 %v78, %v632
    %634 = vmatmul.mubr.f32.gmra.mxu0 %v633
    %v635 = vpop.f32.mrf.mxu0
    %v636 = vadd.f32 %v460, %v635
    %v637 = vpop.f32.mrf.mxu0
    %638 = vmatprep.mubr.f32.mxu0 0.0
    %v639 = vand.u32 %v81, 4294901760
    %v640 = vsub.f32 %v81, %v639
    %641 = vmatmul.mubr.f32.gmra.mxu0 %v640
    %v642 = vpop.f32.mrf.mxu0
    %v643 = vadd.f32 %v466, %v642
    %v644 = vpop.f32.mrf.mxu0
    %645 = vmatprep.mubr.f32.mxu0 0.0
    %v646 = vand.u32 %v84, 4294901760
    %v647 = vsub.f32 %v84, %v646
    %648 = vmatmul.mubr.f32.gmra.mxu0 %v647
    %v649 = vpop.f32.mrf.mxu0
    %v650 = vadd.f32 %v472, %v649
    %v651 = vpop.f32.mrf.mxu0
    %652 = vmatprep.mubr.f32.mxu0 0.0
    %v653 = vand.u32 %v87, 4294901760
    %v654 = vsub.f32 %v87, %v653
    %655 = vmatmul.mubr.f32.gmra.mxu0 %v654
    %v656 = vpop.f32.mrf.mxu0
    %v657 = vadd.f32 %v478, %v656
    %v658 = vpop.f32.mrf.mxu0
    %659 = vmatprep.mubr.f32.mxu0 0.0
    %v660 = vand.u32 %v90, 4294901760
    %v661 = vsub.f32 %v90, %v660
    %662 = vmatmul.mubr.f32.gmra.mxu0 %v661
    %v663 = vpop.f32.mrf.mxu0
    %v664 = vadd.f32 %v484, %v663
    %v665 = vpop.f32.mrf.mxu0
    %666 = vmatprep.mubr.f32.mxu0 0.0
    %v667 = vand.u32 %v93, 4294901760
    %v668 = vsub.f32 %v93, %v667
    %669 = vmatmul.mubr.f32.gmra.mxu0 %v668
    %v670 = vpop.f32.mrf.mxu0
    %v671 = vadd.f32 %v490, %v670
    %v672 = vpop.f32.mrf.mxu0
    %673 = vdwg.mxu0
    %674 = vmatprep.subr.mxu0 0.0
    %675 = vmatpush1.msra.mxu0 0.0
    %676 = vmatprep.subr.mxu0 0.0
    %677 = vmatpush1.msra.mxu0 0.0
    %678 = vmatprep.subr.mxu0 0.0
    %679 = vmatpush1.msra.mxu0 0.0
    %680 = vmatprep.subr.mxu0 0.0
    %681 = vmatpush1.msra.mxu0 0.0
    %682 = vmatprep.subr.mxu0 0.0
    %683 = vmatpush1.msra.mxu0 0.0
    %684 = vmatprep.subr.mxu0 0.0
    %685 = vmatpush1.msra.mxu0 0.0
    %686 = vmatprep.subr.mxu0 0.0
    %687 = vmatpush1.msra.mxu0 0.0
    %688 = vmatprep.subr.mxu0 0.0
    %689 = vmatpush1.msra.mxu0 0.0
    %690 = vmatprep.subr.mxu0 0.0
    %691 = vmatpush1.msra.mxu0 0.0
    %692 = vmatprep.subr.mxu0 0.0
    %693 = vmatpush1.msra.mxu0 0.0
    %694 = vmatprep.subr.mxu0 0.0
    %695 = vmatpush1.msra.mxu0 0.0
    %696 = vmatprep.subr.mxu0 0.0
    %697 = vmatpush1.msra.mxu0 0.0
    %698 = vmatprep.subr.mxu0 0.0
    %699 = vmatpush1.msra.mxu0 0.0
    %700 = vmatprep.subr.mxu0 0.0
    %701 = vmatpush1.msra.mxu0 0.0
    %702 = vmatprep.subr.mxu0 0.0
    %v703 = vand.u32 %v45, 4294901760
    %704 = vmatpush1.msra.mxu0 %v703
    %705 = vmatprep.subr.mxu0 0.0
    %v706 = vand.u32 %v44, 4294901760
    %707 = vmatpush1.msra.mxu0 %v706
    %708 = vmatprep.subr.mxu0 0.0
    %709 = vmatpush2.msra.mxu0 0.0
    %710 = vmatprep.subr.mxu0 0.0
    %711 = vmatpush2.msra.mxu0 0.0
    %712 = vmatprep.subr.mxu0 0.0
    %713 = vmatpush2.msra.mxu0 0.0
    %714 = vmatprep.subr.mxu0 0.0
    %715 = vmatpush2.msra.mxu0 0.0
    %716 = vmatprep.subr.mxu0 0.0
    %717 = vmatpush2.msra.mxu0 0.0
    %718 = vmatprep.subr.mxu0 0.0
    %719 = vmatpush2.msra.mxu0 0.0
    %720 = vmatprep.subr.mxu0 0.0
    %721 = vmatpush2.msra.mxu0 0.0
    %722 = vmatprep.subr.mxu0 0.0
    %723 = vmatpush2.msra.mxu0 0.0
    %724 = vmatprep.subr.mxu0 0.0
    %725 = vmatpush2.msra.mxu0 0.0
    %726 = vmatprep.subr.mxu0 0.0
    %727 = vmatpush2.msra.mxu0 0.0
    %728 = vmatprep.subr.mxu0 0.0
    %729 = vmatpush2.msra.mxu0 0.0
    %730 = vmatprep.subr.mxu0 0.0
    %731 = vmatpush2.msra.mxu0 0.0
    %732 = vmatprep.subr.mxu0 0.0
    %733 = vmatpush2.msra.mxu0 0.0
    %734 = vmatprep.subr.mxu0 0.0
    %735 = vmatpush2.msra.mxu0 0.0
    %736 = vmatprep.subr.mxu0 0.0
    %737 = vmatpush2.msra.mxu0 0.0
    %738 = vmatprep.subr.mxu0 0.0
    %739 = vmatpush2.msra.mxu0 0.0
    %740 = vmatprep.mubr.f32.mxu0 0.0
    %v741 = vand.u32 %v48, 4294901760
    %v742 = vsub.f32 %v48, %v741
    %v743 = vand.u32 %v742, 4294901760
    %744 = vmatmul.mubr.f32.gmra.mxu0 %v743
    %v745 = vpop.f32.mrf.mxu0
    %v746 = vadd.f32 %v566, %v745
    %v747 = vpop.f32.mrf.mxu0
    %748 = vmatprep.mubr.f32.mxu0 0.0
    %v749 = vand.u32 %v51, 4294901760
    %v750 = vsub.f32 %v51, %v749
    %v751 = vand.u32 %v750, 4294901760
    %752 = vmatmul.mubr.f32.gmra.mxu0 %v751
    %v753 = vpop.f32.mrf.mxu0
    %v754 = vadd.f32 %v573, %v753
    %v755 = vpop.f32.mrf.mxu0
    %756 = vmatprep.mubr.f32.mxu0 0.0
    %v757 = vand.u32 %v54, 4294901760
    %v758 = vsub.f32 %v54, %v757
    %v759 = vand.u32 %v758, 4294901760
    %760 = vmatmul.mubr.f32.gmra.mxu0 %v759
    %v761 = vpop.f32.mrf.mxu0
    %v762 = vadd.f32 %v580, %v761
    %v763 = vpop.f32.mrf.mxu0
    %764 = vmatprep.mubr.f32.mxu0 0.0
    %v765 = vand.u32 %v57, 4294901760
    %v766 = vsub.f32 %v57, %v765
    %v767 = vand.u32 %v766, 4294901760
    %768 = vmatmul.mubr.f32.gmra.mxu0 %v767
    %v769 = vpop.f32.mrf.mxu0
    %v770 = vadd.f32 %v587, %v769
    %v771 = vpop.f32.mrf.mxu0
    %772 = vmatprep.mubr.f32.mxu0 0.0
    %v773 = vand.u32 %v60, 4294901760
    %v774 = vsub.f32 %v60, %v773
    %v775 = vand.u32 %v774, 4294901760
    %776 = vmatmul.mubr.f32.gmra.mxu0 %v775
    %v777 = vpop.f32.mrf.mxu0
    %v778 = vadd.f32 %v594, %v777
    %v779 = vpop.f32.mrf.mxu0
    %780 = vmatprep.mubr.f32.mxu0 0.0
    %v781 = vand.u32 %v63, 4294901760
    %v782 = vsub.f32 %v63, %v781
    %v783 = vand.u32 %v782, 4294901760
    %784 = vmatmul.mubr.f32.gmra.mxu0 %v783
    %v785 = vpop.f32.mrf.mxu0
    %v786 = vadd.f32 %v601, %v785
    %v787 = vpop.f32.mrf.mxu0
    %788 = vmatprep.mubr.f32.mxu0 0.0
    %v789 = vand.u32 %v66, 4294901760
    %v790 = vsub.f32 %v66, %v789
    %v791 = vand.u32 %v790, 4294901760
    %792 = vmatmul.mubr.f32.gmra.mxu0 %v791
    %v793 = vpop.f32.mrf.mxu0
    %v794 = vadd.f32 %v608, %v793
    %v795 = vpop.f32.mrf.mxu0
    %796 = vmatprep.mubr.f32.mxu0 0.0
    %v797 = vand.u32 %v69, 4294901760
    %v798 = vsub.f32 %v69, %v797
    %v799 = vand.u32 %v798, 4294901760
    %800 = vmatmul.mubr.f32.gmra.mxu0 %v799
    %v801 = vpop.f32.mrf.mxu0
    %v802 = vadd.f32 %v615, %v801
    %v803 = vpop.f32.mrf.mxu0
    %804 = vmatprep.mubr.f32.mxu0 0.0
    %v805 = vand.u32 %v72, 4294901760
    %v806 = vsub.f32 %v72, %v805
    %v807 = vand.u32 %v806, 4294901760
    %808 = vmatmul.mubr.f32.gmra.mxu0 %v807
    %v809 = vpop.f32.mrf.mxu0
    %v810 = vadd.f32 %v622, %v809
    %v811 = vpop.f32.mrf.mxu0
    %812 = vmatprep.mubr.f32.mxu0 0.0
    %v813 = vand.u32 %v75, 4294901760
    %v814 = vsub.f32 %v75, %v813
    %v815 = vand.u32 %v814, 4294901760
    %816 = vmatmul.mubr.f32.gmra.mxu0 %v815
    %v817 = vpop.f32.mrf.mxu0
    %v818 = vadd.f32 %v629, %v817
    %v819 = vpop.f32.mrf.mxu0
    %820 = vmatprep.mubr.f32.mxu0 0.0
    %v821 = vand.u32 %v78, 4294901760
    %v822 = vsub.f32 %v78, %v821
    %v823 = vand.u32 %v822, 4294901760
    %824 = vmatmul.mubr.f32.gmra.mxu0 %v823
    %v825 = vpop.f32.mrf.mxu0
    %v826 = vadd.f32 %v636, %v825
    %v827 = vpop.f32.mrf.mxu0
    %828 = vmatprep.mubr.f32.mxu0 0.0
    %v829 = vand.u32 %v81, 4294901760
    %v830 = vsub.f32 %v81, %v829
    %v831 = vand.u32 %v830, 4294901760
    %832 = vmatmul.mubr.f32.gmra.mxu0 %v831
    %v833 = vpop.f32.mrf.mxu0
    %v834 = vadd.f32 %v643, %v833
    %v835 = vpop.f32.mrf.mxu0
    %836 = vmatprep.mubr.f32.mxu0 0.0
    %v837 = vand.u32 %v84, 4294901760
    %v838 = vsub.f32 %v84, %v837
    %v839 = vand.u32 %v838, 4294901760
    %840 = vmatmul.mubr.f32.gmra.mxu0 %v839
    %v841 = vpop.f32.mrf.mxu0
    %v842 = vadd.f32 %v650, %v841
    %v843 = vpop.f32.mrf.mxu0
    %844 = vmatprep.mubr.f32.mxu0 0.0
    %v845 = vand.u32 %v87, 4294901760
    %v846 = vsub.f32 %v87, %v845
    %v847 = vand.u32 %v846, 4294901760
    %848 = vmatmul.mubr.f32.gmra.mxu0 %v847
    %v849 = vpop.f32.mrf.mxu0
    %v850 = vadd.f32 %v657, %v849
    %v851 = vpop.f32.mrf.mxu0
    %852 = vmatprep.mubr.f32.mxu0 0.0
    %v853 = vand.u32 %v90, 4294901760
    %v854 = vsub.f32 %v90, %v853
    %v855 = vand.u32 %v854, 4294901760
    %856 = vmatmul.mubr.f32.gmra.mxu0 %v855
    %v857 = vpop.f32.mrf.mxu0
    %v858 = vadd.f32 %v664, %v857
    %v859 = vpop.f32.mrf.mxu0
    %860 = vmatprep.mubr.f32.mxu0 0.0
    %v861 = vand.u32 %v93, 4294901760
    %v862 = vsub.f32 %v93, %v861
    %v863 = vand.u32 %v862, 4294901760
    %864 = vmatmul.mubr.f32.gmra.mxu0 %v863
    %v865 = vpop.f32.mrf.mxu0
    %v866 = vadd.f32 %v671, %v865
    %v867 = vpop.f32.mrf.mxu0
    %868 = vdwg.mxu0
    %869 = vmatprep.subr.mxu0 0.0
    %870 = vmatpush1.msra.mxu0 0.0
    %871 = vmatprep.subr.mxu0 0.0
    %872 = vmatpush1.msra.mxu0 0.0
    %873 = vmatprep.subr.mxu0 0.0
    %874 = vmatpush1.msra.mxu0 0.0
    %875 = vmatprep.subr.mxu0 0.0
    %876 = vmatpush1.msra.mxu0 0.0
    %877 = vmatprep.subr.mxu0 0.0
    %878 = vmatpush1.msra.mxu0 0.0
    %879 = vmatprep.subr.mxu0 0.0
    %880 = vmatpush1.msra.mxu0 0.0
    %881 = vmatprep.subr.mxu0 0.0
    %882 = vmatpush1.msra.mxu0 0.0
    %883 = vmatprep.subr.mxu0 0.0
    %884 = vmatpush1.msra.mxu0 0.0
    %885 = vmatprep.subr.mxu0 0.0
    %886 = vmatpush1.msra.mxu0 0.0
    %887 = vmatprep.subr.mxu0 0.0
    %888 = vmatpush1.msra.mxu0 0.0
    %889 = vmatprep.subr.mxu0 0.0
    %890 = vmatpush1.msra.mxu0 0.0
    %891 = vmatprep.subr.mxu0 0.0
    %892 = vmatpush1.msra.mxu0 0.0
    %893 = vmatprep.subr.mxu0 0.0
    %894 = vmatpush1.msra.mxu0 0.0
    %895 = vmatprep.subr.mxu0 0.0
    %896 = vmatpush1.msra.mxu0 0.0
    %897 = vmatprep.subr.mxu0 0.0
    %v898 = vand.u32 %v45, 4294901760
    %v899 = vsub.f32 %v45, %v898
    %v900 = vand.u32 %v899, 4294901760
    %901 = vmatpush1.msra.mxu0 %v900
    %902 = vmatprep.subr.mxu0 0.0
    %v903 = vand.u32 %v44, 4294901760
    %v904 = vsub.f32 %v44, %v903
    %v905 = vand.u32 %v904, 4294901760
    %906 = vmatpush1.msra.mxu0 %v905
    %907 = vmatprep.subr.mxu0 0.0
    %908 = vmatpush2.msra.mxu0 0.0
    %909 = vmatprep.subr.mxu0 0.0
    %910 = vmatpush2.msra.mxu0 0.0
    %911 = vmatprep.subr.mxu0 0.0
    %912 = vmatpush2.msra.mxu0 0.0
    %913 = vmatprep.subr.mxu0 0.0
    %914 = vmatpush2.msra.mxu0 0.0
    %915 = vmatprep.subr.mxu0 0.0
    %916 = vmatpush2.msra.mxu0 0.0
    %917 = vmatprep.subr.mxu0 0.0
    %918 = vmatpush2.msra.mxu0 0.0
    %919 = vmatprep.subr.mxu0 0.0
    %920 = vmatpush2.msra.mxu0 0.0
    %921 = vmatprep.subr.mxu0 0.0
    %922 = vmatpush2.msra.mxu0 0.0
    %923 = vmatprep.subr.mxu0 0.0
    %924 = vmatpush2.msra.mxu0 0.0
    %925 = vmatprep.subr.mxu0 0.0
    %926 = vmatpush2.msra.mxu0 0.0
    %927 = vmatprep.subr.mxu0 0.0
    %928 = vmatpush2.msra.mxu0 0.0
    %929 = vmatprep.subr.mxu0 0.0
    %930 = vmatpush2.msra.mxu0 0.0
    %931 = vmatprep.subr.mxu0 0.0
    %932 = vmatpush2.msra.mxu0 0.0
    %933 = vmatprep.subr.mxu0 0.0
    %934 = vmatpush2.msra.mxu0 0.0
    %935 = vmatprep.subr.mxu0 0.0
    %936 = vmatpush2.msra.mxu0 0.0
    %937 = vmatprep.subr.mxu0 0.0
    %938 = vmatpush2.msra.mxu0 0.0
    %939 = vmatprep.mubr.f32.mxu0 0.0
    %v940 = vand.u32 %v48, 4294901760
    %941 = vmatmul.mubr.f32.gmra.mxu0 %v940
    %v942 = vpop.f32.mrf.mxu0
    %v943 = vadd.f32 %v746, %v942
    %v944 = vpop.f32.mrf.mxu0
    %945 = vmatprep.mubr.f32.mxu0 0.0
    %v946 = vand.u32 %v51, 4294901760
    %947 = vmatmul.mubr.f32.gmra.mxu0 %v946
    %v948 = vpop.f32.mrf.mxu0
    %v949 = vadd.f32 %v754, %v948
    %v950 = vpop.f32.mrf.mxu0
    %951 = vmatprep.mubr.f32.mxu0 0.0
    %v952 = vand.u32 %v54, 4294901760
    %953 = vmatmul.mubr.f32.gmra.mxu0 %v952
    %v954 = vpop.f32.mrf.mxu0
    %v955 = vadd.f32 %v762, %v954
    %v956 = vpop.f32.mrf.mxu0
    %957 = vmatprep.mubr.f32.mxu0 0.0
    %v958 = vand.u32 %v57, 4294901760
    %959 = vmatmul.mubr.f32.gmra.mxu0 %v958
    %v960 = vpop.f32.mrf.mxu0
    %v961 = vadd.f32 %v770, %v960
    %v962 = vpop.f32.mrf.mxu0
    %963 = vmatprep.mubr.f32.mxu0 0.0
    %v964 = vand.u32 %v60, 4294901760
    %965 = vmatmul.mubr.f32.gmra.mxu0 %v964
    %v966 = vpop.f32.mrf.mxu0
    %v967 = vadd.f32 %v778, %v966
    %v968 = vpop.f32.mrf.mxu0
    %969 = vmatprep.mubr.f32.mxu0 0.0
    %v970 = vand.u32 %v63, 4294901760
    %971 = vmatmul.mubr.f32.gmra.mxu0 %v970
    %v972 = vpop.f32.mrf.mxu0
    %v973 = vadd.f32 %v786, %v972
    %v974 = vpop.f32.mrf.mxu0
    %975 = vmatprep.mubr.f32.mxu0 0.0
    %v976 = vand.u32 %v66, 4294901760
    %977 = vmatmul.mubr.f32.gmra.mxu0 %v976
    %v978 = vpop.f32.mrf.mxu0
    %v979 = vadd.f32 %v794, %v978
    %v980 = vpop.f32.mrf.mxu0
    %981 = vmatprep.mubr.f32.mxu0 0.0
    %v982 = vand.u32 %v69, 4294901760
    %983 = vmatmul.mubr.f32.gmra.mxu0 %v982
    %v984 = vpop.f32.mrf.mxu0
    %v985 = vadd.f32 %v802, %v984
    %v986 = vpop.f32.mrf.mxu0
    %987 = vmatprep.mubr.f32.mxu0 0.0
    %v988 = vand.u32 %v72, 4294901760
    %989 = vmatmul.mubr.f32.gmra.mxu0 %v988
    %v990 = vpop.f32.mrf.mxu0
    %v991 = vadd.f32 %v810, %v990
    %v992 = vpop.f32.mrf.mxu0
    %993 = vmatprep.mubr.f32.mxu0 0.0
    %v994 = vand.u32 %v75, 4294901760
    %995 = vmatmul.mubr.f32.gmra.mxu0 %v994
    %v996 = vpop.f32.mrf.mxu0
    %v997 = vadd.f32 %v818, %v996
    %v998 = vpop.f32.mrf.mxu0
    %999 = vmatprep.mubr.f32.mxu0 0.0
    %v1000 = vand.u32 %v78, 4294901760
    %1001 = vmatmul.mubr.f32.gmra.mxu0 %v1000
    %v1002 = vpop.f32.mrf.mxu0
    %v1003 = vadd.f32 %v826, %v1002
    %v1004 = vpop.f32.mrf.mxu0
    %1005 = vmatprep.mubr.f32.mxu0 0.0
    %v1006 = vand.u32 %v81, 4294901760
    %1007 = vmatmul.mubr.f32.gmra.mxu0 %v1006
    %v1008 = vpop.f32.mrf.mxu0
    %v1009 = vadd.f32 %v834, %v1008
    %v1010 = vpop.f32.mrf.mxu0
    %1011 = vmatprep.mubr.f32.mxu0 0.0
    %v1012 = vand.u32 %v84, 4294901760
    %1013 = vmatmul.mubr.f32.gmra.mxu0 %v1012
    %v1014 = vpop.f32.mrf.mxu0
    %v1015 = vadd.f32 %v842, %v1014
    %v1016 = vpop.f32.mrf.mxu0
    %1017 = vmatprep.mubr.f32.mxu0 0.0
    %v1018 = vand.u32 %v87, 4294901760
    %1019 = vmatmul.mubr.f32.gmra.mxu0 %v1018
    %v1020 = vpop.f32.mrf.mxu0
    %v1021 = vadd.f32 %v850, %v1020
    %v1022 = vpop.f32.mrf.mxu0
    %1023 = vmatprep.mubr.f32.mxu0 0.0
    %v1024 = vand.u32 %v90, 4294901760
    %1025 = vmatmul.mubr.f32.gmra.mxu0 %v1024
    %v1026 = vpop.f32.mrf.mxu0
    %v1027 = vadd.f32 %v858, %v1026
    %v1028 = vpop.f32.mrf.mxu0
    %1029 = vmatprep.mubr.f32.mxu0 0.0
    %v1030 = vand.u32 %v93, 4294901760
    %1031 = vmatmul.mubr.f32.gmra.mxu0 %v1030
    %v1032 = vpop.f32.mrf.mxu0
    %v1033 = vadd.f32 %v866, %v1032
    %v1034 = vpop.f32.mrf.mxu0
    %1035 = vdwg.mxu0
    %1036 = vmatprep.subr.mxu0 0.0
    %1037 = vmatpush1.msra.mxu0 0.0
    %1038 = vmatprep.subr.mxu0 0.0
    %1039 = vmatpush1.msra.mxu0 0.0
    %1040 = vmatprep.subr.mxu0 0.0
    %1041 = vmatpush1.msra.mxu0 0.0
    %1042 = vmatprep.subr.mxu0 0.0
    %1043 = vmatpush1.msra.mxu0 0.0
    %1044 = vmatprep.subr.mxu0 0.0
    %1045 = vmatpush1.msra.mxu0 0.0
    %1046 = vmatprep.subr.mxu0 0.0
    %1047 = vmatpush1.msra.mxu0 0.0
    %1048 = vmatprep.subr.mxu0 0.0
    %1049 = vmatpush1.msra.mxu0 0.0
    %1050 = vmatprep.subr.mxu0 0.0
    %1051 = vmatpush1.msra.mxu0 0.0
    %1052 = vmatprep.subr.mxu0 0.0
    %1053 = vmatpush1.msra.mxu0 0.0
    %1054 = vmatprep.subr.mxu0 0.0
    %1055 = vmatpush1.msra.mxu0 0.0
    %1056 = vmatprep.subr.mxu0 0.0
    %1057 = vmatpush1.msra.mxu0 0.0
    %1058 = vmatprep.subr.mxu0 0.0
    %1059 = vmatpush1.msra.mxu0 0.0
    %1060 = vmatprep.subr.mxu0 0.0
    %1061 = vmatpush1.msra.mxu0 0.0
    %1062 = vmatprep.subr.mxu0 0.0
    %1063 = vmatpush1.msra.mxu0 0.0
    %1064 = vmatprep.subr.mxu0 0.0
    %v1065 = vand.u32 %v45, 4294901760
    %1066 = vmatpush1.msra.mxu0 %v1065
    %1067 = vmatprep.subr.mxu0 0.0
    %v1068 = vand.u32 %v44, 4294901760
    %1069 = vmatpush1.msra.mxu0 %v1068
    %1070 = vmatprep.subr.mxu0 0.0
    %1071 = vmatpush2.msra.mxu0 0.0
    %1072 = vmatprep.subr.mxu0 0.0
    %1073 = vmatpush2.msra.mxu0 0.0
    %1074 = vmatprep.subr.mxu0 0.0
    %1075 = vmatpush2.msra.mxu0 0.0
    %1076 = vmatprep.subr.mxu0 0.0
    %1077 = vmatpush2.msra.mxu0 0.0
    %1078 = vmatprep.subr.mxu0 0.0
    %1079 = vmatpush2.msra.mxu0 0.0
    %1080 = vmatprep.subr.mxu0 0.0
    %1081 = vmatpush2.msra.mxu0 0.0
    %1082 = vmatprep.subr.mxu0 0.0
    %1083 = vmatpush2.msra.mxu0 0.0
    %1084 = vmatprep.subr.mxu0 0.0
    %1085 = vmatpush2.msra.mxu0 0.0
    %1086 = vmatprep.subr.mxu0 0.0
    %1087 = vmatpush2.msra.mxu0 0.0
    %1088 = vmatprep.subr.mxu0 0.0
    %1089 = vmatpush2.msra.mxu0 0.0
    %1090 = vmatprep.subr.mxu0 0.0
    %1091 = vmatpush2.msra.mxu0 0.0
    %1092 = vmatprep.subr.mxu0 0.0
    %1093 = vmatpush2.msra.mxu0 0.0
    %1094 = vmatprep.subr.mxu0 0.0
    %1095 = vmatpush2.msra.mxu0 0.0
    %1096 = vmatprep.subr.mxu0 0.0
    %1097 = vmatpush2.msra.mxu0 0.0
    %1098 = vmatprep.subr.mxu0 0.0
    %1099 = vmatpush2.msra.mxu0 0.0
    %1100 = vmatprep.subr.mxu0 0.0
    %1101 = vmatpush2.msra.mxu0 0.0
    %1102 = vmatprep.mubr.f32.mxu0 0.0
    %v1103 = vand.u32 %v48, 4294901760
    %1104 = vmatmul.mubr.f32.gmra.mxu0 %v1103
    %v1105 = vpop.f32.mrf.mxu0
    %v1106 = vadd.f32 %v943, %v1105
    %v1107 = vpop.f32.mrf.mxu0
    %1108 = vmatprep.mubr.f32.mxu0 0.0
    %v1109 = vand.u32 %v51, 4294901760
    %1110 = vmatmul.mubr.f32.gmra.mxu0 %v1109
    %v1111 = vpop.f32.mrf.mxu0
    %v1112 = vadd.f32 %v949, %v1111
    %v1113 = vpop.f32.mrf.mxu0
    %1114 = vmatprep.mubr.f32.mxu0 0.0
    %v1115 = vand.u32 %v54, 4294901760
    %1116 = vmatmul.mubr.f32.gmra.mxu0 %v1115
    %v1117 = vpop.f32.mrf.mxu0
    %v1118 = vadd.f32 %v955, %v1117
    %v1119 = vpop.f32.mrf.mxu0
    %1120 = vmatprep.mubr.f32.mxu0 0.0
    %v1121 = vand.u32 %v57, 4294901760
    %1122 = vmatmul.mubr.f32.gmra.mxu0 %v1121
    %v1123 = vpop.f32.mrf.mxu0
    %v1124 = vadd.f32 %v961, %v1123
    %v1125 = vpop.f32.mrf.mxu0
    %1126 = vmatprep.mubr.f32.mxu0 0.0
    %v1127 = vand.u32 %v60, 4294901760
    %1128 = vmatmul.mubr.f32.gmra.mxu0 %v1127
    %v1129 = vpop.f32.mrf.mxu0
    %v1130 = vadd.f32 %v967, %v1129
    %v1131 = vpop.f32.mrf.mxu0
    %1132 = vmatprep.mubr.f32.mxu0 0.0
    %v1133 = vand.u32 %v63, 4294901760
    %1134 = vmatmul.mubr.f32.gmra.mxu0 %v1133
    %v1135 = vpop.f32.mrf.mxu0
    %v1136 = vadd.f32 %v973, %v1135
    %v1137 = vpop.f32.mrf.mxu0
    %1138 = vmatprep.mubr.f32.mxu0 0.0
    %v1139 = vand.u32 %v66, 4294901760
    %1140 = vmatmul.mubr.f32.gmra.mxu0 %v1139
    %v1141 = vpop.f32.mrf.mxu0
    %v1142 = vadd.f32 %v979, %v1141
    %v1143 = vpop.f32.mrf.mxu0
    %1144 = vmatprep.mubr.f32.mxu0 0.0
    %v1145 = vand.u32 %v69, 4294901760
    %1146 = vmatmul.mubr.f32.gmra.mxu0 %v1145
    %v1147 = vpop.f32.mrf.mxu0
    %v1148 = vadd.f32 %v985, %v1147
    %v1149 = vpop.f32.mrf.mxu0
    %1150 = vmatprep.mubr.f32.mxu0 0.0
    %v1151 = vand.u32 %v72, 4294901760
    %1152 = vmatmul.mubr.f32.gmra.mxu0 %v1151
    %v1153 = vpop.f32.mrf.mxu0
    %v1154 = vadd.f32 %v991, %v1153
    %v1155 = vpop.f32.mrf.mxu0
    %1156 = vmatprep.mubr.f32.mxu0 0.0
    %v1157 = vand.u32 %v75, 4294901760
    %1158 = vmatmul.mubr.f32.gmra.mxu0 %v1157
    %v1159 = vpop.f32.mrf.mxu0
    %v1160 = vadd.f32 %v997, %v1159
    %v1161 = vpop.f32.mrf.mxu0
    %1162 = vmatprep.mubr.f32.mxu0 0.0
    %v1163 = vand.u32 %v78, 4294901760
    %1164 = vmatmul.mubr.f32.gmra.mxu0 %v1163
    %v1165 = vpop.f32.mrf.mxu0
    %v1166 = vadd.f32 %v1003, %v1165
    %v1167 = vpop.f32.mrf.mxu0
    %1168 = vmatprep.mubr.f32.mxu0 0.0
    %v1169 = vand.u32 %v81, 4294901760
    %1170 = vmatmul.mubr.f32.gmra.mxu0 %v1169
    %v1171 = vpop.f32.mrf.mxu0
    %v1172 = vadd.f32 %v1009, %v1171
    %v1173 = vpop.f32.mrf.mxu0
    %1174 = vmatprep.mubr.f32.mxu0 0.0
    %v1175 = vand.u32 %v84, 4294901760
    %1176 = vmatmul.mubr.f32.gmra.mxu0 %v1175
    %v1177 = vpop.f32.mrf.mxu0
    %v1178 = vadd.f32 %v1015, %v1177
    %v1179 = vpop.f32.mrf.mxu0
    %1180 = vmatprep.mubr.f32.mxu0 0.0
    %v1181 = vand.u32 %v87, 4294901760
    %1182 = vmatmul.mubr.f32.gmra.mxu0 %v1181
    %v1183 = vpop.f32.mrf.mxu0
    %v1184 = vadd.f32 %v1021, %v1183
    %v1185 = vpop.f32.mrf.mxu0
    %1186 = vmatprep.mubr.f32.mxu0 0.0
    %v1187 = vand.u32 %v90, 4294901760
    %1188 = vmatmul.mubr.f32.gmra.mxu0 %v1187
    %v1189 = vpop.f32.mrf.mxu0
    %v1190 = vadd.f32 %v1027, %v1189
    %v1191 = vpop.f32.mrf.mxu0
    %1192 = vmatprep.mubr.f32.mxu0 0.0
    %v1193 = vand.u32 %v93, 4294901760
    %1194 = vmatmul.mubr.f32.gmra.mxu0 %v1193
    %v1195 = vpop.f32.mrf.mxu0
    %v1196 = vadd.f32 %v1033, %v1195
    %v1197 = vpop.f32.mrf.mxu0
    %1198 = vdwg.mxu0
    %v1199 = vld [vmem:[%s1] sm:$0xff]
    %v1200 = vld [vmem:[%s1 + $0x8] sm:$0xff]
    %v1201 = vld [vmem:[%s1 + $0x10] sm:$0xff]
    %v1202 = vld [vmem:[%s1 + $0x18] sm:$0xff]
    %v1204 = vsel %vm46, %v1199, 0
    %v1207 = vsel %vm46, %v1200, 0
    %v1210 = vsel %vm46, %v1201, 0
    %v1213 = vsel %vm46, %v1202, 0
    %1215 = vmatprep.subr.mxu0 0.0
    %1216 = vmatpush1.msra.mxu0 0.0
    %1217 = vmatprep.subr.mxu0 0.0
    %1218 = vmatpush1.msra.mxu0 0.0
    %1219 = vmatprep.subr.mxu0 0.0
    %1220 = vmatpush1.msra.mxu0 0.0
    %1221 = vmatprep.subr.mxu0 0.0
    %1222 = vmatpush1.msra.mxu0 0.0
    %1223 = vmatprep.subr.mxu0 0.0
    %1224 = vmatpush1.msra.mxu0 0.0
    %1225 = vmatprep.subr.mxu0 0.0
    %1226 = vmatpush1.msra.mxu0 0.0
    %1227 = vmatprep.subr.mxu0 0.0
    %1228 = vmatpush1.msra.mxu0 0.0
    %1229 = vmatprep.subr.mxu0 0.0
    %1230 = vmatpush1.msra.mxu0 0.0
    %1231 = vmatprep.subr.mxu0 0.0
    %1232 = vmatpush1.msra.mxu0 0.0
    %1233 = vmatprep.subr.mxu0 0.0
    %1234 = vmatpush1.msra.mxu0 0.0
    %1235 = vmatprep.subr.mxu0 0.0
    %1236 = vmatpush1.msra.mxu0 0.0
    %1237 = vmatprep.subr.mxu0 0.0
    %1238 = vmatpush1.msra.mxu0 0.0
    %1239 = vmatprep.subr.mxu0 0.0
    %1240 = vmatpush1.msra.mxu0 0.0
    %1241 = vmatprep.subr.mxu0 0.0
    %1242 = vmatpush1.msra.mxu0 0.0
    %1243 = vmatprep.subr.mxu0 0.0
    %v1244 = vand.u32 %v1112, 4294901760
    %1245 = vmatpush1.msra.mxu0 %v1244
    %1246 = vmatprep.subr.mxu0 0.0
    %v1247 = vand.u32 %v1106, 4294901760
    %1248 = vmatpush1.msra.mxu0 %v1247
    %1249 = vmatprep.subr.mxu0 0.0
    %1250 = vmatpush2.msra.mxu0 0.0
    %1251 = vmatprep.subr.mxu0 0.0
    %1252 = vmatpush2.msra.mxu0 0.0
    %1253 = vmatprep.subr.mxu0 0.0
    %1254 = vmatpush2.msra.mxu0 0.0
    %1255 = vmatprep.subr.mxu0 0.0
    %1256 = vmatpush2.msra.mxu0 0.0
    %1257 = vmatprep.subr.mxu0 0.0
    %1258 = vmatpush2.msra.mxu0 0.0
    %1259 = vmatprep.subr.mxu0 0.0
    %1260 = vmatpush2.msra.mxu0 0.0
    %1261 = vmatprep.subr.mxu0 0.0
    %1262 = vmatpush2.msra.mxu0 0.0
    %1263 = vmatprep.subr.mxu0 0.0
    %1264 = vmatpush2.msra.mxu0 0.0
    %1265 = vmatprep.subr.mxu0 0.0
    %1266 = vmatpush2.msra.mxu0 0.0
    %1267 = vmatprep.subr.mxu0 0.0
    %1268 = vmatpush2.msra.mxu0 0.0
    %1269 = vmatprep.subr.mxu0 0.0
    %1270 = vmatpush2.msra.mxu0 0.0
    %1271 = vmatprep.subr.mxu0 0.0
    %1272 = vmatpush2.msra.mxu0 0.0
    %1273 = vmatprep.subr.mxu0 0.0
    %1274 = vmatpush2.msra.mxu0 0.0
    %1275 = vmatprep.subr.mxu0 0.0
    %1276 = vmatpush2.msra.mxu0 0.0
    %1277 = vmatprep.subr.mxu0 0.0
    %1278 = vmatpush2.msra.mxu0 0.0
    %1279 = vmatprep.subr.mxu0 0.0
    %1280 = vmatpush2.msra.mxu0 0.0
    %1281 = vmatprep.mubr.f32.mxu0 0.0
    %v1282 = vand.u32 %v1204, 4294901760
    %v1283 = vsub.f32 %v1204, %v1282
    %v1284 = vand.u32 %v1283, 4294901760
    %v1285 = vsub.f32 %v1283, %v1284
    %v1286 = vand.u32 %v1285, 4294901760
    %1287 = vmatmul.mubr.f32.gmra.mxu0 %v1286
    %v1288 = vpop.f32.mrf.mxu0
    %v1289 = vadd.f32 0.0, %v1288
    %v1290 = vpop.f32.mrf.mxu0
    %1291 = vmatprep.mubr.f32.mxu0 0.0
    %v1292 = vand.u32 %v1207, 4294901760
    %v1293 = vsub.f32 %v1207, %v1292
    %v1294 = vand.u32 %v1293, 4294901760
    %v1295 = vsub.f32 %v1293, %v1294
    %v1296 = vand.u32 %v1295, 4294901760
    %1297 = vmatmul.mubr.f32.gmra.mxu0 %v1296
    %v1298 = vpop.f32.mrf.mxu0
    %v1299 = vadd.f32 0.0, %v1298
    %v1300 = vpop.f32.mrf.mxu0
    %1301 = vmatprep.mubr.f32.mxu0 0.0
    %v1302 = vand.u32 %v1210, 4294901760
    %v1303 = vsub.f32 %v1210, %v1302
    %v1304 = vand.u32 %v1303, 4294901760
    %v1305 = vsub.f32 %v1303, %v1304
    %v1306 = vand.u32 %v1305, 4294901760
    %1307 = vmatmul.mubr.f32.gmra.mxu0 %v1306
    %v1308 = vpop.f32.mrf.mxu0
    %v1309 = vadd.f32 0.0, %v1308
    %v1310 = vpop.f32.mrf.mxu0
    %1311 = vmatprep.mubr.f32.mxu0 0.0
    %v1312 = vand.u32 %v1213, 4294901760
    %v1313 = vsub.f32 %v1213, %v1312
    %v1314 = vand.u32 %v1313, 4294901760
    %v1315 = vsub.f32 %v1313, %v1314
    %v1316 = vand.u32 %v1315, 4294901760
    %1317 = vmatmul.mubr.f32.gmra.mxu0 %v1316
    %v1318 = vpop.f32.mrf.mxu0
    %v1319 = vadd.f32 0.0, %v1318
    %v1320 = vpop.f32.mrf.mxu0
    %1321 = vdwg.mxu0
    %1322 = vmatprep.subr.mxu0 0.0
    %1323 = vmatpush1.msra.mxu0 0.0
    %1324 = vmatprep.subr.mxu0 0.0
    %1325 = vmatpush1.msra.mxu0 0.0
    %1326 = vmatprep.subr.mxu0 0.0
    %1327 = vmatpush1.msra.mxu0 0.0
    %1328 = vmatprep.subr.mxu0 0.0
    %1329 = vmatpush1.msra.mxu0 0.0
    %1330 = vmatprep.subr.mxu0 0.0
    %1331 = vmatpush1.msra.mxu0 0.0
    %1332 = vmatprep.subr.mxu0 0.0
    %1333 = vmatpush1.msra.mxu0 0.0
    %1334 = vmatprep.subr.mxu0 0.0
    %1335 = vmatpush1.msra.mxu0 0.0
    %1336 = vmatprep.subr.mxu0 0.0
    %1337 = vmatpush1.msra.mxu0 0.0
    %1338 = vmatprep.subr.mxu0 0.0
    %1339 = vmatpush1.msra.mxu0 0.0
    %1340 = vmatprep.subr.mxu0 0.0
    %1341 = vmatpush1.msra.mxu0 0.0
    %1342 = vmatprep.subr.mxu0 0.0
    %1343 = vmatpush1.msra.mxu0 0.0
    %1344 = vmatprep.subr.mxu0 0.0
    %1345 = vmatpush1.msra.mxu0 0.0
    %1346 = vmatprep.subr.mxu0 0.0
    %1347 = vmatpush1.msra.mxu0 0.0
    %1348 = vmatprep.subr.mxu0 0.0
    %1349 = vmatpush1.msra.mxu0 0.0
    %1350 = vmatprep.subr.mxu0 0.0
    %v1351 = vand.u32 %v1112, 4294901760
    %v1352 = vsub.f32 %v1112, %v1351
    %v1353 = vand.u32 %v1352, 4294901760
    %v1354 = vsub.f32 %v1352, %v1353
    %v1355 = vand.u32 %v1354, 4294901760
    %1356 = vmatpush1.msra.mxu0 %v1355
    %1357 = vmatprep.subr.mxu0 0.0
    %v1358 = vand.u32 %v1106, 4294901760
    %v1359 = vsub.f32 %v1106, %v1358
    %v1360 = vand.u32 %v1359, 4294901760
    %v1361 = vsub.f32 %v1359, %v1360
    %v1362 = vand.u32 %v1361, 4294901760
    %1363 = vmatpush1.msra.mxu0 %v1362
    %1364 = vmatprep.subr.mxu0 0.0
    %1365 = vmatpush2.msra.mxu0 0.0
    %1366 = vmatprep.subr.mxu0 0.0
    %1367 = vmatpush2.msra.mxu0 0.0
    %1368 = vmatprep.subr.mxu0 0.0
    %1369 = vmatpush2.msra.mxu0 0.0
    %1370 = vmatprep.subr.mxu0 0.0
    %1371 = vmatpush2.msra.mxu0 0.0
    %1372 = vmatprep.subr.mxu0 0.0
    %1373 = vmatpush2.msra.mxu0 0.0
    %1374 = vmatprep.subr.mxu0 0.0
    %1375 = vmatpush2.msra.mxu0 0.0
    %1376 = vmatprep.subr.mxu0 0.0
    %1377 = vmatpush2.msra.mxu0 0.0
    %1378 = vmatprep.subr.mxu0 0.0
    %1379 = vmatpush2.msra.mxu0 0.0
    %1380 = vmatprep.subr.mxu0 0.0
    %1381 = vmatpush2.msra.mxu0 0.0
    %1382 = vmatprep.subr.mxu0 0.0
    %1383 = vmatpush2.msra.mxu0 0.0
    %1384 = vmatprep.subr.mxu0 0.0
    %1385 = vmatpush2.msra.mxu0 0.0
    %1386 = vmatprep.subr.mxu0 0.0
    %1387 = vmatpush2.msra.mxu0 0.0
    %1388 = vmatprep.subr.mxu0 0.0
    %1389 = vmatpush2.msra.mxu0 0.0
    %1390 = vmatprep.subr.mxu0 0.0
    %1391 = vmatpush2.msra.mxu0 0.0
    %1392 = vmatprep.subr.mxu0 0.0
    %1393 = vmatpush2.msra.mxu0 0.0
    %1394 = vmatprep.subr.mxu0 0.0
    %1395 = vmatpush2.msra.mxu0 0.0
    %1396 = vmatprep.mubr.f32.mxu0 0.0
    %v1397 = vand.u32 %v1204, 4294901760
    %1398 = vmatmul.mubr.f32.gmra.mxu0 %v1397
    %v1399 = vpop.f32.mrf.mxu0
    %v1400 = vadd.f32 %v1289, %v1399
    %v1401 = vpop.f32.mrf.mxu0
    %1402 = vmatprep.mubr.f32.mxu0 0.0
    %v1403 = vand.u32 %v1207, 4294901760
    %1404 = vmatmul.mubr.f32.gmra.mxu0 %v1403
    %v1405 = vpop.f32.mrf.mxu0
    %v1406 = vadd.f32 %v1299, %v1405
    %v1407 = vpop.f32.mrf.mxu0
    %1408 = vmatprep.mubr.f32.mxu0 0.0
    %v1409 = vand.u32 %v1210, 4294901760
    %1410 = vmatmul.mubr.f32.gmra.mxu0 %v1409
    %v1411 = vpop.f32.mrf.mxu0
    %v1412 = vadd.f32 %v1309, %v1411
    %v1413 = vpop.f32.mrf.mxu0
    %1414 = vmatprep.mubr.f32.mxu0 0.0
    %v1415 = vand.u32 %v1213, 4294901760
    %1416 = vmatmul.mubr.f32.gmra.mxu0 %v1415
    %v1417 = vpop.f32.mrf.mxu0
    %v1418 = vadd.f32 %v1319, %v1417
    %v1419 = vpop.f32.mrf.mxu0
    %1420 = vdwg.mxu0
    %1421 = vmatprep.subr.mxu0 0.0
    %1422 = vmatpush1.msra.mxu0 0.0
    %1423 = vmatprep.subr.mxu0 0.0
    %1424 = vmatpush1.msra.mxu0 0.0
    %1425 = vmatprep.subr.mxu0 0.0
    %1426 = vmatpush1.msra.mxu0 0.0
    %1427 = vmatprep.subr.mxu0 0.0
    %1428 = vmatpush1.msra.mxu0 0.0
    %1429 = vmatprep.subr.mxu0 0.0
    %1430 = vmatpush1.msra.mxu0 0.0
    %1431 = vmatprep.subr.mxu0 0.0
    %1432 = vmatpush1.msra.mxu0 0.0
    %1433 = vmatprep.subr.mxu0 0.0
    %1434 = vmatpush1.msra.mxu0 0.0
    %1435 = vmatprep.subr.mxu0 0.0
    %1436 = vmatpush1.msra.mxu0 0.0
    %1437 = vmatprep.subr.mxu0 0.0
    %1438 = vmatpush1.msra.mxu0 0.0
    %1439 = vmatprep.subr.mxu0 0.0
    %1440 = vmatpush1.msra.mxu0 0.0
    %1441 = vmatprep.subr.mxu0 0.0
    %1442 = vmatpush1.msra.mxu0 0.0
    %1443 = vmatprep.subr.mxu0 0.0
    %1444 = vmatpush1.msra.mxu0 0.0
    %1445 = vmatprep.subr.mxu0 0.0
    %1446 = vmatpush1.msra.mxu0 0.0
    %1447 = vmatprep.subr.mxu0 0.0
    %1448 = vmatpush1.msra.mxu0 0.0
    %1449 = vmatprep.subr.mxu0 0.0
    %v1450 = vand.u32 %v1112, 4294901760
    %v1451 = vsub.f32 %v1112, %v1450
    %1452 = vmatpush1.msra.mxu0 %v1451
    %1453 = vmatprep.subr.mxu0 0.0
    %v1454 = vand.u32 %v1106, 4294901760
    %v1455 = vsub.f32 %v1106, %v1454
    %1456 = vmatpush1.msra.mxu0 %v1455
    %1457 = vmatprep.subr.mxu0 0.0
    %1458 = vmatpush2.msra.mxu0 0.0
    %1459 = vmatprep.subr.mxu0 0.0
    %1460 = vmatpush2.msra.mxu0 0.0
    %1461 = vmatprep.subr.mxu0 0.0
    %1462 = vmatpush2.msra.mxu0 0.0
    %1463 = vmatprep.subr.mxu0 0.0
    %1464 = vmatpush2.msra.mxu0 0.0
    %1465 = vmatprep.subr.mxu0 0.0
    %1466 = vmatpush2.msra.mxu0 0.0
    %1467 = vmatprep.subr.mxu0 0.0
    %1468 = vmatpush2.msra.mxu0 0.0
    %1469 = vmatprep.subr.mxu0 0.0
    %1470 = vmatpush2.msra.mxu0 0.0
    %1471 = vmatprep.subr.mxu0 0.0
    %1472 = vmatpush2.msra.mxu0 0.0
    %1473 = vmatprep.subr.mxu0 0.0
    %1474 = vmatpush2.msra.mxu0 0.0
    %1475 = vmatprep.subr.mxu0 0.0
    %1476 = vmatpush2.msra.mxu0 0.0
    %1477 = vmatprep.subr.mxu0 0.0
    %1478 = vmatpush2.msra.mxu0 0.0
    %1479 = vmatprep.subr.mxu0 0.0
    %1480 = vmatpush2.msra.mxu0 0.0
    %1481 = vmatprep.subr.mxu0 0.0
    %1482 = vmatpush2.msra.mxu0 0.0
    %1483 = vmatprep.subr.mxu0 0.0
    %1484 = vmatpush2.msra.mxu0 0.0
    %1485 = vmatprep.subr.mxu0 0.0
    %1486 = vmatpush2.msra.mxu0 0.0
    %1487 = vmatprep.subr.mxu0 0.0
    %1488 = vmatpush2.msra.mxu0 0.0
    %1489 = vmatprep.mubr.f32.mxu0 0.0
    %v1490 = vand.u32 %v1204, 4294901760
    %v1491 = vsub.f32 %v1204, %v1490
    %1492 = vmatmul.mubr.f32.gmra.mxu0 %v1491
    %v1493 = vpop.f32.mrf.mxu0
    %v1494 = vadd.f32 %v1400, %v1493
    %v1495 = vpop.f32.mrf.mxu0
    %1496 = vmatprep.mubr.f32.mxu0 0.0
    %v1497 = vand.u32 %v1207, 4294901760
    %v1498 = vsub.f32 %v1207, %v1497
    %1499 = vmatmul.mubr.f32.gmra.mxu0 %v1498
    %v1500 = vpop.f32.mrf.mxu0
    %v1501 = vadd.f32 %v1406, %v1500
    %v1502 = vpop.f32.mrf.mxu0
    %1503 = vmatprep.mubr.f32.mxu0 0.0
    %v1504 = vand.u32 %v1210, 4294901760
    %v1505 = vsub.f32 %v1210, %v1504
    %1506 = vmatmul.mubr.f32.gmra.mxu0 %v1505
    %v1507 = vpop.f32.mrf.mxu0
    %v1508 = vadd.f32 %v1412, %v1507
    %v1509 = vpop.f32.mrf.mxu0
    %1510 = vmatprep.mubr.f32.mxu0 0.0
    %v1511 = vand.u32 %v1213, 4294901760
    %v1512 = vsub.f32 %v1213, %v1511
    %1513 = vmatmul.mubr.f32.gmra.mxu0 %v1512
    %v1514 = vpop.f32.mrf.mxu0
    %v1515 = vadd.f32 %v1418, %v1514
    %v1516 = vpop.f32.mrf.mxu0
    %1517 = vdwg.mxu0
    %1518 = vmatprep.subr.mxu0 0.0
    %1519 = vmatpush1.msra.mxu0 0.0
    %1520 = vmatprep.subr.mxu0 0.0
    %1521 = vmatpush1.msra.mxu0 0.0
    %1522 = vmatprep.subr.mxu0 0.0
    %1523 = vmatpush1.msra.mxu0 0.0
    %1524 = vmatprep.subr.mxu0 0.0
    %1525 = vmatpush1.msra.mxu0 0.0
    %1526 = vmatprep.subr.mxu0 0.0
    %1527 = vmatpush1.msra.mxu0 0.0
    %1528 = vmatprep.subr.mxu0 0.0
    %1529 = vmatpush1.msra.mxu0 0.0
    %1530 = vmatprep.subr.mxu0 0.0
    %1531 = vmatpush1.msra.mxu0 0.0
    %1532 = vmatprep.subr.mxu0 0.0
    %1533 = vmatpush1.msra.mxu0 0.0
    %1534 = vmatprep.subr.mxu0 0.0
    %1535 = vmatpush1.msra.mxu0 0.0
    %1536 = vmatprep.subr.mxu0 0.0
    %1537 = vmatpush1.msra.mxu0 0.0
    %1538 = vmatprep.subr.mxu0 0.0
    %1539 = vmatpush1.msra.mxu0 0.0
    %1540 = vmatprep.subr.mxu0 0.0
    %1541 = vmatpush1.msra.mxu0 0.0
    %1542 = vmatprep.subr.mxu0 0.0
    %1543 = vmatpush1.msra.mxu0 0.0
    %1544 = vmatprep.subr.mxu0 0.0
    %1545 = vmatpush1.msra.mxu0 0.0
    %1546 = vmatprep.subr.mxu0 0.0
    %v1547 = vand.u32 %v1112, 4294901760
    %1548 = vmatpush1.msra.mxu0 %v1547
    %1549 = vmatprep.subr.mxu0 0.0
    %v1550 = vand.u32 %v1106, 4294901760
    %1551 = vmatpush1.msra.mxu0 %v1550
    %1552 = vmatprep.subr.mxu0 0.0
    %1553 = vmatpush2.msra.mxu0 0.0
    %1554 = vmatprep.subr.mxu0 0.0
    %1555 = vmatpush2.msra.mxu0 0.0
    %1556 = vmatprep.subr.mxu0 0.0
    %1557 = vmatpush2.msra.mxu0 0.0
    %1558 = vmatprep.subr.mxu0 0.0
    %1559 = vmatpush2.msra.mxu0 0.0
    %1560 = vmatprep.subr.mxu0 0.0
    %1561 = vmatpush2.msra.mxu0 0.0
    %1562 = vmatprep.subr.mxu0 0.0
    %1563 = vmatpush2.msra.mxu0 0.0
    %1564 = vmatprep.subr.mxu0 0.0
    %1565 = vmatpush2.msra.mxu0 0.0
    %1566 = vmatprep.subr.mxu0 0.0
    %1567 = vmatpush2.msra.mxu0 0.0
    %1568 = vmatprep.subr.mxu0 0.0
    %1569 = vmatpush2.msra.mxu0 0.0
    %1570 = vmatprep.subr.mxu0 0.0
    %1571 = vmatpush2.msra.mxu0 0.0
    %1572 = vmatprep.subr.mxu0 0.0
    %1573 = vmatpush2.msra.mxu0 0.0
    %1574 = vmatprep.subr.mxu0 0.0
    %1575 = vmatpush2.msra.mxu0 0.0
    %1576 = vmatprep.subr.mxu0 0.0
    %1577 = vmatpush2.msra.mxu0 0.0
    %1578 = vmatprep.subr.mxu0 0.0
    %1579 = vmatpush2.msra.mxu0 0.0
    %1580 = vmatprep.subr.mxu0 0.0
    %1581 = vmatpush2.msra.mxu0 0.0
    %1582 = vmatprep.subr.mxu0 0.0
    %1583 = vmatpush2.msra.mxu0 0.0
    %1584 = vmatprep.mubr.f32.mxu0 0.0
    %v1585 = vand.u32 %v1204, 4294901760
    %v1586 = vsub.f32 %v1204, %v1585
    %v1587 = vand.u32 %v1586, 4294901760
    %1588 = vmatmul.mubr.f32.gmra.mxu0 %v1587
    %v1589 = vpop.f32.mrf.mxu0
    %v1590 = vadd.f32 %v1494, %v1589
    %v1591 = vpop.f32.mrf.mxu0
    %1592 = vmatprep.mubr.f32.mxu0 0.0
    %v1593 = vand.u32 %v1207, 4294901760
    %v1594 = vsub.f32 %v1207, %v1593
    %v1595 = vand.u32 %v1594, 4294901760
    %1596 = vmatmul.mubr.f32.gmra.mxu0 %v1595
    %v1597 = vpop.f32.mrf.mxu0
    %v1598 = vadd.f32 %v1501, %v1597
    %v1599 = vpop.f32.mrf.mxu0
    %1600 = vmatprep.mubr.f32.mxu0 0.0
    %v1601 = vand.u32 %v1210, 4294901760
    %v1602 = vsub.f32 %v1210, %v1601
    %v1603 = vand.u32 %v1602, 4294901760
    %1604 = vmatmul.mubr.f32.gmra.mxu0 %v1603
    %v1605 = vpop.f32.mrf.mxu0
    %v1606 = vadd.f32 %v1508, %v1605
    %v1607 = vpop.f32.mrf.mxu0
    %1608 = vmatprep.mubr.f32.mxu0 0.0
    %v1609 = vand.u32 %v1213, 4294901760
    %v1610 = vsub.f32 %v1213, %v1609
    %v1611 = vand.u32 %v1610, 4294901760
    %1612 = vmatmul.mubr.f32.gmra.mxu0 %v1611
    %v1613 = vpop.f32.mrf.mxu0
    %v1614 = vadd.f32 %v1515, %v1613
    %v1615 = vpop.f32.mrf.mxu0
    %1616 = vdwg.mxu0
    %1617 = vmatprep.subr.mxu0 0.0
    %1618 = vmatpush1.msra.mxu0 0.0
    %1619 = vmatprep.subr.mxu0 0.0
    %1620 = vmatpush1.msra.mxu0 0.0
    %1621 = vmatprep.subr.mxu0 0.0
    %1622 = vmatpush1.msra.mxu0 0.0
    %1623 = vmatprep.subr.mxu0 0.0
    %1624 = vmatpush1.msra.mxu0 0.0
    %1625 = vmatprep.subr.mxu0 0.0
    %1626 = vmatpush1.msra.mxu0 0.0
    %1627 = vmatprep.subr.mxu0 0.0
    %1628 = vmatpush1.msra.mxu0 0.0
    %1629 = vmatprep.subr.mxu0 0.0
    %1630 = vmatpush1.msra.mxu0 0.0
    %1631 = vmatprep.subr.mxu0 0.0
    %1632 = vmatpush1.msra.mxu0 0.0
    %1633 = vmatprep.subr.mxu0 0.0
    %1634 = vmatpush1.msra.mxu0 0.0
    %1635 = vmatprep.subr.mxu0 0.0
    %1636 = vmatpush1.msra.mxu0 0.0
    %1637 = vmatprep.subr.mxu0 0.0
    %1638 = vmatpush1.msra.mxu0 0.0
    %1639 = vmatprep.subr.mxu0 0.0
    %1640 = vmatpush1.msra.mxu0 0.0
    %1641 = vmatprep.subr.mxu0 0.0
    %1642 = vmatpush1.msra.mxu0 0.0
    %1643 = vmatprep.subr.mxu0 0.0
    %1644 = vmatpush1.msra.mxu0 0.0
    %1645 = vmatprep.subr.mxu0 0.0
    %v1646 = vand.u32 %v1112, 4294901760
    %v1647 = vsub.f32 %v1112, %v1646
    %v1648 = vand.u32 %v1647, 4294901760
    %1649 = vmatpush1.msra.mxu0 %v1648
    %1650 = vmatprep.subr.mxu0 0.0
    %v1651 = vand.u32 %v1106, 4294901760
    %v1652 = vsub.f32 %v1106, %v1651
    %v1653 = vand.u32 %v1652, 4294901760
    %1654 = vmatpush1.msra.mxu0 %v1653
    %1655 = vmatprep.subr.mxu0 0.0
    %1656 = vmatpush2.msra.mxu0 0.0
    %1657 = vmatprep.subr.mxu0 0.0
    %1658 = vmatpush2.msra.mxu0 0.0
    %1659 = vmatprep.subr.mxu0 0.0
    %1660 = vmatpush2.msra.mxu0 0.0
    %1661 = vmatprep.subr.mxu0 0.0
    %1662 = vmatpush2.msra.mxu0 0.0
    %1663 = vmatprep.subr.mxu0 0.0
    %1664 = vmatpush2.msra.mxu0 0.0
    %1665 = vmatprep.subr.mxu0 0.0
    %1666 = vmatpush2.msra.mxu0 0.0
    %1667 = vmatprep.subr.mxu0 0.0
    %1668 = vmatpush2.msra.mxu0 0.0
    %1669 = vmatprep.subr.mxu0 0.0
    %1670 = vmatpush2.msra.mxu0 0.0
    %1671 = vmatprep.subr.mxu0 0.0
    %1672 = vmatpush2.msra.mxu0 0.0
    %1673 = vmatprep.subr.mxu0 0.0
    %1674 = vmatpush2.msra.mxu0 0.0
    %1675 = vmatprep.subr.mxu0 0.0
    %1676 = vmatpush2.msra.mxu0 0.0
    %1677 = vmatprep.subr.mxu0 0.0
    %1678 = vmatpush2.msra.mxu0 0.0
    %1679 = vmatprep.subr.mxu0 0.0
    %1680 = vmatpush2.msra.mxu0 0.0
    %1681 = vmatprep.subr.mxu0 0.0
    %1682 = vmatpush2.msra.mxu0 0.0
    %1683 = vmatprep.subr.mxu0 0.0
    %1684 = vmatpush2.msra.mxu0 0.0
    %1685 = vmatprep.subr.mxu0 0.0
    %1686 = vmatpush2.msra.mxu0 0.0
    %1687 = vmatprep.mubr.f32.mxu0 0.0
    %v1688 = vand.u32 %v1204, 4294901760
    %1689 = vmatmul.mubr.f32.gmra.mxu0 %v1688
    %v1690 = vpop.f32.mrf.mxu0
    %v1691 = vadd.f32 %v1590, %v1690
    %v1692 = vpop.f32.mrf.mxu0
    %1693 = vmatprep.mubr.f32.mxu0 0.0
    %v1694 = vand.u32 %v1207, 4294901760
    %1695 = vmatmul.mubr.f32.gmra.mxu0 %v1694
    %v1696 = vpop.f32.mrf.mxu0
    %v1697 = vadd.f32 %v1598, %v1696
    %v1698 = vpop.f32.mrf.mxu0
    %1699 = vmatprep.mubr.f32.mxu0 0.0
    %v1700 = vand.u32 %v1210, 4294901760
    %1701 = vmatmul.mubr.f32.gmra.mxu0 %v1700
    %v1702 = vpop.f32.mrf.mxu0
    %v1703 = vadd.f32 %v1606, %v1702
    %v1704 = vpop.f32.mrf.mxu0
    %1705 = vmatprep.mubr.f32.mxu0 0.0
    %v1706 = vand.u32 %v1213, 4294901760
    %1707 = vmatmul.mubr.f32.gmra.mxu0 %v1706
    %v1708 = vpop.f32.mrf.mxu0
    %v1709 = vadd.f32 %v1614, %v1708
    %v1710 = vpop.f32.mrf.mxu0
    %1711 = vdwg.mxu0
    %1712 = vmatprep.subr.mxu0 0.0
    %1713 = vmatpush1.msra.mxu0 0.0
    %1714 = vmatprep.subr.mxu0 0.0
    %1715 = vmatpush1.msra.mxu0 0.0
    %1716 = vmatprep.subr.mxu0 0.0
    %1717 = vmatpush1.msra.mxu0 0.0
    %1718 = vmatprep.subr.mxu0 0.0
    %1719 = vmatpush1.msra.mxu0 0.0
    %1720 = vmatprep.subr.mxu0 0.0
    %1721 = vmatpush1.msra.mxu0 0.0
    %1722 = vmatprep.subr.mxu0 0.0
    %1723 = vmatpush1.msra.mxu0 0.0
    %1724 = vmatprep.subr.mxu0 0.0
    %1725 = vmatpush1.msra.mxu0 0.0
    %1726 = vmatprep.subr.mxu0 0.0
    %1727 = vmatpush1.msra.mxu0 0.0
    %1728 = vmatprep.subr.mxu0 0.0
    %1729 = vmatpush1.msra.mxu0 0.0
    %1730 = vmatprep.subr.mxu0 0.0
    %1731 = vmatpush1.msra.mxu0 0.0
    %1732 = vmatprep.subr.mxu0 0.0
    %1733 = vmatpush1.msra.mxu0 0.0
    %1734 = vmatprep.subr.mxu0 0.0
    %1735 = vmatpush1.msra.mxu0 0.0
    %1736 = vmatprep.subr.mxu0 0.0
    %1737 = vmatpush1.msra.mxu0 0.0
    %1738 = vmatprep.subr.mxu0 0.0
    %1739 = vmatpush1.msra.mxu0 0.0
    %1740 = vmatprep.subr.mxu0 0.0
    %v1741 = vand.u32 %v1112, 4294901760
    %1742 = vmatpush1.msra.mxu0 %v1741
    %1743 = vmatprep.subr.mxu0 0.0
    %v1744 = vand.u32 %v1106, 4294901760
    %1745 = vmatpush1.msra.mxu0 %v1744
    %1746 = vmatprep.subr.mxu0 0.0
    %1747 = vmatpush2.msra.mxu0 0.0
    %1748 = vmatprep.subr.mxu0 0.0
    %1749 = vmatpush2.msra.mxu0 0.0
    %1750 = vmatprep.subr.mxu0 0.0
    %1751 = vmatpush2.msra.mxu0 0.0
    %1752 = vmatprep.subr.mxu0 0.0
    %1753 = vmatpush2.msra.mxu0 0.0
    %1754 = vmatprep.subr.mxu0 0.0
    %1755 = vmatpush2.msra.mxu0 0.0
    %1756 = vmatprep.subr.mxu0 0.0
    %1757 = vmatpush2.msra.mxu0 0.0
    %1758 = vmatprep.subr.mxu0 0.0
    %1759 = vmatpush2.msra.mxu0 0.0
    %1760 = vmatprep.subr.mxu0 0.0
    %1761 = vmatpush2.msra.mxu0 0.0
    %1762 = vmatprep.subr.mxu0 0.0
    %1763 = vmatpush2.msra.mxu0 0.0
    %1764 = vmatprep.subr.mxu0 0.0
    %1765 = vmatpush2.msra.mxu0 0.0
    %1766 = vmatprep.subr.mxu0 0.0
    %1767 = vmatpush2.msra.mxu0 0.0
    %1768 = vmatprep.subr.mxu0 0.0
    %1769 = vmatpush2.msra.mxu0 0.0
    %1770 = vmatprep.subr.mxu0 0.0
    %1771 = vmatpush2.msra.mxu0 0.0
    %1772 = vmatprep.subr.mxu0 0.0
    %1773 = vmatpush2.msra.mxu0 0.0
    %1774 = vmatprep.subr.mxu0 0.0
    %1775 = vmatpush2.msra.mxu0 0.0
    %1776 = vmatprep.subr.mxu0 0.0
    %1777 = vmatpush2.msra.mxu0 0.0
    %1778 = vmatprep.mubr.f32.mxu0 0.0
    %v1779 = vand.u32 %v1204, 4294901760
    %1780 = vmatmul.mubr.f32.gmra.mxu0 %v1779
    %v1781 = vpop.f32.mrf.mxu0
    %v1782 = vadd.f32 %v1691, %v1781
    %v1783 = vpop.f32.mrf.mxu0
    %1784 = vmatprep.mubr.f32.mxu0 0.0
    %v1785 = vand.u32 %v1207, 4294901760
    %1786 = vmatmul.mubr.f32.gmra.mxu0 %v1785
    %v1787 = vpop.f32.mrf.mxu0
    %v1788 = vadd.f32 %v1697, %v1787
    %v1789 = vpop.f32.mrf.mxu0
    %1790 = vmatprep.mubr.f32.mxu0 0.0
    %v1791 = vand.u32 %v1210, 4294901760
    %1792 = vmatmul.mubr.f32.gmra.mxu0 %v1791
    %v1793 = vpop.f32.mrf.mxu0
    %v1794 = vadd.f32 %v1703, %v1793
    %v1795 = vpop.f32.mrf.mxu0
    %1796 = vmatprep.mubr.f32.mxu0 0.0
    %v1797 = vand.u32 %v1213, 4294901760
    %1798 = vmatmul.mubr.f32.gmra.mxu0 %v1797
    %v1799 = vpop.f32.mrf.mxu0
    %v1800 = vadd.f32 %v1709, %v1799
    %v1801 = vpop.f32.mrf.mxu0
    %1802 = vdwg.mxu0
    %1803 = vmatprep.subr.mxu0 0.0
    %1804 = vmatpush1.msra.mxu0 0.0
    %1805 = vmatprep.subr.mxu0 0.0
    %1806 = vmatpush1.msra.mxu0 0.0
    %1807 = vmatprep.subr.mxu0 0.0
    %1808 = vmatpush1.msra.mxu0 0.0
    %1809 = vmatprep.subr.mxu0 0.0
    %1810 = vmatpush1.msra.mxu0 0.0
    %1811 = vmatprep.subr.mxu0 0.0
    %1812 = vmatpush1.msra.mxu0 0.0
    %1813 = vmatprep.subr.mxu0 0.0
    %1814 = vmatpush1.msra.mxu0 0.0
    %1815 = vmatprep.subr.mxu0 0.0
    %1816 = vmatpush1.msra.mxu0 0.0
    %1817 = vmatprep.subr.mxu0 0.0
    %1818 = vmatpush1.msra.mxu0 0.0
    %1819 = vmatprep.subr.mxu0 0.0
    %1820 = vmatpush1.msra.mxu0 0.0
    %1821 = vmatprep.subr.mxu0 0.0
    %1822 = vmatpush1.msra.mxu0 0.0
    %1823 = vmatprep.subr.mxu0 0.0
    %1824 = vmatpush1.msra.mxu0 0.0
    %1825 = vmatprep.subr.mxu0 0.0
    %1826 = vmatpush1.msra.mxu0 0.0
    %1827 = vmatprep.subr.mxu0 0.0
    %1828 = vmatpush1.msra.mxu0 0.0
    %1829 = vmatprep.subr.mxu0 0.0
    %1830 = vmatpush1.msra.mxu0 0.0
    %1831 = vmatprep.subr.mxu0 0.0
    %v1832 = vand.u32 %v1124, 4294901760
    %1833 = vmatpush1.msra.mxu0 %v1832
    %1834 = vmatprep.subr.mxu0 0.0
    %v1835 = vand.u32 %v1118, 4294901760
    %1836 = vmatpush1.msra.mxu0 %v1835
    %1837 = vmatprep.subr.mxu0 0.0
    %1838 = vmatpush2.msra.mxu0 0.0
    %1839 = vmatprep.subr.mxu0 0.0
    %1840 = vmatpush2.msra.mxu0 0.0
    %1841 = vmatprep.subr.mxu0 0.0
    %1842 = vmatpush2.msra.mxu0 0.0
    %1843 = vmatprep.subr.mxu0 0.0
    %1844 = vmatpush2.msra.mxu0 0.0
    %1845 = vmatprep.subr.mxu0 0.0
    %1846 = vmatpush2.msra.mxu0 0.0
    %1847 = vmatprep.subr.mxu0 0.0
    %1848 = vmatpush2.msra.mxu0 0.0
    %1849 = vmatprep.subr.mxu0 0.0
    %1850 = vmatpush2.msra.mxu0 0.0
    %1851 = vmatprep.subr.mxu0 0.0
    %1852 = vmatpush2.msra.mxu0 0.0
    %1853 = vmatprep.subr.mxu0 0.0
    %1854 = vmatpush2.msra.mxu0 0.0
    %1855 = vmatprep.subr.mxu0 0.0
    %1856 = vmatpush2.msra.mxu0 0.0
    %1857 = vmatprep.subr.mxu0 0.0
    %1858 = vmatpush2.msra.mxu0 0.0
    %1859 = vmatprep.subr.mxu0 0.0
    %1860 = vmatpush2.msra.mxu0 0.0
    %1861 = vmatprep.subr.mxu0 0.0
    %1862 = vmatpush2.msra.mxu0 0.0
    %1863 = vmatprep.subr.mxu0 0.0
    %1864 = vmatpush2.msra.mxu0 0.0
    %1865 = vmatprep.subr.mxu0 0.0
    %1866 = vmatpush2.msra.mxu0 0.0
    %1867 = vmatprep.subr.mxu0 0.0
    %1868 = vmatpush2.msra.mxu0 0.0
    %1869 = vmatprep.mubr.f32.mxu0 0.0
    %v1870 = vand.u32 %v1204, 4294901760
    %v1871 = vsub.f32 %v1204, %v1870
    %v1872 = vand.u32 %v1871, 4294901760
    %v1873 = vsub.f32 %v1871, %v1872
    %v1874 = vand.u32 %v1873, 4294901760
    %1875 = vmatmul.mubr.f32.gmra.mxu0 %v1874
    %v1876 = vpop.f32.mrf.mxu0
    %v1877 = vadd.f32 0.0, %v1876
    %v1878 = vpop.f32.mrf.mxu0
    %1879 = vmatprep.mubr.f32.mxu0 0.0
    %v1880 = vand.u32 %v1207, 4294901760
    %v1881 = vsub.f32 %v1207, %v1880
    %v1882 = vand.u32 %v1881, 4294901760
    %v1883 = vsub.f32 %v1881, %v1882
    %v1884 = vand.u32 %v1883, 4294901760
    %1885 = vmatmul.mubr.f32.gmra.mxu0 %v1884
    %v1886 = vpop.f32.mrf.mxu0
    %v1887 = vadd.f32 0.0, %v1886
    %v1888 = vpop.f32.mrf.mxu0
    %1889 = vmatprep.mubr.f32.mxu0 0.0
    %v1890 = vand.u32 %v1210, 4294901760
    %v1891 = vsub.f32 %v1210, %v1890
    %v1892 = vand.u32 %v1891, 4294901760
    %v1893 = vsub.f32 %v1891, %v1892
    %v1894 = vand.u32 %v1893, 4294901760
    %1895 = vmatmul.mubr.f32.gmra.mxu0 %v1894
    %v1896 = vpop.f32.mrf.mxu0
    %v1897 = vadd.f32 0.0, %v1896
    %v1898 = vpop.f32.mrf.mxu0
    %1899 = vmatprep.mubr.f32.mxu0 0.0
    %v1900 = vand.u32 %v1213, 4294901760
    %v1901 = vsub.f32 %v1213, %v1900
    %v1902 = vand.u32 %v1901, 4294901760
    %v1903 = vsub.f32 %v1901, %v1902
    %v1904 = vand.u32 %v1903, 4294901760
    %1905 = vmatmul.mubr.f32.gmra.mxu0 %v1904
    %v1906 = vpop.f32.mrf.mxu0
    %v1907 = vadd.f32 0.0, %v1906
    %v1908 = vpop.f32.mrf.mxu0
    %1909 = vdwg.mxu0
    %1910 = vmatprep.subr.mxu0 0.0
    %1911 = vmatpush1.msra.mxu0 0.0
    %1912 = vmatprep.subr.mxu0 0.0
    %1913 = vmatpush1.msra.mxu0 0.0
    %1914 = vmatprep.subr.mxu0 0.0
    %1915 = vmatpush1.msra.mxu0 0.0
    %1916 = vmatprep.subr.mxu0 0.0
    %1917 = vmatpush1.msra.mxu0 0.0
    %1918 = vmatprep.subr.mxu0 0.0
    %1919 = vmatpush1.msra.mxu0 0.0
    %1920 = vmatprep.subr.mxu0 0.0
    %1921 = vmatpush1.msra.mxu0 0.0
    %1922 = vmatprep.subr.mxu0 0.0
    %1923 = vmatpush1.msra.mxu0 0.0
    %1924 = vmatprep.subr.mxu0 0.0
    %1925 = vmatpush1.msra.mxu0 0.0
    %1926 = vmatprep.subr.mxu0 0.0
    %1927 = vmatpush1.msra.mxu0 0.0
    %1928 = vmatprep.subr.mxu0 0.0
    %1929 = vmatpush1.msra.mxu0 0.0
    %1930 = vmatprep.subr.mxu0 0.0
    %1931 = vmatpush1.msra.mxu0 0.0
    %1932 = vmatprep.subr.mxu0 0.0
    %1933 = vmatpush1.msra.mxu0 0.0
    %1934 = vmatprep.subr.mxu0 0.0
    %1935 = vmatpush1.msra.mxu0 0.0
    %1936 = vmatprep.subr.mxu0 0.0
    %1937 = vmatpush1.msra.mxu0 0.0
    %1938 = vmatprep.subr.mxu0 0.0
    %v1939 = vand.u32 %v1124, 4294901760
    %v1940 = vsub.f32 %v1124, %v1939
    %v1941 = vand.u32 %v1940, 4294901760
    %v1942 = vsub.f32 %v1940, %v1941
    %v1943 = vand.u32 %v1942, 4294901760
    %1944 = vmatpush1.msra.mxu0 %v1943
    %1945 = vmatprep.subr.mxu0 0.0
    %v1946 = vand.u32 %v1118, 4294901760
    %v1947 = vsub.f32 %v1118, %v1946
    %v1948 = vand.u32 %v1947, 4294901760
    %v1949 = vsub.f32 %v1947, %v1948
    %v1950 = vand.u32 %v1949, 4294901760
    %1951 = vmatpush1.msra.mxu0 %v1950
    %1952 = vmatprep.subr.mxu0 0.0
    %1953 = vmatpush2.msra.mxu0 0.0
    %1954 = vmatprep.subr.mxu0 0.0
    %1955 = vmatpush2.msra.mxu0 0.0
    %1956 = vmatprep.subr.mxu0 0.0
    %1957 = vmatpush2.msra.mxu0 0.0
    %1958 = vmatprep.subr.mxu0 0.0
    %1959 = vmatpush2.msra.mxu0 0.0
    %1960 = vmatprep.subr.mxu0 0.0
    %1961 = vmatpush2.msra.mxu0 0.0
    %1962 = vmatprep.subr.mxu0 0.0
    %1963 = vmatpush2.msra.mxu0 0.0
    %1964 = vmatprep.subr.mxu0 0.0
    %1965 = vmatpush2.msra.mxu0 0.0
    %1966 = vmatprep.subr.mxu0 0.0
    %1967 = vmatpush2.msra.mxu0 0.0
    %1968 = vmatprep.subr.mxu0 0.0
    %1969 = vmatpush2.msra.mxu0 0.0
    %1970 = vmatprep.subr.mxu0 0.0
    %1971 = vmatpush2.msra.mxu0 0.0
    %1972 = vmatprep.subr.mxu0 0.0
    %1973 = vmatpush2.msra.mxu0 0.0
    %1974 = vmatprep.subr.mxu0 0.0
    %1975 = vmatpush2.msra.mxu0 0.0
    %1976 = vmatprep.subr.mxu0 0.0
    %1977 = vmatpush2.msra.mxu0 0.0
    %1978 = vmatprep.subr.mxu0 0.0
    %1979 = vmatpush2.msra.mxu0 0.0
    %1980 = vmatprep.subr.mxu0 0.0
    %1981 = vmatpush2.msra.mxu0 0.0
    %1982 = vmatprep.subr.mxu0 0.0
    %1983 = vmatpush2.msra.mxu0 0.0
    %1984 = vmatprep.mubr.f32.mxu0 0.0
    %v1985 = vand.u32 %v1204, 4294901760
    %1986 = vmatmul.mubr.f32.gmra.mxu0 %v1985
    %v1987 = vpop.f32.mrf.mxu0
    %v1988 = vadd.f32 %v1877, %v1987
    %v1989 = vpop.f32.mrf.mxu0
    %1990 = vmatprep.mubr.f32.mxu0 0.0
    %v1991 = vand.u32 %v1207, 4294901760
    %1992 = vmatmul.mubr.f32.gmra.mxu0 %v1991
    %v1993 = vpop.f32.mrf.mxu0
    %v1994 = vadd.f32 %v1887, %v1993
    %v1995 = vpop.f32.mrf.mxu0
    %1996 = vmatprep.mubr.f32.mxu0 0.0
    %v1997 = vand.u32 %v1210, 4294901760
    %1998 = vmatmul.mubr.f32.gmra.mxu0 %v1997
    %v1999 = vpop.f32.mrf.mxu0
    %v2000 = vadd.f32 %v1897, %v1999
    %v2001 = vpop.f32.mrf.mxu0
    %2002 = vmatprep.mubr.f32.mxu0 0.0
    %v2003 = vand.u32 %v1213, 4294901760
    %2004 = vmatmul.mubr.f32.gmra.mxu0 %v2003
    %v2005 = vpop.f32.mrf.mxu0
    %v2006 = vadd.f32 %v1907, %v2005
    %v2007 = vpop.f32.mrf.mxu0
    %2008 = vdwg.mxu0
    %2009 = vmatprep.subr.mxu0 0.0
    %2010 = vmatpush1.msra.mxu0 0.0
    %2011 = vmatprep.subr.mxu0 0.0
    %2012 = vmatpush1.msra.mxu0 0.0
    %2013 = vmatprep.subr.mxu0 0.0
    %2014 = vmatpush1.msra.mxu0 0.0
    %2015 = vmatprep.subr.mxu0 0.0
    %2016 = vmatpush1.msra.mxu0 0.0
    %2017 = vmatprep.subr.mxu0 0.0
    %2018 = vmatpush1.msra.mxu0 0.0
    %2019 = vmatprep.subr.mxu0 0.0
    %2020 = vmatpush1.msra.mxu0 0.0
    %2021 = vmatprep.subr.mxu0 0.0
    %2022 = vmatpush1.msra.mxu0 0.0
    %2023 = vmatprep.subr.mxu0 0.0
    %2024 = vmatpush1.msra.mxu0 0.0
    %2025 = vmatprep.subr.mxu0 0.0
    %2026 = vmatpush1.msra.mxu0 0.0
    %2027 = vmatprep.subr.mxu0 0.0
    %2028 = vmatpush1.msra.mxu0 0.0
    %2029 = vmatprep.subr.mxu0 0.0
    %2030 = vmatpush1.msra.mxu0 0.0
    %2031 = vmatprep.subr.mxu0 0.0
    %2032 = vmatpush1.msra.mxu0 0.0
    %2033 = vmatprep.subr.mxu0 0.0
    %2034 = vmatpush1.msra.mxu0 0.0
    %2035 = vmatprep.subr.mxu0 0.0
    %2036 = vmatpush1.msra.mxu0 0.0
    %2037 = vmatprep.subr.mxu0 0.0
    %v2038 = vand.u32 %v1124, 4294901760
    %v2039 = vsub.f32 %v1124, %v2038
    %2040 = vmatpush1.msra.mxu0 %v2039
    %2041 = vmatprep.subr.mxu0 0.0
    %v2042 = vand.u32 %v1118, 4294901760
    %v2043 = vsub.f32 %v1118, %v2042
    %2044 = vmatpush1.msra.mxu0 %v2043
    %2045 = vmatprep.subr.mxu0 0.0
    %2046 = vmatpush2.msra.mxu0 0.0
    %2047 = vmatprep.subr.mxu0 0.0
    %2048 = vmatpush2.msra.mxu0 0.0
    %2049 = vmatprep.subr.mxu0 0.0
    %2050 = vmatpush2.msra.mxu0 0.0
    %2051 = vmatprep.subr.mxu0 0.0
    %2052 = vmatpush2.msra.mxu0 0.0
    %2053 = vmatprep.subr.mxu0 0.0
    %2054 = vmatpush2.msra.mxu0 0.0
    %2055 = vmatprep.subr.mxu0 0.0
    %2056 = vmatpush2.msra.mxu0 0.0
    %2057 = vmatprep.subr.mxu0 0.0
    %2058 = vmatpush2.msra.mxu0 0.0
    %2059 = vmatprep.subr.mxu0 0.0
    %2060 = vmatpush2.msra.mxu0 0.0
    %2061 = vmatprep.subr.mxu0 0.0
    %2062 = vmatpush2.msra.mxu0 0.0
    %2063 = vmatprep.subr.mxu0 0.0
    %2064 = vmatpush2.msra.mxu0 0.0
    %2065 = vmatprep.subr.mxu0 0.0
    %2066 = vmatpush2.msra.mxu0 0.0
    %2067 = vmatprep.subr.mxu0 0.0
    %2068 = vmatpush2.msra.mxu0 0.0
    %2069 = vmatprep.subr.mxu0 0.0
    %2070 = vmatpush2.msra.mxu0 0.0
    %2071 = vmatprep.subr.mxu0 0.0
    %2072 = vmatpush2.msra.mxu0 0.0
    %2073 = vmatprep.subr.mxu0 0.0
    %2074 = vmatpush2.msra.mxu0 0.0
    %2075 = vmatprep.subr.mxu0 0.0
    %2076 = vmatpush2.msra.mxu0 0.0
    %2077 = vmatprep.mubr.f32.mxu0 0.0
    %v2078 = vand.u32 %v1204, 4294901760
    %v2079 = vsub.f32 %v1204, %v2078
    %2080 = vmatmul.mubr.f32.gmra.mxu0 %v2079
    %v2081 = vpop.f32.mrf.mxu0
    %v2082 = vadd.f32 %v1988, %v2081
    %v2083 = vpop.f32.mrf.mxu0
    %2084 = vmatprep.mubr.f32.mxu0 0.0
    %v2085 = vand.u32 %v1207, 4294901760
    %v2086 = vsub.f32 %v1207, %v2085
    %2087 = vmatmul.mubr.f32.gmra.mxu0 %v2086
    %v2088 = vpop.f32.mrf.mxu0
    %v2089 = vadd.f32 %v1994, %v2088
    %v2090 = vpop.f32.mrf.mxu0
    %2091 = vmatprep.mubr.f32.mxu0 0.0
    %v2092 = vand.u32 %v1210, 4294901760
    %v2093 = vsub.f32 %v1210, %v2092
    %2094 = vmatmul.mubr.f32.gmra.mxu0 %v2093
    %v2095 = vpop.f32.mrf.mxu0
    %v2096 = vadd.f32 %v2000, %v2095
    %v2097 = vpop.f32.mrf.mxu0
    %2098 = vmatprep.mubr.f32.mxu0 0.0
    %v2099 = vand.u32 %v1213, 4294901760
    %v2100 = vsub.f32 %v1213, %v2099
    %2101 = vmatmul.mubr.f32.gmra.mxu0 %v2100
    %v2102 = vpop.f32.mrf.mxu0
    %v2103 = vadd.f32 %v2006, %v2102
    %v2104 = vpop.f32.mrf.mxu0
    %2105 = vdwg.mxu0
    %2106 = vmatprep.subr.mxu0 0.0
    %2107 = vmatpush1.msra.mxu0 0.0
    %2108 = vmatprep.subr.mxu0 0.0
    %2109 = vmatpush1.msra.mxu0 0.0
    %2110 = vmatprep.subr.mxu0 0.0
    %2111 = vmatpush1.msra.mxu0 0.0
    %2112 = vmatprep.subr.mxu0 0.0
    %2113 = vmatpush1.msra.mxu0 0.0
    %2114 = vmatprep.subr.mxu0 0.0
    %2115 = vmatpush1.msra.mxu0 0.0
    %2116 = vmatprep.subr.mxu0 0.0
    %2117 = vmatpush1.msra.mxu0 0.0
    %2118 = vmatprep.subr.mxu0 0.0
    %2119 = vmatpush1.msra.mxu0 0.0
    %2120 = vmatprep.subr.mxu0 0.0
    %2121 = vmatpush1.msra.mxu0 0.0
    %2122 = vmatprep.subr.mxu0 0.0
    %2123 = vmatpush1.msra.mxu0 0.0
    %2124 = vmatprep.subr.mxu0 0.0
    %2125 = vmatpush1.msra.mxu0 0.0
    %2126 = vmatprep.subr.mxu0 0.0
    %2127 = vmatpush1.msra.mxu0 0.0
    %2128 = vmatprep.subr.mxu0 0.0
    %2129 = vmatpush1.msra.mxu0 0.0
    %2130 = vmatprep.subr.mxu0 0.0
    %2131 = vmatpush1.msra.mxu0 0.0
    %2132 = vmatprep.subr.mxu0 0.0
    %2133 = vmatpush1.msra.mxu0 0.0
    %2134 = vmatprep.subr.mxu0 0.0
    %v2135 = vand.u32 %v1124, 4294901760
    %2136 = vmatpush1.msra.mxu0 %v2135
    %2137 = vmatprep.subr.mxu0 0.0
    %v2138 = vand.u32 %v1118, 4294901760
    %2139 = vmatpush1.msra.mxu0 %v2138
    %2140 = vmatprep.subr.mxu0 0.0
    %2141 = vmatpush2.msra.mxu0 0.0
    %2142 = vmatprep.subr.mxu0 0.0
    %2143 = vmatpush2.msra.mxu0 0.0
    %2144 = vmatprep.subr.mxu0 0.0
    %2145 = vmatpush2.msra.mxu0 0.0
    %2146 = vmatprep.subr.mxu0 0.0
    %2147 = vmatpush2.msra.mxu0 0.0
    %2148 = vmatprep.subr.mxu0 0.0
    %2149 = vmatpush2.msra.mxu0 0.0
    %2150 = vmatprep.subr.mxu0 0.0
    %2151 = vmatpush2.msra.mxu0 0.0
    %2152 = vmatprep.subr.mxu0 0.0
    %2153 = vmatpush2.msra.mxu0 0.0
    %2154 = vmatprep.subr.mxu0 0.0
    %2155 = vmatpush2.msra.mxu0 0.0
    %2156 = vmatprep.subr.mxu0 0.0
    %2157 = vmatpush2.msra.mxu0 0.0
    %2158 = vmatprep.subr.mxu0 0.0
    %2159 = vmatpush2.msra.mxu0 0.0
    %2160 = vmatprep.subr.mxu0 0.0
    %2161 = vmatpush2.msra.mxu0 0.0
    %2162 = vmatprep.subr.mxu0 0.0
    %2163 = vmatpush2.msra.mxu0 0.0
    %2164 = vmatprep.subr.mxu0 0.0
    %2165 = vmatpush2.msra.mxu0 0.0
    %2166 = vmatprep.subr.mxu0 0.0
    %2167 = vmatpush2.msra.mxu0 0.0
    %2168 = vmatprep.subr.mxu0 0.0
    %2169 = vmatpush2.msra.mxu0 0.0
    %2170 = vmatprep.subr.mxu0 0.0
    %2171 = vmatpush2.msra.mxu0 0.0
    %2172 = vmatprep.mubr.f32.mxu0 0.0
    %v2173 = vand.u32 %v1204, 4294901760
    %v2174 = vsub.f32 %v1204, %v2173
    %v2175 = vand.u32 %v2174, 4294901760
    %2176 = vmatmul.mubr.f32.gmra.mxu0 %v2175
    %v2177 = vpop.f32.mrf.mxu0
    %v2178 = vadd.f32 %v2082, %v2177
    %v2179 = vpop.f32.mrf.mxu0
    %2180 = vmatprep.mubr.f32.mxu0 0.0
    %v2181 = vand.u32 %v1207, 4294901760
    %v2182 = vsub.f32 %v1207, %v2181
    %v2183 = vand.u32 %v2182, 4294901760
    %2184 = vmatmul.mubr.f32.gmra.mxu0 %v2183
    %v2185 = vpop.f32.mrf.mxu0
    %v2186 = vadd.f32 %v2089, %v2185
    %v2187 = vpop.f32.mrf.mxu0
    %2188 = vmatprep.mubr.f32.mxu0 0.0
    %v2189 = vand.u32 %v1210, 4294901760
    %v2190 = vsub.f32 %v1210, %v2189
    %v2191 = vand.u32 %v2190, 4294901760
    %2192 = vmatmul.mubr.f32.gmra.mxu0 %v2191
    %v2193 = vpop.f32.mrf.mxu0
    %v2194 = vadd.f32 %v2096, %v2193
    %v2195 = vpop.f32.mrf.mxu0
    %2196 = vmatprep.mubr.f32.mxu0 0.0
    %v2197 = vand.u32 %v1213, 4294901760
    %v2198 = vsub.f32 %v1213, %v2197
    %v2199 = vand.u32 %v2198, 4294901760
    %2200 = vmatmul.mubr.f32.gmra.mxu0 %v2199
    %v2201 = vpop.f32.mrf.mxu0
    %v2202 = vadd.f32 %v2103, %v2201
    %v2203 = vpop.f32.mrf.mxu0
    %2204 = vdwg.mxu0
    %2205 = vmatprep.subr.mxu0 0.0
    %2206 = vmatpush1.msra.mxu0 0.0
    %2207 = vmatprep.subr.mxu0 0.0
    %2208 = vmatpush1.msra.mxu0 0.0
    %2209 = vmatprep.subr.mxu0 0.0
    %2210 = vmatpush1.msra.mxu0 0.0
    %2211 = vmatprep.subr.mxu0 0.0
    %2212 = vmatpush1.msra.mxu0 0.0
    %2213 = vmatprep.subr.mxu0 0.0
    %2214 = vmatpush1.msra.mxu0 0.0
    %2215 = vmatprep.subr.mxu0 0.0
    %2216 = vmatpush1.msra.mxu0 0.0
    %2217 = vmatprep.subr.mxu0 0.0
    %2218 = vmatpush1.msra.mxu0 0.0
    %2219 = vmatprep.subr.mxu0 0.0
    %2220 = vmatpush1.msra.mxu0 0.0
    %2221 = vmatprep.subr.mxu0 0.0
    %2222 = vmatpush1.msra.mxu0 0.0
    %2223 = vmatprep.subr.mxu0 0.0
    %2224 = vmatpush1.msra.mxu0 0.0
    %2225 = vmatprep.subr.mxu0 0.0
    %2226 = vmatpush1.msra.mxu0 0.0
    %2227 = vmatprep.subr.mxu0 0.0
    %2228 = vmatpush1.msra.mxu0 0.0
    %2229 = vmatprep.subr.mxu0 0.0
    %2230 = vmatpush1.msra.mxu0 0.0
    %2231 = vmatprep.subr.mxu0 0.0
    %2232 = vmatpush1.msra.mxu0 0.0
    %2233 = vmatprep.subr.mxu0 0.0
    %v2234 = vand.u32 %v1124, 4294901760
    %v2235 = vsub.f32 %v1124, %v2234
    %v2236 = vand.u32 %v2235, 4294901760
    %2237 = vmatpush1.msra.mxu0 %v2236
    %2238 = vmatprep.subr.mxu0 0.0
    %v2239 = vand.u32 %v1118, 4294901760
    %v2240 = vsub.f32 %v1118, %v2239
    %v2241 = vand.u32 %v2240, 4294901760
    %2242 = vmatpush1.msra.mxu0 %v2241
    %2243 = vmatprep.subr.mxu0 0.0
    %2244 = vmatpush2.msra.mxu0 0.0
    %2245 = vmatprep.subr.mxu0 0.0
    %2246 = vmatpush2.msra.mxu0 0.0
    %2247 = vmatprep.subr.mxu0 0.0
    %2248 = vmatpush2.msra.mxu0 0.0
    %2249 = vmatprep.subr.mxu0 0.0
    %2250 = vmatpush2.msra.mxu0 0.0
    %2251 = vmatprep.subr.mxu0 0.0
    %2252 = vmatpush2.msra.mxu0 0.0
    %2253 = vmatprep.subr.mxu0 0.0
    %2254 = vmatpush2.msra.mxu0 0.0
    %2255 = vmatprep.subr.mxu0 0.0
    %2256 = vmatpush2.msra.mxu0 0.0
    %2257 = vmatprep.subr.mxu0 0.0
    %2258 = vmatpush2.msra.mxu0 0.0
    %2259 = vmatprep.subr.mxu0 0.0
    %2260 = vmatpush2.msra.mxu0 0.0
    %2261 = vmatprep.subr.mxu0 0.0
    %2262 = vmatpush2.msra.mxu0 0.0
    %2263 = vmatprep.subr.mxu0 0.0
    %2264 = vmatpush2.msra.mxu0 0.0
    %2265 = vmatprep.subr.mxu0 0.0
    %2266 = vmatpush2.msra.mxu0 0.0
    %2267 = vmatprep.subr.mxu0 0.0
    %2268 = vmatpush2.msra.mxu0 0.0
    %2269 = vmatprep.subr.mxu0 0.0
    %2270 = vmatpush2.msra.mxu0 0.0
    %2271 = vmatprep.subr.mxu0 0.0
    %2272 = vmatpush2.msra.mxu0 0.0
    %2273 = vmatprep.subr.mxu0 0.0
    %2274 = vmatpush2.msra.mxu0 0.0
    %2275 = vmatprep.mubr.f32.mxu0 0.0
    %v2276 = vand.u32 %v1204, 4294901760
    %2277 = vmatmul.mubr.f32.gmra.mxu0 %v2276
    %v2278 = vpop.f32.mrf.mxu0
    %v2279 = vadd.f32 %v2178, %v2278
    %v2280 = vpop.f32.mrf.mxu0
    %2281 = vmatprep.mubr.f32.mxu0 0.0
    %v2282 = vand.u32 %v1207, 4294901760
    %2283 = vmatmul.mubr.f32.gmra.mxu0 %v2282
    %v2284 = vpop.f32.mrf.mxu0
    %v2285 = vadd.f32 %v2186, %v2284
    %v2286 = vpop.f32.mrf.mxu0
    %2287 = vmatprep.mubr.f32.mxu0 0.0
    %v2288 = vand.u32 %v1210, 4294901760
    %2289 = vmatmul.mubr.f32.gmra.mxu0 %v2288
    %v2290 = vpop.f32.mrf.mxu0
    %v2291 = vadd.f32 %v2194, %v2290
    %v2292 = vpop.f32.mrf.mxu0
    %2293 = vmatprep.mubr.f32.mxu0 0.0
    %v2294 = vand.u32 %v1213, 4294901760
    %2295 = vmatmul.mubr.f32.gmra.mxu0 %v2294
    %v2296 = vpop.f32.mrf.mxu0
    %v2297 = vadd.f32 %v2202, %v2296
    %v2298 = vpop.f32.mrf.mxu0
    %2299 = vdwg.mxu0
    %2300 = vmatprep.subr.mxu0 0.0
    %2301 = vmatpush1.msra.mxu0 0.0
    %2302 = vmatprep.subr.mxu0 0.0
    %2303 = vmatpush1.msra.mxu0 0.0
    %2304 = vmatprep.subr.mxu0 0.0
    %2305 = vmatpush1.msra.mxu0 0.0
    %2306 = vmatprep.subr.mxu0 0.0
    %2307 = vmatpush1.msra.mxu0 0.0
    %2308 = vmatprep.subr.mxu0 0.0
    %2309 = vmatpush1.msra.mxu0 0.0
    %2310 = vmatprep.subr.mxu0 0.0
    %2311 = vmatpush1.msra.mxu0 0.0
    %2312 = vmatprep.subr.mxu0 0.0
    %2313 = vmatpush1.msra.mxu0 0.0
    %2314 = vmatprep.subr.mxu0 0.0
    %2315 = vmatpush1.msra.mxu0 0.0
    %2316 = vmatprep.subr.mxu0 0.0
    %2317 = vmatpush1.msra.mxu0 0.0
    %2318 = vmatprep.subr.mxu0 0.0
    %2319 = vmatpush1.msra.mxu0 0.0
    %2320 = vmatprep.subr.mxu0 0.0
    %2321 = vmatpush1.msra.mxu0 0.0
    %2322 = vmatprep.subr.mxu0 0.0
    %2323 = vmatpush1.msra.mxu0 0.0
    %2324 = vmatprep.subr.mxu0 0.0
    %2325 = vmatpush1.msra.mxu0 0.0
    %2326 = vmatprep.subr.mxu0 0.0
    %2327 = vmatpush1.msra.mxu0 0.0
    %2328 = vmatprep.subr.mxu0 0.0
    %v2329 = vand.u32 %v1124, 4294901760
    %2330 = vmatpush1.msra.mxu0 %v2329
    %2331 = vmatprep.subr.mxu0 0.0
    %v2332 = vand.u32 %v1118, 4294901760
    %2333 = vmatpush1.msra.mxu0 %v2332
    %2334 = vmatprep.subr.mxu0 0.0
    %2335 = vmatpush2.msra.mxu0 0.0
    %2336 = vmatprep.subr.mxu0 0.0
    %2337 = vmatpush2.msra.mxu0 0.0
    %2338 = vmatprep.subr.mxu0 0.0
    %2339 = vmatpush2.msra.mxu0 0.0
    %2340 = vmatprep.subr.mxu0 0.0
    %2341 = vmatpush2.msra.mxu0 0.0
    %2342 = vmatprep.subr.mxu0 0.0
    %2343 = vmatpush2.msra.mxu0 0.0
    %2344 = vmatprep.subr.mxu0 0.0
    %2345 = vmatpush2.msra.mxu0 0.0
    %2346 = vmatprep.subr.mxu0 0.0
    %2347 = vmatpush2.msra.mxu0 0.0
    %2348 = vmatprep.subr.mxu0 0.0
    %2349 = vmatpush2.msra.mxu0 0.0
    %2350 = vmatprep.subr.mxu0 0.0
    %2351 = vmatpush2.msra.mxu0 0.0
    %2352 = vmatprep.subr.mxu0 0.0
    %2353 = vmatpush2.msra.mxu0 0.0
    %2354 = vmatprep.subr.mxu0 0.0
    %2355 = vmatpush2.msra.mxu0 0.0
    %2356 = vmatprep.subr.mxu0 0.0
    %2357 = vmatpush2.msra.mxu0 0.0
    %2358 = vmatprep.subr.mxu0 0.0
    %2359 = vmatpush2.msra.mxu0 0.0
    %2360 = vmatprep.subr.mxu0 0.0
    %2361 = vmatpush2.msra.mxu0 0.0
    %2362 = vmatprep.subr.mxu0 0.0
    %2363 = vmatpush2.msra.mxu0 0.0
    %2364 = vmatprep.subr.mxu0 0.0
    %2365 = vmatpush2.msra.mxu0 0.0
    %2366 = vmatprep.mubr.f32.mxu0 0.0
    %v2367 = vand.u32 %v1204, 4294901760
    %2368 = vmatmul.mubr.f32.gmra.mxu0 %v2367
    %v2369 = vpop.f32.mrf.mxu0
    %v2370 = vadd.f32 %v2279, %v2369
    %v2371 = vpop.f32.mrf.mxu0
    %2372 = vmatprep.mubr.f32.mxu0 0.0
    %v2373 = vand.u32 %v1207, 4294901760
    %2374 = vmatmul.mubr.f32.gmra.mxu0 %v2373
    %v2375 = vpop.f32.mrf.mxu0
    %v2376 = vadd.f32 %v2285, %v2375
    %v2377 = vpop.f32.mrf.mxu0
    %2378 = vmatprep.mubr.f32.mxu0 0.0
    %v2379 = vand.u32 %v1210, 4294901760
    %2380 = vmatmul.mubr.f32.gmra.mxu0 %v2379
    %v2381 = vpop.f32.mrf.mxu0
    %v2382 = vadd.f32 %v2291, %v2381
    %v2383 = vpop.f32.mrf.mxu0
    %2384 = vmatprep.mubr.f32.mxu0 0.0
    %v2385 = vand.u32 %v1213, 4294901760
    %2386 = vmatmul.mubr.f32.gmra.mxu0 %v2385
    %v2387 = vpop.f32.mrf.mxu0
    %v2388 = vadd.f32 %v2297, %v2387
    %v2389 = vpop.f32.mrf.mxu0
    %2390 = vdwg.mxu0
    %2391 = vmatprep.subr.mxu0 0.0
    %2392 = vmatpush1.msra.mxu0 0.0
    %2393 = vmatprep.subr.mxu0 0.0
    %2394 = vmatpush1.msra.mxu0 0.0
    %2395 = vmatprep.subr.mxu0 0.0
    %2396 = vmatpush1.msra.mxu0 0.0
    %2397 = vmatprep.subr.mxu0 0.0
    %2398 = vmatpush1.msra.mxu0 0.0
    %2399 = vmatprep.subr.mxu0 0.0
    %2400 = vmatpush1.msra.mxu0 0.0
    %2401 = vmatprep.subr.mxu0 0.0
    %2402 = vmatpush1.msra.mxu0 0.0
    %2403 = vmatprep.subr.mxu0 0.0
    %2404 = vmatpush1.msra.mxu0 0.0
    %2405 = vmatprep.subr.mxu0 0.0
    %2406 = vmatpush1.msra.mxu0 0.0
    %2407 = vmatprep.subr.mxu0 0.0
    %2408 = vmatpush1.msra.mxu0 0.0
    %2409 = vmatprep.subr.mxu0 0.0
    %2410 = vmatpush1.msra.mxu0 0.0
    %2411 = vmatprep.subr.mxu0 0.0
    %2412 = vmatpush1.msra.mxu0 0.0
    %2413 = vmatprep.subr.mxu0 0.0
    %2414 = vmatpush1.msra.mxu0 0.0
    %2415 = vmatprep.subr.mxu0 0.0
    %2416 = vmatpush1.msra.mxu0 0.0
    %2417 = vmatprep.subr.mxu0 0.0
    %2418 = vmatpush1.msra.mxu0 0.0
    %2419 = vmatprep.subr.mxu0 0.0
    %v2420 = vand.u32 %v1136, 4294901760
    %2421 = vmatpush1.msra.mxu0 %v2420
    %2422 = vmatprep.subr.mxu0 0.0
    %v2423 = vand.u32 %v1130, 4294901760
    %2424 = vmatpush1.msra.mxu0 %v2423
    %2425 = vmatprep.subr.mxu0 0.0
    %2426 = vmatpush2.msra.mxu0 0.0
    %2427 = vmatprep.subr.mxu0 0.0
    %2428 = vmatpush2.msra.mxu0 0.0
    %2429 = vmatprep.subr.mxu0 0.0
    %2430 = vmatpush2.msra.mxu0 0.0
    %2431 = vmatprep.subr.mxu0 0.0
    %2432 = vmatpush2.msra.mxu0 0.0
    %2433 = vmatprep.subr.mxu0 0.0
    %2434 = vmatpush2.msra.mxu0 0.0
    %2435 = vmatprep.subr.mxu0 0.0
    %2436 = vmatpush2.msra.mxu0 0.0
    %2437 = vmatprep.subr.mxu0 0.0
    %2438 = vmatpush2.msra.mxu0 0.0
    %2439 = vmatprep.subr.mxu0 0.0
    %2440 = vmatpush2.msra.mxu0 0.0
    %2441 = vmatprep.subr.mxu0 0.0
    %2442 = vmatpush2.msra.mxu0 0.0
    %2443 = vmatprep.subr.mxu0 0.0
    %2444 = vmatpush2.msra.mxu0 0.0
    %2445 = vmatprep.subr.mxu0 0.0
    %2446 = vmatpush2.msra.mxu0 0.0
    %2447 = vmatprep.subr.mxu0 0.0
    %2448 = vmatpush2.msra.mxu0 0.0
    %2449 = vmatprep.subr.mxu0 0.0
    %2450 = vmatpush2.msra.mxu0 0.0
    %2451 = vmatprep.subr.mxu0 0.0
    %2452 = vmatpush2.msra.mxu0 0.0
    %2453 = vmatprep.subr.mxu0 0.0
    %2454 = vmatpush2.msra.mxu0 0.0
    %2455 = vmatprep.subr.mxu0 0.0
    %2456 = vmatpush2.msra.mxu0 0.0
    %2457 = vmatprep.mubr.f32.mxu0 0.0
    %v2458 = vand.u32 %v1204, 4294901760
    %v2459 = vsub.f32 %v1204, %v2458
    %v2460 = vand.u32 %v2459, 4294901760
    %v2461 = vsub.f32 %v2459, %v2460
    %v2462 = vand.u32 %v2461, 4294901760
    %2463 = vmatmul.mubr.f32.gmra.mxu0 %v2462
    %v2464 = vpop.f32.mrf.mxu0
    %v2465 = vadd.f32 0.0, %v2464
    %v2466 = vpop.f32.mrf.mxu0
    %2467 = vmatprep.mubr.f32.mxu0 0.0
    %v2468 = vand.u32 %v1207, 4294901760
    %v2469 = vsub.f32 %v1207, %v2468
    %v2470 = vand.u32 %v2469, 4294901760
    %v2471 = vsub.f32 %v2469, %v2470
    %v2472 = vand.u32 %v2471, 4294901760
    %2473 = vmatmul.mubr.f32.gmra.mxu0 %v2472
    %v2474 = vpop.f32.mrf.mxu0
    %v2475 = vadd.f32 0.0, %v2474
    %v2476 = vpop.f32.mrf.mxu0
    %2477 = vmatprep.mubr.f32.mxu0 0.0
    %v2478 = vand.u32 %v1210, 4294901760
    %v2479 = vsub.f32 %v1210, %v2478
    %v2480 = vand.u32 %v2479, 4294901760
    %v2481 = vsub.f32 %v2479, %v2480
    %v2482 = vand.u32 %v2481, 4294901760
    %2483 = vmatmul.mubr.f32.gmra.mxu0 %v2482
    %v2484 = vpop.f32.mrf.mxu0
    %v2485 = vadd.f32 0.0, %v2484
    %v2486 = vpop.f32.mrf.mxu0
    %2487 = vmatprep.mubr.f32.mxu0 0.0
    %v2488 = vand.u32 %v1213, 4294901760
    %v2489 = vsub.f32 %v1213, %v2488
    %v2490 = vand.u32 %v2489, 4294901760
    %v2491 = vsub.f32 %v2489, %v2490
    %v2492 = vand.u32 %v2491, 4294901760
    %2493 = vmatmul.mubr.f32.gmra.mxu0 %v2492
    %v2494 = vpop.f32.mrf.mxu0
    %v2495 = vadd.f32 0.0, %v2494
    %v2496 = vpop.f32.mrf.mxu0
    %2497 = vdwg.mxu0
    %2498 = vmatprep.subr.mxu0 0.0
    %2499 = vmatpush1.msra.mxu0 0.0
    %2500 = vmatprep.subr.mxu0 0.0
    %2501 = vmatpush1.msra.mxu0 0.0
    %2502 = vmatprep.subr.mxu0 0.0
    %2503 = vmatpush1.msra.mxu0 0.0
    %2504 = vmatprep.subr.mxu0 0.0
    %2505 = vmatpush1.msra.mxu0 0.0
    %2506 = vmatprep.subr.mxu0 0.0
    %2507 = vmatpush1.msra.mxu0 0.0
    %2508 = vmatprep.subr.mxu0 0.0
    %2509 = vmatpush1.msra.mxu0 0.0
    %2510 = vmatprep.subr.mxu0 0.0
    %2511 = vmatpush1.msra.mxu0 0.0
    %2512 = vmatprep.subr.mxu0 0.0
    %2513 = vmatpush1.msra.mxu0 0.0
    %2514 = vmatprep.subr.mxu0 0.0
    %2515 = vmatpush1.msra.mxu0 0.0
    %2516 = vmatprep.subr.mxu0 0.0
    %2517 = vmatpush1.msra.mxu0 0.0
    %2518 = vmatprep.subr.mxu0 0.0
    %2519 = vmatpush1.msra.mxu0 0.0
    %2520 = vmatprep.subr.mxu0 0.0
    %2521 = vmatpush1.msra.mxu0 0.0
    %2522 = vmatprep.subr.mxu0 0.0
    %2523 = vmatpush1.msra.mxu0 0.0
    %2524 = vmatprep.subr.mxu0 0.0
    %2525 = vmatpush1.msra.mxu0 0.0
    %2526 = vmatprep.subr.mxu0 0.0
    %v2527 = vand.u32 %v1136, 4294901760
    %v2528 = vsub.f32 %v1136, %v2527
    %v2529 = vand.u32 %v2528, 4294901760
    %v2530 = vsub.f32 %v2528, %v2529
    %v2531 = vand.u32 %v2530, 4294901760
    %2532 = vmatpush1.msra.mxu0 %v2531
    %2533 = vmatprep.subr.mxu0 0.0
    %v2534 = vand.u32 %v1130, 4294901760
    %v2535 = vsub.f32 %v1130, %v2534
    %v2536 = vand.u32 %v2535, 4294901760
    %v2537 = vsub.f32 %v2535, %v2536
    %v2538 = vand.u32 %v2537, 4294901760
    %2539 = vmatpush1.msra.mxu0 %v2538
    %2540 = vmatprep.subr.mxu0 0.0
    %2541 = vmatpush2.msra.mxu0 0.0
    %2542 = vmatprep.subr.mxu0 0.0
    %2543 = vmatpush2.msra.mxu0 0.0
    %2544 = vmatprep.subr.mxu0 0.0
    %2545 = vmatpush2.msra.mxu0 0.0
    %2546 = vmatprep.subr.mxu0 0.0
    %2547 = vmatpush2.msra.mxu0 0.0
    %2548 = vmatprep.subr.mxu0 0.0
    %2549 = vmatpush2.msra.mxu0 0.0
    %2550 = vmatprep.subr.mxu0 0.0
    %2551 = vmatpush2.msra.mxu0 0.0
    %2552 = vmatprep.subr.mxu0 0.0
    %2553 = vmatpush2.msra.mxu0 0.0
    %2554 = vmatprep.subr.mxu0 0.0
    %2555 = vmatpush2.msra.mxu0 0.0
    %2556 = vmatprep.subr.mxu0 0.0
    %2557 = vmatpush2.msra.mxu0 0.0
    %2558 = vmatprep.subr.mxu0 0.0
    %2559 = vmatpush2.msra.mxu0 0.0
    %2560 = vmatprep.subr.mxu0 0.0
    %2561 = vmatpush2.msra.mxu0 0.0
    %2562 = vmatprep.subr.mxu0 0.0
    %2563 = vmatpush2.msra.mxu0 0.0
    %2564 = vmatprep.subr.mxu0 0.0
    %2565 = vmatpush2.msra.mxu0 0.0
    %2566 = vmatprep.subr.mxu0 0.0
    %2567 = vmatpush2.msra.mxu0 0.0
    %2568 = vmatprep.subr.mxu0 0.0
    %2569 = vmatpush2.msra.mxu0 0.0
    %2570 = vmatprep.subr.mxu0 0.0
    %2571 = vmatpush2.msra.mxu0 0.0
    %2572 = vmatprep.mubr.f32.mxu0 0.0
    %v2573 = vand.u32 %v1204, 4294901760
    %2574 = vmatmul.mubr.f32.gmra.mxu0 %v2573
    %v2575 = vpop.f32.mrf.mxu0
    %v2576 = vadd.f32 %v2465, %v2575
    %v2577 = vpop.f32.mrf.mxu0
    %2578 = vmatprep.mubr.f32.mxu0 0.0
    %v2579 = vand.u32 %v1207, 4294901760
    %2580 = vmatmul.mubr.f32.gmra.mxu0 %v2579
    %v2581 = vpop.f32.mrf.mxu0
    %v2582 = vadd.f32 %v2475, %v2581
    %v2583 = vpop.f32.mrf.mxu0
    %2584 = vmatprep.mubr.f32.mxu0 0.0
    %v2585 = vand.u32 %v1210, 4294901760
    %2586 = vmatmul.mubr.f32.gmra.mxu0 %v2585
    %v2587 = vpop.f32.mrf.mxu0
    %v2588 = vadd.f32 %v2485, %v2587
    %v2589 = vpop.f32.mrf.mxu0
    %2590 = vmatprep.mubr.f32.mxu0 0.0
    %v2591 = vand.u32 %v1213, 4294901760
    %2592 = vmatmul.mubr.f32.gmra.mxu0 %v2591
    %v2593 = vpop.f32.mrf.mxu0
    %v2594 = vadd.f32 %v2495, %v2593
    %v2595 = vpop.f32.mrf.mxu0
    %2596 = vdwg.mxu0
    %2597 = vmatprep.subr.mxu0 0.0
    %2598 = vmatpush1.msra.mxu0 0.0
    %2599 = vmatprep.subr.mxu0 0.0
    %2600 = vmatpush1.msra.mxu0 0.0
    %2601 = vmatprep.subr.mxu0 0.0
    %2602 = vmatpush1.msra.mxu0 0.0
    %2603 = vmatprep.subr.mxu0 0.0
    %2604 = vmatpush1.msra.mxu0 0.0
    %2605 = vmatprep.subr.mxu0 0.0
    %2606 = vmatpush1.msra.mxu0 0.0
    %2607 = vmatprep.subr.mxu0 0.0
    %2608 = vmatpush1.msra.mxu0 0.0
    %2609 = vmatprep.subr.mxu0 0.0
    %2610 = vmatpush1.msra.mxu0 0.0
    %2611 = vmatprep.subr.mxu0 0.0
    %2612 = vmatpush1.msra.mxu0 0.0
    %2613 = vmatprep.subr.mxu0 0.0
    %2614 = vmatpush1.msra.mxu0 0.0
    %2615 = vmatprep.subr.mxu0 0.0
    %2616 = vmatpush1.msra.mxu0 0.0
    %2617 = vmatprep.subr.mxu0 0.0
    %2618 = vmatpush1.msra.mxu0 0.0
    %2619 = vmatprep.subr.mxu0 0.0
    %2620 = vmatpush1.msra.mxu0 0.0
    %2621 = vmatprep.subr.mxu0 0.0
    %2622 = vmatpush1.msra.mxu0 0.0
    %2623 = vmatprep.subr.mxu0 0.0
    %2624 = vmatpush1.msra.mxu0 0.0
    %2625 = vmatprep.subr.mxu0 0.0
    %v2626 = vand.u32 %v1136, 4294901760
    %v2627 = vsub.f32 %v1136, %v2626
    %2628 = vmatpush1.msra.mxu0 %v2627
    %2629 = vmatprep.subr.mxu0 0.0
    %v2630 = vand.u32 %v1130, 4294901760
    %v2631 = vsub.f32 %v1130, %v2630
    %2632 = vmatpush1.msra.mxu0 %v2631
    %2633 = vmatprep.subr.mxu0 0.0
    %2634 = vmatpush2.msra.mxu0 0.0
    %2635 = vmatprep.subr.mxu0 0.0
    %2636 = vmatpush2.msra.mxu0 0.0
    %2637 = vmatprep.subr.mxu0 0.0
    %2638 = vmatpush2.msra.mxu0 0.0
    %2639 = vmatprep.subr.mxu0 0.0
    %2640 = vmatpush2.msra.mxu0 0.0
    %2641 = vmatprep.subr.mxu0 0.0
    %2642 = vmatpush2.msra.mxu0 0.0
    %2643 = vmatprep.subr.mxu0 0.0
    %2644 = vmatpush2.msra.mxu0 0.0
    %2645 = vmatprep.subr.mxu0 0.0
    %2646 = vmatpush2.msra.mxu0 0.0
    %2647 = vmatprep.subr.mxu0 0.0
    %2648 = vmatpush2.msra.mxu0 0.0
    %2649 = vmatprep.subr.mxu0 0.0
    %2650 = vmatpush2.msra.mxu0 0.0
    %2651 = vmatprep.subr.mxu0 0.0
    %2652 = vmatpush2.msra.mxu0 0.0
    %2653 = vmatprep.subr.mxu0 0.0
    %2654 = vmatpush2.msra.mxu0 0.0
    %2655 = vmatprep.subr.mxu0 0.0
    %2656 = vmatpush2.msra.mxu0 0.0
    %2657 = vmatprep.subr.mxu0 0.0
    %2658 = vmatpush2.msra.mxu0 0.0
    %2659 = vmatprep.subr.mxu0 0.0
    %2660 = vmatpush2.msra.mxu0 0.0
    %2661 = vmatprep.subr.mxu0 0.0
    %2662 = vmatpush2.msra.mxu0 0.0
    %2663 = vmatprep.subr.mxu0 0.0
    %2664 = vmatpush2.msra.mxu0 0.0
    %2665 = vmatprep.mubr.f32.mxu0 0.0
    %v2666 = vand.u32 %v1204, 4294901760
    %v2667 = vsub.f32 %v1204, %v2666
    %2668 = vmatmul.mubr.f32.gmra.mxu0 %v2667
    %v2669 = vpop.f32.mrf.mxu0
    %v2670 = vadd.f32 %v2576, %v2669
    %v2671 = vpop.f32.mrf.mxu0
    %2672 = vmatprep.mubr.f32.mxu0 0.0
    %v2673 = vand.u32 %v1207, 4294901760
    %v2674 = vsub.f32 %v1207, %v2673
    %2675 = vmatmul.mubr.f32.gmra.mxu0 %v2674
    %v2676 = vpop.f32.mrf.mxu0
    %v2677 = vadd.f32 %v2582, %v2676
    %v2678 = vpop.f32.mrf.mxu0
    %2679 = vmatprep.mubr.f32.mxu0 0.0
    %v2680 = vand.u32 %v1210, 4294901760
    %v2681 = vsub.f32 %v1210, %v2680
    %2682 = vmatmul.mubr.f32.gmra.mxu0 %v2681
    %v2683 = vpop.f32.mrf.mxu0
    %v2684 = vadd.f32 %v2588, %v2683
    %v2685 = vpop.f32.mrf.mxu0
    %2686 = vmatprep.mubr.f32.mxu0 0.0
    %v2687 = vand.u32 %v1213, 4294901760
    %v2688 = vsub.f32 %v1213, %v2687
    %2689 = vmatmul.mubr.f32.gmra.mxu0 %v2688
    %v2690 = vpop.f32.mrf.mxu0
    %v2691 = vadd.f32 %v2594, %v2690
    %v2692 = vpop.f32.mrf.mxu0
    %2693 = vdwg.mxu0
    %2694 = vmatprep.subr.mxu0 0.0
    %2695 = vmatpush1.msra.mxu0 0.0
    %2696 = vmatprep.subr.mxu0 0.0
    %2697 = vmatpush1.msra.mxu0 0.0
    %2698 = vmatprep.subr.mxu0 0.0
    %2699 = vmatpush1.msra.mxu0 0.0
    %2700 = vmatprep.subr.mxu0 0.0
    %2701 = vmatpush1.msra.mxu0 0.0
    %2702 = vmatprep.subr.mxu0 0.0
    %2703 = vmatpush1.msra.mxu0 0.0
    %2704 = vmatprep.subr.mxu0 0.0
    %2705 = vmatpush1.msra.mxu0 0.0
    %2706 = vmatprep.subr.mxu0 0.0
    %2707 = vmatpush1.msra.mxu0 0.0
    %2708 = vmatprep.subr.mxu0 0.0
    %2709 = vmatpush1.msra.mxu0 0.0
    %2710 = vmatprep.subr.mxu0 0.0
    %2711 = vmatpush1.msra.mxu0 0.0
    %2712 = vmatprep.subr.mxu0 0.0
    %2713 = vmatpush1.msra.mxu0 0.0
    %2714 = vmatprep.subr.mxu0 0.0
    %2715 = vmatpush1.msra.mxu0 0.0
    %2716 = vmatprep.subr.mxu0 0.0
    %2717 = vmatpush1.msra.mxu0 0.0
    %2718 = vmatprep.subr.mxu0 0.0
    %2719 = vmatpush1.msra.mxu0 0.0
    %2720 = vmatprep.subr.mxu0 0.0
    %2721 = vmatpush1.msra.mxu0 0.0
    %2722 = vmatprep.subr.mxu0 0.0
    %v2723 = vand.u32 %v1136, 4294901760
    %2724 = vmatpush1.msra.mxu0 %v2723
    %2725 = vmatprep.subr.mxu0 0.0
    %v2726 = vand.u32 %v1130, 4294901760
    %2727 = vmatpush1.msra.mxu0 %v2726
    %2728 = vmatprep.subr.mxu0 0.0
    %2729 = vmatpush2.msra.mxu0 0.0
    %2730 = vmatprep.subr.mxu0 0.0
    %2731 = vmatpush2.msra.mxu0 0.0
    %2732 = vmatprep.subr.mxu0 0.0
    %2733 = vmatpush2.msra.mxu0 0.0
    %2734 = vmatprep.subr.mxu0 0.0
    %2735 = vmatpush2.msra.mxu0 0.0
    %2736 = vmatprep.subr.mxu0 0.0
    %2737 = vmatpush2.msra.mxu0 0.0
    %2738 = vmatprep.subr.mxu0 0.0
    %2739 = vmatpush2.msra.mxu0 0.0
    %2740 = vmatprep.subr.mxu0 0.0
    %2741 = vmatpush2.msra.mxu0 0.0
    %2742 = vmatprep.subr.mxu0 0.0
    %2743 = vmatpush2.msra.mxu0 0.0
    %2744 = vmatprep.subr.mxu0 0.0
    %2745 = vmatpush2.msra.mxu0 0.0
    %2746 = vmatprep.subr.mxu0 0.0
    %2747 = vmatpush2.msra.mxu0 0.0
    %2748 = vmatprep.subr.mxu0 0.0
    %2749 = vmatpush2.msra.mxu0 0.0
    %2750 = vmatprep.subr.mxu0 0.0
    %2751 = vmatpush2.msra.mxu0 0.0
    %2752 = vmatprep.subr.mxu0 0.0
    %2753 = vmatpush2.msra.mxu0 0.0
    %2754 = vmatprep.subr.mxu0 0.0
    %2755 = vmatpush2.msra.mxu0 0.0
    %2756 = vmatprep.subr.mxu0 0.0
    %2757 = vmatpush2.msra.mxu0 0.0
    %2758 = vmatprep.subr.mxu0 0.0
    %2759 = vmatpush2.msra.mxu0 0.0
    %2760 = vmatprep.mubr.f32.mxu0 0.0
    %v2761 = vand.u32 %v1204, 4294901760
    %v2762 = vsub.f32 %v1204, %v2761
    %v2763 = vand.u32 %v2762, 4294901760
    %2764 = vmatmul.mubr.f32.gmra.mxu0 %v2763
    %v2765 = vpop.f32.mrf.mxu0
    %v2766 = vadd.f32 %v2670, %v2765
    %v2767 = vpop.f32.mrf.mxu0
    %2768 = vmatprep.mubr.f32.mxu0 0.0
    %v2769 = vand.u32 %v1207, 4294901760
    %v2770 = vsub.f32 %v1207, %v2769
    %v2771 = vand.u32 %v2770, 4294901760
    %2772 = vmatmul.mubr.f32.gmra.mxu0 %v2771
    %v2773 = vpop.f32.mrf.mxu0
    %v2774 = vadd.f32 %v2677, %v2773
    %v2775 = vpop.f32.mrf.mxu0
    %2776 = vmatprep.mubr.f32.mxu0 0.0
    %v2777 = vand.u32 %v1210, 4294901760
    %v2778 = vsub.f32 %v1210, %v2777
    %v2779 = vand.u32 %v2778, 4294901760
    %2780 = vmatmul.mubr.f32.gmra.mxu0 %v2779
    %v2781 = vpop.f32.mrf.mxu0
    %v2782 = vadd.f32 %v2684, %v2781
    %v2783 = vpop.f32.mrf.mxu0
    %2784 = vmatprep.mubr.f32.mxu0 0.0
    %v2785 = vand.u32 %v1213, 4294901760
    %v2786 = vsub.f32 %v1213, %v2785
    %v2787 = vand.u32 %v2786, 4294901760
    %2788 = vmatmul.mubr.f32.gmra.mxu0 %v2787
    %v2789 = vpop.f32.mrf.mxu0
    %v2790 = vadd.f32 %v2691, %v2789
    %v2791 = vpop.f32.mrf.mxu0
    %2792 = vdwg.mxu0
    %2793 = vmatprep.subr.mxu0 0.0
    %2794 = vmatpush1.msra.mxu0 0.0
    %2795 = vmatprep.subr.mxu0 0.0
    %2796 = vmatpush1.msra.mxu0 0.0
    %2797 = vmatprep.subr.mxu0 0.0
    %2798 = vmatpush1.msra.mxu0 0.0
    %2799 = vmatprep.subr.mxu0 0.0
    %2800 = vmatpush1.msra.mxu0 0.0
    %2801 = vmatprep.subr.mxu0 0.0
    %2802 = vmatpush1.msra.mxu0 0.0
    %2803 = vmatprep.subr.mxu0 0.0
    %2804 = vmatpush1.msra.mxu0 0.0
    %2805 = vmatprep.subr.mxu0 0.0
    %2806 = vmatpush1.msra.mxu0 0.0
    %2807 = vmatprep.subr.mxu0 0.0
    %2808 = vmatpush1.msra.mxu0 0.0
    %2809 = vmatprep.subr.mxu0 0.0
    %2810 = vmatpush1.msra.mxu0 0.0
    %2811 = vmatprep.subr.mxu0 0.0
    %2812 = vmatpush1.msra.mxu0 0.0
    %2813 = vmatprep.subr.mxu0 0.0
    %2814 = vmatpush1.msra.mxu0 0.0
    %2815 = vmatprep.subr.mxu0 0.0
    %2816 = vmatpush1.msra.mxu0 0.0
    %2817 = vmatprep.subr.mxu0 0.0
    %2818 = vmatpush1.msra.mxu0 0.0
    %2819 = vmatprep.subr.mxu0 0.0
    %2820 = vmatpush1.msra.mxu0 0.0
    %2821 = vmatprep.subr.mxu0 0.0
    %v2822 = vand.u32 %v1136, 4294901760
    %v2823 = vsub.f32 %v1136, %v2822
    %v2824 = vand.u32 %v2823, 4294901760
    %2825 = vmatpush1.msra.mxu0 %v2824
    %2826 = vmatprep.subr.mxu0 0.0
    %v2827 = vand.u32 %v1130, 4294901760
    %v2828 = vsub.f32 %v1130, %v2827
    %v2829 = vand.u32 %v2828, 4294901760
    %2830 = vmatpush1.msra.mxu0 %v2829
    %2831 = vmatprep.subr.mxu0 0.0
    %2832 = vmatpush2.msra.mxu0 0.0
    %2833 = vmatprep.subr.mxu0 0.0
    %2834 = vmatpush2.msra.mxu0 0.0
    %2835 = vmatprep.subr.mxu0 0.0
    %2836 = vmatpush2.msra.mxu0 0.0
    %2837 = vmatprep.subr.mxu0 0.0
    %2838 = vmatpush2.msra.mxu0 0.0
    %2839 = vmatprep.subr.mxu0 0.0
    %2840 = vmatpush2.msra.mxu0 0.0
    %2841 = vmatprep.subr.mxu0 0.0
    %2842 = vmatpush2.msra.mxu0 0.0
    %2843 = vmatprep.subr.mxu0 0.0
    %2844 = vmatpush2.msra.mxu0 0.0
    %2845 = vmatprep.subr.mxu0 0.0
    %2846 = vmatpush2.msra.mxu0 0.0
    %2847 = vmatprep.subr.mxu0 0.0
    %2848 = vmatpush2.msra.mxu0 0.0
    %2849 = vmatprep.subr.mxu0 0.0
    %2850 = vmatpush2.msra.mxu0 0.0
    %2851 = vmatprep.subr.mxu0 0.0
    %2852 = vmatpush2.msra.mxu0 0.0
    %2853 = vmatprep.subr.mxu0 0.0
    %2854 = vmatpush2.msra.mxu0 0.0
    %2855 = vmatprep.subr.mxu0 0.0
    %2856 = vmatpush2.msra.mxu0 0.0
    %2857 = vmatprep.subr.mxu0 0.0
    %2858 = vmatpush2.msra.mxu0 0.0
    %2859 = vmatprep.subr.mxu0 0.0
    %2860 = vmatpush2.msra.mxu0 0.0
    %2861 = vmatprep.subr.mxu0 0.0
    %2862 = vmatpush2.msra.mxu0 0.0
    %2863 = vmatprep.mubr.f32.mxu0 0.0
    %v2864 = vand.u32 %v1204, 4294901760
    %2865 = vmatmul.mubr.f32.gmra.mxu0 %v2864
    %v2866 = vpop.f32.mrf.mxu0
    %v2867 = vadd.f32 %v2766, %v2866
    %v2868 = vpop.f32.mrf.mxu0
    %2869 = vmatprep.mubr.f32.mxu0 0.0
    %v2870 = vand.u32 %v1207, 4294901760
    %2871 = vmatmul.mubr.f32.gmra.mxu0 %v2870
    %v2872 = vpop.f32.mrf.mxu0
    %v2873 = vadd.f32 %v2774, %v2872
    %v2874 = vpop.f32.mrf.mxu0
    %2875 = vmatprep.mubr.f32.mxu0 0.0
    %v2876 = vand.u32 %v1210, 4294901760
    %2877 = vmatmul.mubr.f32.gmra.mxu0 %v2876
    %v2878 = vpop.f32.mrf.mxu0
    %v2879 = vadd.f32 %v2782, %v2878
    %v2880 = vpop.f32.mrf.mxu0
    %2881 = vmatprep.mubr.f32.mxu0 0.0
    %v2882 = vand.u32 %v1213, 4294901760
    %2883 = vmatmul.mubr.f32.gmra.mxu0 %v2882
    %v2884 = vpop.f32.mrf.mxu0
    %v2885 = vadd.f32 %v2790, %v2884
    %v2886 = vpop.f32.mrf.mxu0
    %2887 = vdwg.mxu0
    %2888 = vmatprep.subr.mxu0 0.0
    %2889 = vmatpush1.msra.mxu0 0.0
    %2890 = vmatprep.subr.mxu0 0.0
    %2891 = vmatpush1.msra.mxu0 0.0
    %2892 = vmatprep.subr.mxu0 0.0
    %2893 = vmatpush1.msra.mxu0 0.0
    %2894 = vmatprep.subr.mxu0 0.0
    %2895 = vmatpush1.msra.mxu0 0.0
    %2896 = vmatprep.subr.mxu0 0.0
    %2897 = vmatpush1.msra.mxu0 0.0
    %2898 = vmatprep.subr.mxu0 0.0
    %2899 = vmatpush1.msra.mxu0 0.0
    %2900 = vmatprep.subr.mxu0 0.0
    %2901 = vmatpush1.msra.mxu0 0.0
    %2902 = vmatprep.subr.mxu0 0.0
    %2903 = vmatpush1.msra.mxu0 0.0
    %2904 = vmatprep.subr.mxu0 0.0
    %2905 = vmatpush1.msra.mxu0 0.0
    %2906 = vmatprep.subr.mxu0 0.0
    %2907 = vmatpush1.msra.mxu0 0.0
    %2908 = vmatprep.subr.mxu0 0.0
    %2909 = vmatpush1.msra.mxu0 0.0
    %2910 = vmatprep.subr.mxu0 0.0
    %2911 = vmatpush1.msra.mxu0 0.0
    %2912 = vmatprep.subr.mxu0 0.0
    %2913 = vmatpush1.msra.mxu0 0.0
    %2914 = vmatprep.subr.mxu0 0.0
    %2915 = vmatpush1.msra.mxu0 0.0
    %2916 = vmatprep.subr.mxu0 0.0
    %v2917 = vand.u32 %v1136, 4294901760
    %2918 = vmatpush1.msra.mxu0 %v2917
    %2919 = vmatprep.subr.mxu0 0.0
    %v2920 = vand.u32 %v1130, 4294901760
    %2921 = vmatpush1.msra.mxu0 %v2920
    %2922 = vmatprep.subr.mxu0 0.0
    %2923 = vmatpush2.msra.mxu0 0.0
    %2924 = vmatprep.subr.mxu0 0.0
    %2925 = vmatpush2.msra.mxu0 0.0
    %2926 = vmatprep.subr.mxu0 0.0
    %2927 = vmatpush2.msra.mxu0 0.0
    %2928 = vmatprep.subr.mxu0 0.0
    %2929 = vmatpush2.msra.mxu0 0.0
    %2930 = vmatprep.subr.mxu0 0.0
    %2931 = vmatpush2.msra.mxu0 0.0
    %2932 = vmatprep.subr.mxu0 0.0
    %2933 = vmatpush2.msra.mxu0 0.0
    %2934 = vmatprep.subr.mxu0 0.0
    %2935 = vmatpush2.msra.mxu0 0.0
    %2936 = vmatprep.subr.mxu0 0.0
    %2937 = vmatpush2.msra.mxu0 0.0
    %2938 = vmatprep.subr.mxu0 0.0
    %2939 = vmatpush2.msra.mxu0 0.0
    %2940 = vmatprep.subr.mxu0 0.0
    %2941 = vmatpush2.msra.mxu0 0.0
    %2942 = vmatprep.subr.mxu0 0.0
    %2943 = vmatpush2.msra.mxu0 0.0
    %2944 = vmatprep.subr.mxu0 0.0
    %2945 = vmatpush2.msra.mxu0 0.0
    %2946 = vmatprep.subr.mxu0 0.0
    %2947 = vmatpush2.msra.mxu0 0.0
    %2948 = vmatprep.subr.mxu0 0.0
    %2949 = vmatpush2.msra.mxu0 0.0
    %2950 = vmatprep.subr.mxu0 0.0
    %2951 = vmatpush2.msra.mxu0 0.0
    %2952 = vmatprep.subr.mxu0 0.0
    %2953 = vmatpush2.msra.mxu0 0.0
    %2954 = vmatprep.mubr.f32.mxu0 0.0
    %v2955 = vand.u32 %v1204, 4294901760
    %2956 = vmatmul.mubr.f32.gmra.mxu0 %v2955
    %v2957 = vpop.f32.mrf.mxu0
    %v2958 = vadd.f32 %v2867, %v2957
    %v2959 = vpop.f32.mrf.mxu0
    %2960 = vmatprep.mubr.f32.mxu0 0.0
    %v2961 = vand.u32 %v1207, 4294901760
    %2962 = vmatmul.mubr.f32.gmra.mxu0 %v2961
    %v2963 = vpop.f32.mrf.mxu0
    %v2964 = vadd.f32 %v2873, %v2963
    %v2965 = vpop.f32.mrf.mxu0
    %2966 = vmatprep.mubr.f32.mxu0 0.0
    %v2967 = vand.u32 %v1210, 4294901760
    %2968 = vmatmul.mubr.f32.gmra.mxu0 %v2967
    %v2969 = vpop.f32.mrf.mxu0
    %v2970 = vadd.f32 %v2879, %v2969
    %v2971 = vpop.f32.mrf.mxu0
    %2972 = vmatprep.mubr.f32.mxu0 0.0
    %v2973 = vand.u32 %v1213, 4294901760
    %2974 = vmatmul.mubr.f32.gmra.mxu0 %v2973
    %v2975 = vpop.f32.mrf.mxu0
    %v2976 = vadd.f32 %v2885, %v2975
    %v2977 = vpop.f32.mrf.mxu0
    %2978 = vdwg.mxu0
    %2979 = vmatprep.subr.mxu0 0.0
    %2980 = vmatpush1.msra.mxu0 0.0
    %2981 = vmatprep.subr.mxu0 0.0
    %2982 = vmatpush1.msra.mxu0 0.0
    %2983 = vmatprep.subr.mxu0 0.0
    %2984 = vmatpush1.msra.mxu0 0.0
    %2985 = vmatprep.subr.mxu0 0.0
    %2986 = vmatpush1.msra.mxu0 0.0
    %2987 = vmatprep.subr.mxu0 0.0
    %2988 = vmatpush1.msra.mxu0 0.0
    %2989 = vmatprep.subr.mxu0 0.0
    %2990 = vmatpush1.msra.mxu0 0.0
    %2991 = vmatprep.subr.mxu0 0.0
    %2992 = vmatpush1.msra.mxu0 0.0
    %2993 = vmatprep.subr.mxu0 0.0
    %2994 = vmatpush1.msra.mxu0 0.0
    %2995 = vmatprep.subr.mxu0 0.0
    %2996 = vmatpush1.msra.mxu0 0.0
    %2997 = vmatprep.subr.mxu0 0.0
    %2998 = vmatpush1.msra.mxu0 0.0
    %2999 = vmatprep.subr.mxu0 0.0
    %3000 = vmatpush1.msra.mxu0 0.0
    %3001 = vmatprep.subr.mxu0 0.0
    %3002 = vmatpush1.msra.mxu0 0.0
    %3003 = vmatprep.subr.mxu0 0.0
    %3004 = vmatpush1.msra.mxu0 0.0
    %3005 = vmatprep.subr.mxu0 0.0
    %3006 = vmatpush1.msra.mxu0 0.0
    %3007 = vmatprep.subr.mxu0 0.0
    %v3008 = vand.u32 %v1148, 4294901760
    %3009 = vmatpush1.msra.mxu0 %v3008
    %3010 = vmatprep.subr.mxu0 0.0
    %v3011 = vand.u32 %v1142, 4294901760
    %3012 = vmatpush1.msra.mxu0 %v3011
    %3013 = vmatprep.subr.mxu0 0.0
    %3014 = vmatpush2.msra.mxu0 0.0
    %3015 = vmatprep.subr.mxu0 0.0
    %3016 = vmatpush2.msra.mxu0 0.0
    %3017 = vmatprep.subr.mxu0 0.0
    %3018 = vmatpush2.msra.mxu0 0.0
    %3019 = vmatprep.subr.mxu0 0.0
    %3020 = vmatpush2.msra.mxu0 0.0
    %3021 = vmatprep.subr.mxu0 0.0
    %3022 = vmatpush2.msra.mxu0 0.0
    %3023 = vmatprep.subr.mxu0 0.0
    %3024 = vmatpush2.msra.mxu0 0.0
    %3025 = vmatprep.subr.mxu0 0.0
    %3026 = vmatpush2.msra.mxu0 0.0
    %3027 = vmatprep.subr.mxu0 0.0
    %3028 = vmatpush2.msra.mxu0 0.0
    %3029 = vmatprep.subr.mxu0 0.0
    %3030 = vmatpush2.msra.mxu0 0.0
    %3031 = vmatprep.subr.mxu0 0.0
    %3032 = vmatpush2.msra.mxu0 0.0
    %3033 = vmatprep.subr.mxu0 0.0
    %3034 = vmatpush2.msra.mxu0 0.0
    %3035 = vmatprep.subr.mxu0 0.0
    %3036 = vmatpush2.msra.mxu0 0.0
    %3037 = vmatprep.subr.mxu0 0.0
    %3038 = vmatpush2.msra.mxu0 0.0
    %3039 = vmatprep.subr.mxu0 0.0
    %3040 = vmatpush2.msra.mxu0 0.0
    %3041 = vmatprep.subr.mxu0 0.0
    %3042 = vmatpush2.msra.mxu0 0.0
    %3043 = vmatprep.subr.mxu0 0.0
    %3044 = vmatpush2.msra.mxu0 0.0
    %3045 = vmatprep.mubr.f32.mxu0 0.0
    %v3046 = vand.u32 %v1204, 4294901760
    %v3047 = vsub.f32 %v1204, %v3046
    %v3048 = vand.u32 %v3047, 4294901760
    %v3049 = vsub.f32 %v3047, %v3048
    %v3050 = vand.u32 %v3049, 4294901760
    %3051 = vmatmul.mubr.f32.gmra.mxu0 %v3050
    %v3052 = vpop.f32.mrf.mxu0
    %v3053 = vadd.f32 0.0, %v3052
    %v3054 = vpop.f32.mrf.mxu0
    %3055 = vmatprep.mubr.f32.mxu0 0.0
    %v3056 = vand.u32 %v1207, 4294901760
    %v3057 = vsub.f32 %v1207, %v3056
    %v3058 = vand.u32 %v3057, 4294901760
    %v3059 = vsub.f32 %v3057, %v3058
    %v3060 = vand.u32 %v3059, 4294901760
    %3061 = vmatmul.mubr.f32.gmra.mxu0 %v3060
    %v3062 = vpop.f32.mrf.mxu0
    %v3063 = vadd.f32 0.0, %v3062
    %v3064 = vpop.f32.mrf.mxu0
    %3065 = vmatprep.mubr.f32.mxu0 0.0
    %v3066 = vand.u32 %v1210, 4294901760
    %v3067 = vsub.f32 %v1210, %v3066
    %v3068 = vand.u32 %v3067, 4294901760
    %v3069 = vsub.f32 %v3067, %v3068
    %v3070 = vand.u32 %v3069, 4294901760
    %3071 = vmatmul.mubr.f32.gmra.mxu0 %v3070
    %v3072 = vpop.f32.mrf.mxu0
    %v3073 = vadd.f32 0.0, %v3072
    %v3074 = vpop.f32.mrf.mxu0
    %3075 = vmatprep.mubr.f32.mxu0 0.0
    %v3076 = vand.u32 %v1213, 4294901760
    %v3077 = vsub.f32 %v1213, %v3076
    %v3078 = vand.u32 %v3077, 4294901760
    %v3079 = vsub.f32 %v3077, %v3078
    %v3080 = vand.u32 %v3079, 4294901760
    %3081 = vmatmul.mubr.f32.gmra.mxu0 %v3080
    %v3082 = vpop.f32.mrf.mxu0
    %v3083 = vadd.f32 0.0, %v3082
    %v3084 = vpop.f32.mrf.mxu0
    %3085 = vdwg.mxu0
    %3086 = vmatprep.subr.mxu0 0.0
    %3087 = vmatpush1.msra.mxu0 0.0
    %3088 = vmatprep.subr.mxu0 0.0
    %3089 = vmatpush1.msra.mxu0 0.0
    %3090 = vmatprep.subr.mxu0 0.0
    %3091 = vmatpush1.msra.mxu0 0.0
    %3092 = vmatprep.subr.mxu0 0.0
    %3093 = vmatpush1.msra.mxu0 0.0
    %3094 = vmatprep.subr.mxu0 0.0
    %3095 = vmatpush1.msra.mxu0 0.0
    %3096 = vmatprep.subr.mxu0 0.0
    %3097 = vmatpush1.msra.mxu0 0.0
    %3098 = vmatprep.subr.mxu0 0.0
    %3099 = vmatpush1.msra.mxu0 0.0
    %3100 = vmatprep.subr.mxu0 0.0
    %3101 = vmatpush1.msra.mxu0 0.0
    %3102 = vmatprep.subr.mxu0 0.0
    %3103 = vmatpush1.msra.mxu0 0.0
    %3104 = vmatprep.subr.mxu0 0.0
    %3105 = vmatpush1.msra.mxu0 0.0
    %3106 = vmatprep.subr.mxu0 0.0
    %3107 = vmatpush1.msra.mxu0 0.0
    %3108 = vmatprep.subr.mxu0 0.0
    %3109 = vmatpush1.msra.mxu0 0.0
    %3110 = vmatprep.subr.mxu0 0.0
    %3111 = vmatpush1.msra.mxu0 0.0
    %3112 = vmatprep.subr.mxu0 0.0
    %3113 = vmatpush1.msra.mxu0 0.0
    %3114 = vmatprep.subr.mxu0 0.0
    %v3115 = vand.u32 %v1148, 4294901760
    %v3116 = vsub.f32 %v1148, %v3115
    %v3117 = vand.u32 %v3116, 4294901760
    %v3118 = vsub.f32 %v3116, %v3117
    %v3119 = vand.u32 %v3118, 4294901760
    %3120 = vmatpush1.msra.mxu0 %v3119
    %3121 = vmatprep.subr.mxu0 0.0
    %v3122 = vand.u32 %v1142, 4294901760
    %v3123 = vsub.f32 %v1142, %v3122
    %v3124 = vand.u32 %v3123, 4294901760
    %v3125 = vsub.f32 %v3123, %v3124
    %v3126 = vand.u32 %v3125, 4294901760
    %3127 = vmatpush1.msra.mxu0 %v3126
    %3128 = vmatprep.subr.mxu0 0.0
    %3129 = vmatpush2.msra.mxu0 0.0
    %3130 = vmatprep.subr.mxu0 0.0
    %3131 = vmatpush2.msra.mxu0 0.0
    %3132 = vmatprep.subr.mxu0 0.0
    %3133 = vmatpush2.msra.mxu0 0.0
    %3134 = vmatprep.subr.mxu0 0.0
    %3135 = vmatpush2.msra.mxu0 0.0
    %3136 = vmatprep.subr.mxu0 0.0
    %3137 = vmatpush2.msra.mxu0 0.0
    %3138 = vmatprep.subr.mxu0 0.0
    %3139 = vmatpush2.msra.mxu0 0.0
    %3140 = vmatprep.subr.mxu0 0.0
    %3141 = vmatpush2.msra.mxu0 0.0
    %3142 = vmatprep.subr.mxu0 0.0
    %3143 = vmatpush2.msra.mxu0 0.0
    %3144 = vmatprep.subr.mxu0 0.0
    %3145 = vmatpush2.msra.mxu0 0.0
    %3146 = vmatprep.subr.mxu0 0.0
    %3147 = vmatpush2.msra.mxu0 0.0
    %3148 = vmatprep.subr.mxu0 0.0
    %3149 = vmatpush2.msra.mxu0 0.0
    %3150 = vmatprep.subr.mxu0 0.0
    %3151 = vmatpush2.msra.mxu0 0.0
    %3152 = vmatprep.subr.mxu0 0.0
    %3153 = vmatpush2.msra.mxu0 0.0
    %3154 = vmatprep.subr.mxu0 0.0
    %3155 = vmatpush2.msra.mxu0 0.0
    %3156 = vmatprep.subr.mxu0 0.0
    %3157 = vmatpush2.msra.mxu0 0.0
    %3158 = vmatprep.subr.mxu0 0.0
    %3159 = vmatpush2.msra.mxu0 0.0
    %3160 = vmatprep.mubr.f32.mxu0 0.0
    %v3161 = vand.u32 %v1204, 4294901760
    %3162 = vmatmul.mubr.f32.gmra.mxu0 %v3161
    %v3163 = vpop.f32.mrf.mxu0
    %v3164 = vadd.f32 %v3053, %v3163
    %v3165 = vpop.f32.mrf.mxu0
    %3166 = vmatprep.mubr.f32.mxu0 0.0
    %v3167 = vand.u32 %v1207, 4294901760
    %3168 = vmatmul.mubr.f32.gmra.mxu0 %v3167
    %v3169 = vpop.f32.mrf.mxu0
    %v3170 = vadd.f32 %v3063, %v3169
    %v3171 = vpop.f32.mrf.mxu0
    %3172 = vmatprep.mubr.f32.mxu0 0.0
    %v3173 = vand.u32 %v1210, 4294901760
    %3174 = vmatmul.mubr.f32.gmra.mxu0 %v3173
    %v3175 = vpop.f32.mrf.mxu0
    %v3176 = vadd.f32 %v3073, %v3175
    %v3177 = vpop.f32.mrf.mxu0
    %3178 = vmatprep.mubr.f32.mxu0 0.0
    %v3179 = vand.u32 %v1213, 4294901760
    %3180 = vmatmul.mubr.f32.gmra.mxu0 %v3179
    %v3181 = vpop.f32.mrf.mxu0
    %v3182 = vadd.f32 %v3083, %v3181
    %v3183 = vpop.f32.mrf.mxu0
    %3184 = vdwg.mxu0
    %3185 = vmatprep.subr.mxu0 0.0
    %3186 = vmatpush1.msra.mxu0 0.0
    %3187 = vmatprep.subr.mxu0 0.0
    %3188 = vmatpush1.msra.mxu0 0.0
    %3189 = vmatprep.subr.mxu0 0.0
    %3190 = vmatpush1.msra.mxu0 0.0
    %3191 = vmatprep.subr.mxu0 0.0
    %3192 = vmatpush1.msra.mxu0 0.0
    %3193 = vmatprep.subr.mxu0 0.0
    %3194 = vmatpush1.msra.mxu0 0.0
    %3195 = vmatprep.subr.mxu0 0.0
    %3196 = vmatpush1.msra.mxu0 0.0
    %3197 = vmatprep.subr.mxu0 0.0
    %3198 = vmatpush1.msra.mxu0 0.0
    %3199 = vmatprep.subr.mxu0 0.0
    %3200 = vmatpush1.msra.mxu0 0.0
    %3201 = vmatprep.subr.mxu0 0.0
    %3202 = vmatpush1.msra.mxu0 0.0
    %3203 = vmatprep.subr.mxu0 0.0
    %3204 = vmatpush1.msra.mxu0 0.0
    %3205 = vmatprep.subr.mxu0 0.0
    %3206 = vmatpush1.msra.mxu0 0.0
    %3207 = vmatprep.subr.mxu0 0.0
    %3208 = vmatpush1.msra.mxu0 0.0
    %3209 = vmatprep.subr.mxu0 0.0
    %3210 = vmatpush1.msra.mxu0 0.0
    %3211 = vmatprep.subr.mxu0 0.0
    %3212 = vmatpush1.msra.mxu0 0.0
    %3213 = vmatprep.subr.mxu0 0.0
    %v3214 = vand.u32 %v1148, 4294901760
    %v3215 = vsub.f32 %v1148, %v3214
    %3216 = vmatpush1.msra.mxu0 %v3215
    %3217 = vmatprep.subr.mxu0 0.0
    %v3218 = vand.u32 %v1142, 4294901760
    %v3219 = vsub.f32 %v1142, %v3218
    %3220 = vmatpush1.msra.mxu0 %v3219
    %3221 = vmatprep.subr.mxu0 0.0
    %3222 = vmatpush2.msra.mxu0 0.0
    %3223 = vmatprep.subr.mxu0 0.0
    %3224 = vmatpush2.msra.mxu0 0.0
    %3225 = vmatprep.subr.mxu0 0.0
    %3226 = vmatpush2.msra.mxu0 0.0
    %3227 = vmatprep.subr.mxu0 0.0
    %3228 = vmatpush2.msra.mxu0 0.0
    %3229 = vmatprep.subr.mxu0 0.0
    %3230 = vmatpush2.msra.mxu0 0.0
    %3231 = vmatprep.subr.mxu0 0.0
    %3232 = vmatpush2.msra.mxu0 0.0
    %3233 = vmatprep.subr.mxu0 0.0
    %3234 = vmatpush2.msra.mxu0 0.0
    %3235 = vmatprep.subr.mxu0 0.0
    %3236 = vmatpush2.msra.mxu0 0.0
    %3237 = vmatprep.subr.mxu0 0.0
    %3238 = vmatpush2.msra.mxu0 0.0
    %3239 = vmatprep.subr.mxu0 0.0
    %3240 = vmatpush2.msra.mxu0 0.0
    %3241 = vmatprep.subr.mxu0 0.0
    %3242 = vmatpush2.msra.mxu0 0.0
    %3243 = vmatprep.subr.mxu0 0.0
    %3244 = vmatpush2.msra.mxu0 0.0
    %3245 = vmatprep.subr.mxu0 0.0
    %3246 = vmatpush2.msra.mxu0 0.0
    %3247 = vmatprep.subr.mxu0 0.0
    %3248 = vmatpush2.msra.mxu0 0.0
    %3249 = vmatprep.subr.mxu0 0.0
    %3250 = vmatpush2.msra.mxu0 0.0
    %3251 = vmatprep.subr.mxu0 0.0
    %3252 = vmatpush2.msra.mxu0 0.0
    %3253 = vmatprep.mubr.f32.mxu0 0.0
    %v3254 = vand.u32 %v1204, 4294901760
    %v3255 = vsub.f32 %v1204, %v3254
    %3256 = vmatmul.mubr.f32.gmra.mxu0 %v3255
    %v3257 = vpop.f32.mrf.mxu0
    %v3258 = vadd.f32 %v3164, %v3257
    %v3259 = vpop.f32.mrf.mxu0
    %3260 = vmatprep.mubr.f32.mxu0 0.0
    %v3261 = vand.u32 %v1207, 4294901760
    %v3262 = vsub.f32 %v1207, %v3261
    %3263 = vmatmul.mubr.f32.gmra.mxu0 %v3262
    %v3264 = vpop.f32.mrf.mxu0
    %v3265 = vadd.f32 %v3170, %v3264
    %v3266 = vpop.f32.mrf.mxu0
    %3267 = vmatprep.mubr.f32.mxu0 0.0
    %v3268 = vand.u32 %v1210, 4294901760
    %v3269 = vsub.f32 %v1210, %v3268
    %3270 = vmatmul.mubr.f32.gmra.mxu0 %v3269
    %v3271 = vpop.f32.mrf.mxu0
    %v3272 = vadd.f32 %v3176, %v3271
    %v3273 = vpop.f32.mrf.mxu0
    %3274 = vmatprep.mubr.f32.mxu0 0.0
    %v3275 = vand.u32 %v1213, 4294901760
    %v3276 = vsub.f32 %v1213, %v3275
    %3277 = vmatmul.mubr.f32.gmra.mxu0 %v3276
    %v3278 = vpop.f32.mrf.mxu0
    %v3279 = vadd.f32 %v3182, %v3278
    %v3280 = vpop.f32.mrf.mxu0
    %3281 = vdwg.mxu0
    %3282 = vmatprep.subr.mxu0 0.0
    %3283 = vmatpush1.msra.mxu0 0.0
    %3284 = vmatprep.subr.mxu0 0.0
    %3285 = vmatpush1.msra.mxu0 0.0
    %3286 = vmatprep.subr.mxu0 0.0
    %3287 = vmatpush1.msra.mxu0 0.0
    %3288 = vmatprep.subr.mxu0 0.0
    %3289 = vmatpush1.msra.mxu0 0.0
    %3290 = vmatprep.subr.mxu0 0.0
    %3291 = vmatpush1.msra.mxu0 0.0
    %3292 = vmatprep.subr.mxu0 0.0
    %3293 = vmatpush1.msra.mxu0 0.0
    %3294 = vmatprep.subr.mxu0 0.0
    %3295 = vmatpush1.msra.mxu0 0.0
    %3296 = vmatprep.subr.mxu0 0.0
    %3297 = vmatpush1.msra.mxu0 0.0
    %3298 = vmatprep.subr.mxu0 0.0
    %3299 = vmatpush1.msra.mxu0 0.0
    %3300 = vmatprep.subr.mxu0 0.0
    %3301 = vmatpush1.msra.mxu0 0.0
    %3302 = vmatprep.subr.mxu0 0.0
    %3303 = vmatpush1.msra.mxu0 0.0
    %3304 = vmatprep.subr.mxu0 0.0
    %3305 = vmatpush1.msra.mxu0 0.0
    %3306 = vmatprep.subr.mxu0 0.0
    %3307 = vmatpush1.msra.mxu0 0.0
    %3308 = vmatprep.subr.mxu0 0.0
    %3309 = vmatpush1.msra.mxu0 0.0
    %3310 = vmatprep.subr.mxu0 0.0
    %v3311 = vand.u32 %v1148, 4294901760
    %3312 = vmatpush1.msra.mxu0 %v3311
    %3313 = vmatprep.subr.mxu0 0.0
    %v3314 = vand.u32 %v1142, 4294901760
    %3315 = vmatpush1.msra.mxu0 %v3314
    %3316 = vmatprep.subr.mxu0 0.0
    %3317 = vmatpush2.msra.mxu0 0.0
    %3318 = vmatprep.subr.mxu0 0.0
    %3319 = vmatpush2.msra.mxu0 0.0
    %3320 = vmatprep.subr.mxu0 0.0
    %3321 = vmatpush2.msra.mxu0 0.0
    %3322 = vmatprep.subr.mxu0 0.0
    %3323 = vmatpush2.msra.mxu0 0.0
    %3324 = vmatprep.subr.mxu0 0.0
    %3325 = vmatpush2.msra.mxu0 0.0
    %3326 = vmatprep.subr.mxu0 0.0
    %3327 = vmatpush2.msra.mxu0 0.0
    %3328 = vmatprep.subr.mxu0 0.0
    %3329 = vmatpush2.msra.mxu0 0.0
    %3330 = vmatprep.subr.mxu0 0.0
    %3331 = vmatpush2.msra.mxu0 0.0
    %3332 = vmatprep.subr.mxu0 0.0
    %3333 = vmatpush2.msra.mxu0 0.0
    %3334 = vmatprep.subr.mxu0 0.0
    %3335 = vmatpush2.msra.mxu0 0.0
    %3336 = vmatprep.subr.mxu0 0.0
    %3337 = vmatpush2.msra.mxu0 0.0
    %3338 = vmatprep.subr.mxu0 0.0
    %3339 = vmatpush2.msra.mxu0 0.0
    %3340 = vmatprep.subr.mxu0 0.0
    %3341 = vmatpush2.msra.mxu0 0.0
    %3342 = vmatprep.subr.mxu0 0.0
    %3343 = vmatpush2.msra.mxu0 0.0
    %3344 = vmatprep.subr.mxu0 0.0
    %3345 = vmatpush2.msra.mxu0 0.0
    %3346 = vmatprep.subr.mxu0 0.0
    %3347 = vmatpush2.msra.mxu0 0.0
    %3348 = vmatprep.mubr.f32.mxu0 0.0
    %v3349 = vand.u32 %v1204, 4294901760
    %v3350 = vsub.f32 %v1204, %v3349
    %v3351 = vand.u32 %v3350, 4294901760
    %3352 = vmatmul.mubr.f32.gmra.mxu0 %v3351
    %v3353 = vpop.f32.mrf.mxu0
    %v3354 = vadd.f32 %v3258, %v3353
    %v3355 = vpop.f32.mrf.mxu0
    %3356 = vmatprep.mubr.f32.mxu0 0.0
    %v3357 = vand.u32 %v1207, 4294901760
    %v3358 = vsub.f32 %v1207, %v3357
    %v3359 = vand.u32 %v3358, 4294901760
    %3360 = vmatmul.mubr.f32.gmra.mxu0 %v3359
    %v3361 = vpop.f32.mrf.mxu0
    %v3362 = vadd.f32 %v3265, %v3361
    %v3363 = vpop.f32.mrf.mxu0
    %3364 = vmatprep.mubr.f32.mxu0 0.0
    %v3365 = vand.u32 %v1210, 4294901760
    %v3366 = vsub.f32 %v1210, %v3365
    %v3367 = vand.u32 %v3366, 4294901760
    %3368 = vmatmul.mubr.f32.gmra.mxu0 %v3367
    %v3369 = vpop.f32.mrf.mxu0
    %v3370 = vadd.f32 %v3272, %v3369
    %v3371 = vpop.f32.mrf.mxu0
    %3372 = vmatprep.mubr.f32.mxu0 0.0
    %v3373 = vand.u32 %v1213, 4294901760
    %v3374 = vsub.f32 %v1213, %v3373
    %v3375 = vand.u32 %v3374, 4294901760
    %3376 = vmatmul.mubr.f32.gmra.mxu0 %v3375
    %v3377 = vpop.f32.mrf.mxu0
    %v3378 = vadd.f32 %v3279, %v3377
    %v3379 = vpop.f32.mrf.mxu0
    %3380 = vdwg.mxu0
    %3381 = vmatprep.subr.mxu0 0.0
    %3382 = vmatpush1.msra.mxu0 0.0
    %3383 = vmatprep.subr.mxu0 0.0
    %3384 = vmatpush1.msra.mxu0 0.0
    %3385 = vmatprep.subr.mxu0 0.0
    %3386 = vmatpush1.msra.mxu0 0.0
    %3387 = vmatprep.subr.mxu0 0.0
    %3388 = vmatpush1.msra.mxu0 0.0
    %3389 = vmatprep.subr.mxu0 0.0
    %3390 = vmatpush1.msra.mxu0 0.0
    %3391 = vmatprep.subr.mxu0 0.0
    %3392 = vmatpush1.msra.mxu0 0.0
    %3393 = vmatprep.subr.mxu0 0.0
    %3394 = vmatpush1.msra.mxu0 0.0
    %3395 = vmatprep.subr.mxu0 0.0
    %3396 = vmatpush1.msra.mxu0 0.0
    %3397 = vmatprep.subr.mxu0 0.0
    %3398 = vmatpush1.msra.mxu0 0.0
    %3399 = vmatprep.subr.mxu0 0.0
    %3400 = vmatpush1.msra.mxu0 0.0
    %3401 = vmatprep.subr.mxu0 0.0
    %3402 = vmatpush1.msra.mxu0 0.0
    %3403 = vmatprep.subr.mxu0 0.0
    %3404 = vmatpush1.msra.mxu0 0.0
    %3405 = vmatprep.subr.mxu0 0.0
    %3406 = vmatpush1.msra.mxu0 0.0
    %3407 = vmatprep.subr.mxu0 0.0
    %3408 = vmatpush1.msra.mxu0 0.0
    %3409 = vmatprep.subr.mxu0 0.0
    %v3410 = vand.u32 %v1148, 4294901760
    %v3411 = vsub.f32 %v1148, %v3410
    %v3412 = vand.u32 %v3411, 4294901760
    %3413 = vmatpush1.msra.mxu0 %v3412
    %3414 = vmatprep.subr.mxu0 0.0
    %v3415 = vand.u32 %v1142, 4294901760
    %v3416 = vsub.f32 %v1142, %v3415
    %v3417 = vand.u32 %v3416, 4294901760
    %3418 = vmatpush1.msra.mxu0 %v3417
    %3419 = vmatprep.subr.mxu0 0.0
    %3420 = vmatpush2.msra.mxu0 0.0
    %3421 = vmatprep.subr.mxu0 0.0
    %3422 = vmatpush2.msra.mxu0 0.0
    %3423 = vmatprep.subr.mxu0 0.0
    %3424 = vmatpush2.msra.mxu0 0.0
    %3425 = vmatprep.subr.mxu0 0.0
    %3426 = vmatpush2.msra.mxu0 0.0
    %3427 = vmatprep.subr.mxu0 0.0
    %3428 = vmatpush2.msra.mxu0 0.0
    %3429 = vmatprep.subr.mxu0 0.0
    %3430 = vmatpush2.msra.mxu0 0.0
    %3431 = vmatprep.subr.mxu0 0.0
    %3432 = vmatpush2.msra.mxu0 0.0
    %3433 = vmatprep.subr.mxu0 0.0
    %3434 = vmatpush2.msra.mxu0 0.0
    %3435 = vmatprep.subr.mxu0 0.0
    %3436 = vmatpush2.msra.mxu0 0.0
    %3437 = vmatprep.subr.mxu0 0.0
    %3438 = vmatpush2.msra.mxu0 0.0
    %3439 = vmatprep.subr.mxu0 0.0
    %3440 = vmatpush2.msra.mxu0 0.0
    %3441 = vmatprep.subr.mxu0 0.0
    %3442 = vmatpush2.msra.mxu0 0.0
    %3443 = vmatprep.subr.mxu0 0.0
    %3444 = vmatpush2.msra.mxu0 0.0
    %3445 = vmatprep.subr.mxu0 0.0
    %3446 = vmatpush2.msra.mxu0 0.0
    %3447 = vmatprep.subr.mxu0 0.0
    %3448 = vmatpush2.msra.mxu0 0.0
    %3449 = vmatprep.subr.mxu0 0.0
    %3450 = vmatpush2.msra.mxu0 0.0
    %3451 = vmatprep.mubr.f32.mxu0 0.0
    %v3452 = vand.u32 %v1204, 4294901760
    %3453 = vmatmul.mubr.f32.gmra.mxu0 %v3452
    %v3454 = vpop.f32.mrf.mxu0
    %v3455 = vadd.f32 %v3354, %v3454
    %v3456 = vpop.f32.mrf.mxu0
    %3457 = vmatprep.mubr.f32.mxu0 0.0
    %v3458 = vand.u32 %v1207, 4294901760
    %3459 = vmatmul.mubr.f32.gmra.mxu0 %v3458
    %v3460 = vpop.f32.mrf.mxu0
    %v3461 = vadd.f32 %v3362, %v3460
    %v3462 = vpop.f32.mrf.mxu0
    %3463 = vmatprep.mubr.f32.mxu0 0.0
    %v3464 = vand.u32 %v1210, 4294901760
    %3465 = vmatmul.mubr.f32.gmra.mxu0 %v3464
    %v3466 = vpop.f32.mrf.mxu0
    %v3467 = vadd.f32 %v3370, %v3466
    %v3468 = vpop.f32.mrf.mxu0
    %3469 = vmatprep.mubr.f32.mxu0 0.0
    %v3470 = vand.u32 %v1213, 4294901760
    %3471 = vmatmul.mubr.f32.gmra.mxu0 %v3470
    %v3472 = vpop.f32.mrf.mxu0
    %v3473 = vadd.f32 %v3378, %v3472
    %v3474 = vpop.f32.mrf.mxu0
    %3475 = vdwg.mxu0
    %3476 = vmatprep.subr.mxu0 0.0
    %3477 = vmatpush1.msra.mxu0 0.0
    %3478 = vmatprep.subr.mxu0 0.0
    %3479 = vmatpush1.msra.mxu0 0.0
    %3480 = vmatprep.subr.mxu0 0.0
    %3481 = vmatpush1.msra.mxu0 0.0
    %3482 = vmatprep.subr.mxu0 0.0
    %3483 = vmatpush1.msra.mxu0 0.0
    %3484 = vmatprep.subr.mxu0 0.0
    %3485 = vmatpush1.msra.mxu0 0.0
    %3486 = vmatprep.subr.mxu0 0.0
    %3487 = vmatpush1.msra.mxu0 0.0
    %3488 = vmatprep.subr.mxu0 0.0
    %3489 = vmatpush1.msra.mxu0 0.0
    %3490 = vmatprep.subr.mxu0 0.0
    %3491 = vmatpush1.msra.mxu0 0.0
    %3492 = vmatprep.subr.mxu0 0.0
    %3493 = vmatpush1.msra.mxu0 0.0
    %3494 = vmatprep.subr.mxu0 0.0
    %3495 = vmatpush1.msra.mxu0 0.0
    %3496 = vmatprep.subr.mxu0 0.0
    %3497 = vmatpush1.msra.mxu0 0.0
    %3498 = vmatprep.subr.mxu0 0.0
    %3499 = vmatpush1.msra.mxu0 0.0
    %3500 = vmatprep.subr.mxu0 0.0
    %3501 = vmatpush1.msra.mxu0 0.0
    %3502 = vmatprep.subr.mxu0 0.0
    %3503 = vmatpush1.msra.mxu0 0.0
    %3504 = vmatprep.subr.mxu0 0.0
    %v3505 = vand.u32 %v1148, 4294901760
    %3506 = vmatpush1.msra.mxu0 %v3505
    %3507 = vmatprep.subr.mxu0 0.0
    %v3508 = vand.u32 %v1142, 4294901760
    %3509 = vmatpush1.msra.mxu0 %v3508
    %3510 = vmatprep.subr.mxu0 0.0
    %3511 = vmatpush2.msra.mxu0 0.0
    %3512 = vmatprep.subr.mxu0 0.0
    %3513 = vmatpush2.msra.mxu0 0.0
    %3514 = vmatprep.subr.mxu0 0.0
    %3515 = vmatpush2.msra.mxu0 0.0
    %3516 = vmatprep.subr.mxu0 0.0
    %3517 = vmatpush2.msra.mxu0 0.0
    %3518 = vmatprep.subr.mxu0 0.0
    %3519 = vmatpush2.msra.mxu0 0.0
    %3520 = vmatprep.subr.mxu0 0.0
    %3521 = vmatpush2.msra.mxu0 0.0
    %3522 = vmatprep.subr.mxu0 0.0
    %3523 = vmatpush2.msra.mxu0 0.0
    %3524 = vmatprep.subr.mxu0 0.0
    %3525 = vmatpush2.msra.mxu0 0.0
    %3526 = vmatprep.subr.mxu0 0.0
    %3527 = vmatpush2.msra.mxu0 0.0
    %3528 = vmatprep.subr.mxu0 0.0
    %3529 = vmatpush2.msra.mxu0 0.0
    %3530 = vmatprep.subr.mxu0 0.0
    %3531 = vmatpush2.msra.mxu0 0.0
    %3532 = vmatprep.subr.mxu0 0.0
    %3533 = vmatpush2.msra.mxu0 0.0
    %3534 = vmatprep.subr.mxu0 0.0
    %3535 = vmatpush2.msra.mxu0 0.0
    %3536 = vmatprep.subr.mxu0 0.0
    %3537 = vmatpush2.msra.mxu0 0.0
    %3538 = vmatprep.subr.mxu0 0.0
    %3539 = vmatpush2.msra.mxu0 0.0
    %3540 = vmatprep.subr.mxu0 0.0
    %3541 = vmatpush2.msra.mxu0 0.0
    %3542 = vmatprep.mubr.f32.mxu0 0.0
    %v3543 = vand.u32 %v1204, 4294901760
    %3544 = vmatmul.mubr.f32.gmra.mxu0 %v3543
    %v3545 = vpop.f32.mrf.mxu0
    %v3546 = vadd.f32 %v3455, %v3545
    %v3547 = vpop.f32.mrf.mxu0
    %3548 = vmatprep.mubr.f32.mxu0 0.0
    %v3549 = vand.u32 %v1207, 4294901760
    %3550 = vmatmul.mubr.f32.gmra.mxu0 %v3549
    %v3551 = vpop.f32.mrf.mxu0
    %v3552 = vadd.f32 %v3461, %v3551
    %v3553 = vpop.f32.mrf.mxu0
    %3554 = vmatprep.mubr.f32.mxu0 0.0
    %v3555 = vand.u32 %v1210, 4294901760
    %3556 = vmatmul.mubr.f32.gmra.mxu0 %v3555
    %v3557 = vpop.f32.mrf.mxu0
    %v3558 = vadd.f32 %v3467, %v3557
    %v3559 = vpop.f32.mrf.mxu0
    %3560 = vmatprep.mubr.f32.mxu0 0.0
    %v3561 = vand.u32 %v1213, 4294901760
    %3562 = vmatmul.mubr.f32.gmra.mxu0 %v3561
    %v3563 = vpop.f32.mrf.mxu0
    %v3564 = vadd.f32 %v3473, %v3563
    %v3565 = vpop.f32.mrf.mxu0
    %3566 = vdwg.mxu0
    %3567 = vmatprep.subr.mxu0 0.0
    %3568 = vmatpush1.msra.mxu0 0.0
    %3569 = vmatprep.subr.mxu0 0.0
    %3570 = vmatpush1.msra.mxu0 0.0
    %3571 = vmatprep.subr.mxu0 0.0
    %3572 = vmatpush1.msra.mxu0 0.0
    %3573 = vmatprep.subr.mxu0 0.0
    %3574 = vmatpush1.msra.mxu0 0.0
    %3575 = vmatprep.subr.mxu0 0.0
    %3576 = vmatpush1.msra.mxu0 0.0
    %3577 = vmatprep.subr.mxu0 0.0
    %3578 = vmatpush1.msra.mxu0 0.0
    %3579 = vmatprep.subr.mxu0 0.0
    %3580 = vmatpush1.msra.mxu0 0.0
    %3581 = vmatprep.subr.mxu0 0.0
    %3582 = vmatpush1.msra.mxu0 0.0
    %3583 = vmatprep.subr.mxu0 0.0
    %3584 = vmatpush1.msra.mxu0 0.0
    %3585 = vmatprep.subr.mxu0 0.0
    %3586 = vmatpush1.msra.mxu0 0.0
    %3587 = vmatprep.subr.mxu0 0.0
    %3588 = vmatpush1.msra.mxu0 0.0
    %3589 = vmatprep.subr.mxu0 0.0
    %3590 = vmatpush1.msra.mxu0 0.0
    %3591 = vmatprep.subr.mxu0 0.0
    %3592 = vmatpush1.msra.mxu0 0.0
    %3593 = vmatprep.subr.mxu0 0.0
    %3594 = vmatpush1.msra.mxu0 0.0
    %3595 = vmatprep.subr.mxu0 0.0
    %v3596 = vand.u32 %v1160, 4294901760
    %3597 = vmatpush1.msra.mxu0 %v3596
    %3598 = vmatprep.subr.mxu0 0.0
    %v3599 = vand.u32 %v1154, 4294901760
    %3600 = vmatpush1.msra.mxu0 %v3599
    %3601 = vmatprep.subr.mxu0 0.0
    %3602 = vmatpush2.msra.mxu0 0.0
    %3603 = vmatprep.subr.mxu0 0.0
    %3604 = vmatpush2.msra.mxu0 0.0
    %3605 = vmatprep.subr.mxu0 0.0
    %3606 = vmatpush2.msra.mxu0 0.0
    %3607 = vmatprep.subr.mxu0 0.0
    %3608 = vmatpush2.msra.mxu0 0.0
    %3609 = vmatprep.subr.mxu0 0.0
    %3610 = vmatpush2.msra.mxu0 0.0
    %3611 = vmatprep.subr.mxu0 0.0
    %3612 = vmatpush2.msra.mxu0 0.0
    %3613 = vmatprep.subr.mxu0 0.0
    %3614 = vmatpush2.msra.mxu0 0.0
    %3615 = vmatprep.subr.mxu0 0.0
    %3616 = vmatpush2.msra.mxu0 0.0
    %3617 = vmatprep.subr.mxu0 0.0
    %3618 = vmatpush2.msra.mxu0 0.0
    %3619 = vmatprep.subr.mxu0 0.0
    %3620 = vmatpush2.msra.mxu0 0.0
    %3621 = vmatprep.subr.mxu0 0.0
    %3622 = vmatpush2.msra.mxu0 0.0
    %3623 = vmatprep.subr.mxu0 0.0
    %3624 = vmatpush2.msra.mxu0 0.0
    %3625 = vmatprep.subr.mxu0 0.0
    %3626 = vmatpush2.msra.mxu0 0.0
    %3627 = vmatprep.subr.mxu0 0.0
    %3628 = vmatpush2.msra.mxu0 0.0
    %3629 = vmatprep.subr.mxu0 0.0
    %3630 = vmatpush2.msra.mxu0 0.0
    %3631 = vmatprep.subr.mxu0 0.0
    %3632 = vmatpush2.msra.mxu0 0.0
    %3633 = vmatprep.mubr.f32.mxu0 0.0
    %v3634 = vand.u32 %v1204, 4294901760
    %v3635 = vsub.f32 %v1204, %v3634
    %v3636 = vand.u32 %v3635, 4294901760
    %v3637 = vsub.f32 %v3635, %v3636
    %v3638 = vand.u32 %v3637, 4294901760
    %3639 = vmatmul.mubr.f32.gmra.mxu0 %v3638
    %v3640 = vpop.f32.mrf.mxu0
    %v3641 = vadd.f32 0.0, %v3640
    %v3642 = vpop.f32.mrf.mxu0
    %3643 = vmatprep.mubr.f32.mxu0 0.0
    %v3644 = vand.u32 %v1207, 4294901760
    %v3645 = vsub.f32 %v1207, %v3644
    %v3646 = vand.u32 %v3645, 4294901760
    %v3647 = vsub.f32 %v3645, %v3646
    %v3648 = vand.u32 %v3647, 4294901760
    %3649 = vmatmul.mubr.f32.gmra.mxu0 %v3648
    %v3650 = vpop.f32.mrf.mxu0
    %v3651 = vadd.f32 0.0, %v3650
    %v3652 = vpop.f32.mrf.mxu0
    %3653 = vmatprep.mubr.f32.mxu0 0.0
    %v3654 = vand.u32 %v1210, 4294901760
    %v3655 = vsub.f32 %v1210, %v3654
    %v3656 = vand.u32 %v3655, 4294901760
    %v3657 = vsub.f32 %v3655, %v3656
    %v3658 = vand.u32 %v3657, 4294901760
    %3659 = vmatmul.mubr.f32.gmra.mxu0 %v3658
    %v3660 = vpop.f32.mrf.mxu0
    %v3661 = vadd.f32 0.0, %v3660
    %v3662 = vpop.f32.mrf.mxu0
    %3663 = vmatprep.mubr.f32.mxu0 0.0
    %v3664 = vand.u32 %v1213, 4294901760
    %v3665 = vsub.f32 %v1213, %v3664
    %v3666 = vand.u32 %v3665, 4294901760
    %v3667 = vsub.f32 %v3665, %v3666
    %v3668 = vand.u32 %v3667, 4294901760
    %3669 = vmatmul.mubr.f32.gmra.mxu0 %v3668
    %v3670 = vpop.f32.mrf.mxu0
    %v3671 = vadd.f32 0.0, %v3670
    %v3672 = vpop.f32.mrf.mxu0
    %3673 = vdwg.mxu0
    %3674 = vmatprep.subr.mxu0 0.0
    %3675 = vmatpush1.msra.mxu0 0.0
    %3676 = vmatprep.subr.mxu0 0.0
    %3677 = vmatpush1.msra.mxu0 0.0
    %3678 = vmatprep.subr.mxu0 0.0
    %3679 = vmatpush1.msra.mxu0 0.0
    %3680 = vmatprep.subr.mxu0 0.0
    %3681 = vmatpush1.msra.mxu0 0.0
    %3682 = vmatprep.subr.mxu0 0.0
    %3683 = vmatpush1.msra.mxu0 0.0
    %3684 = vmatprep.subr.mxu0 0.0
    %3685 = vmatpush1.msra.mxu0 0.0
    %3686 = vmatprep.subr.mxu0 0.0
    %3687 = vmatpush1.msra.mxu0 0.0
    %3688 = vmatprep.subr.mxu0 0.0
    %3689 = vmatpush1.msra.mxu0 0.0
    %3690 = vmatprep.subr.mxu0 0.0
    %3691 = vmatpush1.msra.mxu0 0.0
    %3692 = vmatprep.subr.mxu0 0.0
    %3693 = vmatpush1.msra.mxu0 0.0
    %3694 = vmatprep.subr.mxu0 0.0
    %3695 = vmatpush1.msra.mxu0 0.0
    %3696 = vmatprep.subr.mxu0 0.0
    %3697 = vmatpush1.msra.mxu0 0.0
    %3698 = vmatprep.subr.mxu0 0.0
    %3699 = vmatpush1.msra.mxu0 0.0
    %3700 = vmatprep.subr.mxu0 0.0
    %3701 = vmatpush1.msra.mxu0 0.0
    %3702 = vmatprep.subr.mxu0 0.0
    %v3703 = vand.u32 %v1160, 4294901760
    %v3704 = vsub.f32 %v1160, %v3703
    %v3705 = vand.u32 %v3704, 4294901760
    %v3706 = vsub.f32 %v3704, %v3705
    %v3707 = vand.u32 %v3706, 4294901760
    %3708 = vmatpush1.msra.mxu0 %v3707
    %3709 = vmatprep.subr.mxu0 0.0
    %v3710 = vand.u32 %v1154, 4294901760
    %v3711 = vsub.f32 %v1154, %v3710
    %v3712 = vand.u32 %v3711, 4294901760
    %v3713 = vsub.f32 %v3711, %v3712
    %v3714 = vand.u32 %v3713, 4294901760
    %3715 = vmatpush1.msra.mxu0 %v3714
    %3716 = vmatprep.subr.mxu0 0.0
    %3717 = vmatpush2.msra.mxu0 0.0
    %3718 = vmatprep.subr.mxu0 0.0
    %3719 = vmatpush2.msra.mxu0 0.0
    %3720 = vmatprep.subr.mxu0 0.0
    %3721 = vmatpush2.msra.mxu0 0.0
    %3722 = vmatprep.subr.mxu0 0.0
    %3723 = vmatpush2.msra.mxu0 0.0
    %3724 = vmatprep.subr.mxu0 0.0
    %3725 = vmatpush2.msra.mxu0 0.0
    %3726 = vmatprep.subr.mxu0 0.0
    %3727 = vmatpush2.msra.mxu0 0.0
    %3728 = vmatprep.subr.mxu0 0.0
    %3729 = vmatpush2.msra.mxu0 0.0
    %3730 = vmatprep.subr.mxu0 0.0
    %3731 = vmatpush2.msra.mxu0 0.0
    %3732 = vmatprep.subr.mxu0 0.0
    %3733 = vmatpush2.msra.mxu0 0.0
    %3734 = vmatprep.subr.mxu0 0.0
    %3735 = vmatpush2.msra.mxu0 0.0
    %3736 = vmatprep.subr.mxu0 0.0
    %3737 = vmatpush2.msra.mxu0 0.0
    %3738 = vmatprep.subr.mxu0 0.0
    %3739 = vmatpush2.msra.mxu0 0.0
    %3740 = vmatprep.subr.mxu0 0.0
    %3741 = vmatpush2.msra.mxu0 0.0
    %3742 = vmatprep.subr.mxu0 0.0
    %3743 = vmatpush2.msra.mxu0 0.0
    %3744 = vmatprep.subr.mxu0 0.0
    %3745 = vmatpush2.msra.mxu0 0.0
    %3746 = vmatprep.subr.mxu0 0.0
    %3747 = vmatpush2.msra.mxu0 0.0
    %3748 = vmatprep.mubr.f32.mxu0 0.0
    %v3749 = vand.u32 %v1204, 4294901760
    %3750 = vmatmul.mubr.f32.gmra.mxu0 %v3749
    %v3751 = vpop.f32.mrf.mxu0
    %v3752 = vadd.f32 %v3641, %v3751
    %v3753 = vpop.f32.mrf.mxu0
    %3754 = vmatprep.mubr.f32.mxu0 0.0
    %v3755 = vand.u32 %v1207, 4294901760
    %3756 = vmatmul.mubr.f32.gmra.mxu0 %v3755
    %v3757 = vpop.f32.mrf.mxu0
    %v3758 = vadd.f32 %v3651, %v3757
    %v3759 = vpop.f32.mrf.mxu0
    %3760 = vmatprep.mubr.f32.mxu0 0.0
    %v3761 = vand.u32 %v1210, 4294901760
    %3762 = vmatmul.mubr.f32.gmra.mxu0 %v3761
    %v3763 = vpop.f32.mrf.mxu0
    %v3764 = vadd.f32 %v3661, %v3763
    %v3765 = vpop.f32.mrf.mxu0
    %3766 = vmatprep.mubr.f32.mxu0 0.0
    %v3767 = vand.u32 %v1213, 4294901760
    %3768 = vmatmul.mubr.f32.gmra.mxu0 %v3767
    %v3769 = vpop.f32.mrf.mxu0
    %v3770 = vadd.f32 %v3671, %v3769
    %v3771 = vpop.f32.mrf.mxu0
    %3772 = vdwg.mxu0
    %3773 = vmatprep.subr.mxu0 0.0
    %3774 = vmatpush1.msra.mxu0 0.0
    %3775 = vmatprep.subr.mxu0 0.0
    %3776 = vmatpush1.msra.mxu0 0.0
    %3777 = vmatprep.subr.mxu0 0.0
    %3778 = vmatpush1.msra.mxu0 0.0
    %3779 = vmatprep.subr.mxu0 0.0
    %3780 = vmatpush1.msra.mxu0 0.0
    %3781 = vmatprep.subr.mxu0 0.0
    %3782 = vmatpush1.msra.mxu0 0.0
    %3783 = vmatprep.subr.mxu0 0.0
    %3784 = vmatpush1.msra.mxu0 0.0
    %3785 = vmatprep.subr.mxu0 0.0
    %3786 = vmatpush1.msra.mxu0 0.0
    %3787 = vmatprep.subr.mxu0 0.0
    %3788 = vmatpush1.msra.mxu0 0.0
    %3789 = vmatprep.subr.mxu0 0.0
    %3790 = vmatpush1.msra.mxu0 0.0
    %3791 = vmatprep.subr.mxu0 0.0
    %3792 = vmatpush1.msra.mxu0 0.0
    %3793 = vmatprep.subr.mxu0 0.0
    %3794 = vmatpush1.msra.mxu0 0.0
    %3795 = vmatprep.subr.mxu0 0.0
    %3796 = vmatpush1.msra.mxu0 0.0
    %3797 = vmatprep.subr.mxu0 0.0
    %3798 = vmatpush1.msra.mxu0 0.0
    %3799 = vmatprep.subr.mxu0 0.0
    %3800 = vmatpush1.msra.mxu0 0.0
    %3801 = vmatprep.subr.mxu0 0.0
    %v3802 = vand.u32 %v1160, 4294901760
    %v3803 = vsub.f32 %v1160, %v3802
    %3804 = vmatpush1.msra.mxu0 %v3803
    %3805 = vmatprep.subr.mxu0 0.0
    %v3806 = vand.u32 %v1154, 4294901760
    %v3807 = vsub.f32 %v1154, %v3806
    %3808 = vmatpush1.msra.mxu0 %v3807
    %3809 = vmatprep.subr.mxu0 0.0
    %3810 = vmatpush2.msra.mxu0 0.0
    %3811 = vmatprep.subr.mxu0 0.0
    %3812 = vmatpush2.msra.mxu0 0.0
    %3813 = vmatprep.subr.mxu0 0.0
    %3814 = vmatpush2.msra.mxu0 0.0
    %3815 = vmatprep.subr.mxu0 0.0
    %3816 = vmatpush2.msra.mxu0 0.0
    %3817 = vmatprep.subr.mxu0 0.0
    %3818 = vmatpush2.msra.mxu0 0.0
    %3819 = vmatprep.subr.mxu0 0.0
    %3820 = vmatpush2.msra.mxu0 0.0
    %3821 = vmatprep.subr.mxu0 0.0
    %3822 = vmatpush2.msra.mxu0 0.0
    %3823 = vmatprep.subr.mxu0 0.0
    %3824 = vmatpush2.msra.mxu0 0.0
    %3825 = vmatprep.subr.mxu0 0.0
    %3826 = vmatpush2.msra.mxu0 0.0
    %3827 = vmatprep.subr.mxu0 0.0
    %3828 = vmatpush2.msra.mxu0 0.0
    %3829 = vmatprep.subr.mxu0 0.0
    %3830 = vmatpush2.msra.mxu0 0.0
    %3831 = vmatprep.subr.mxu0 0.0
    %3832 = vmatpush2.msra.mxu0 0.0
    %3833 = vmatprep.subr.mxu0 0.0
    %3834 = vmatpush2.msra.mxu0 0.0
    %3835 = vmatprep.subr.mxu0 0.0
    %3836 = vmatpush2.msra.mxu0 0.0
    %3837 = vmatprep.subr.mxu0 0.0
    %3838 = vmatpush2.msra.mxu0 0.0
    %3839 = vmatprep.subr.mxu0 0.0
    %3840 = vmatpush2.msra.mxu0 0.0
    %3841 = vmatprep.mubr.f32.mxu0 0.0
    %v3842 = vand.u32 %v1204, 4294901760
    %v3843 = vsub.f32 %v1204, %v3842
    %3844 = vmatmul.mubr.f32.gmra.mxu0 %v3843
    %v3845 = vpop.f32.mrf.mxu0
    %v3846 = vadd.f32 %v3752, %v3845
    %v3847 = vpop.f32.mrf.mxu0
    %3848 = vmatprep.mubr.f32.mxu0 0.0
    %v3849 = vand.u32 %v1207, 4294901760
    %v3850 = vsub.f32 %v1207, %v3849
    %3851 = vmatmul.mubr.f32.gmra.mxu0 %v3850
    %v3852 = vpop.f32.mrf.mxu0
    %v3853 = vadd.f32 %v3758, %v3852
    %v3854 = vpop.f32.mrf.mxu0
    %3855 = vmatprep.mubr.f32.mxu0 0.0
    %v3856 = vand.u32 %v1210, 4294901760
    %v3857 = vsub.f32 %v1210, %v3856
    %3858 = vmatmul.mubr.f32.gmra.mxu0 %v3857
    %v3859 = vpop.f32.mrf.mxu0
    %v3860 = vadd.f32 %v3764, %v3859
    %v3861 = vpop.f32.mrf.mxu0
    %3862 = vmatprep.mubr.f32.mxu0 0.0
    %v3863 = vand.u32 %v1213, 4294901760
    %v3864 = vsub.f32 %v1213, %v3863
    %3865 = vmatmul.mubr.f32.gmra.mxu0 %v3864
    %v3866 = vpop.f32.mrf.mxu0
    %v3867 = vadd.f32 %v3770, %v3866
    %v3868 = vpop.f32.mrf.mxu0
    %3869 = vdwg.mxu0
    %3870 = vmatprep.subr.mxu0 0.0
    %3871 = vmatpush1.msra.mxu0 0.0
    %3872 = vmatprep.subr.mxu0 0.0
    %3873 = vmatpush1.msra.mxu0 0.0
    %3874 = vmatprep.subr.mxu0 0.0
    %3875 = vmatpush1.msra.mxu0 0.0
    %3876 = vmatprep.subr.mxu0 0.0
    %3877 = vmatpush1.msra.mxu0 0.0
    %3878 = vmatprep.subr.mxu0 0.0
    %3879 = vmatpush1.msra.mxu0 0.0
    %3880 = vmatprep.subr.mxu0 0.0
    %3881 = vmatpush1.msra.mxu0 0.0
    %3882 = vmatprep.subr.mxu0 0.0
    %3883 = vmatpush1.msra.mxu0 0.0
    %3884 = vmatprep.subr.mxu0 0.0
    %3885 = vmatpush1.msra.mxu0 0.0
    %3886 = vmatprep.subr.mxu0 0.0
    %3887 = vmatpush1.msra.mxu0 0.0
    %3888 = vmatprep.subr.mxu0 0.0
    %3889 = vmatpush1.msra.mxu0 0.0
    %3890 = vmatprep.subr.mxu0 0.0
    %3891 = vmatpush1.msra.mxu0 0.0
    %3892 = vmatprep.subr.mxu0 0.0
    %3893 = vmatpush1.msra.mxu0 0.0
    %3894 = vmatprep.subr.mxu0 0.0
    %3895 = vmatpush1.msra.mxu0 0.0
    %3896 = vmatprep.subr.mxu0 0.0
    %3897 = vmatpush1.msra.mxu0 0.0
    %3898 = vmatprep.subr.mxu0 0.0
    %v3899 = vand.u32 %v1160, 4294901760
    %3900 = vmatpush1.msra.mxu0 %v3899
    %3901 = vmatprep.subr.mxu0 0.0
    %v3902 = vand.u32 %v1154, 4294901760
    %3903 = vmatpush1.msra.mxu0 %v3902
    %3904 = vmatprep.subr.mxu0 0.0
    %3905 = vmatpush2.msra.mxu0 0.0
    %3906 = vmatprep.subr.mxu0 0.0
    %3907 = vmatpush2.msra.mxu0 0.0
    %3908 = vmatprep.subr.mxu0 0.0
    %3909 = vmatpush2.msra.mxu0 0.0
    %3910 = vmatprep.subr.mxu0 0.0
    %3911 = vmatpush2.msra.mxu0 0.0
    %3912 = vmatprep.subr.mxu0 0.0
    %3913 = vmatpush2.msra.mxu0 0.0
    %3914 = vmatprep.subr.mxu0 0.0
    %3915 = vmatpush2.msra.mxu0 0.0
    %3916 = vmatprep.subr.mxu0 0.0
    %3917 = vmatpush2.msra.mxu0 0.0
    %3918 = vmatprep.subr.mxu0 0.0
    %3919 = vmatpush2.msra.mxu0 0.0
    %3920 = vmatprep.subr.mxu0 0.0
    %3921 = vmatpush2.msra.mxu0 0.0
    %3922 = vmatprep.subr.mxu0 0.0
    %3923 = vmatpush2.msra.mxu0 0.0
    %3924 = vmatprep.subr.mxu0 0.0
    %3925 = vmatpush2.msra.mxu0 0.0
    %3926 = vmatprep.subr.mxu0 0.0
    %3927 = vmatpush2.msra.mxu0 0.0
    %3928 = vmatprep.subr.mxu0 0.0
    %3929 = vmatpush2.msra.mxu0 0.0
    %3930 = vmatprep.subr.mxu0 0.0
    %3931 = vmatpush2.msra.mxu0 0.0
    %3932 = vmatprep.subr.mxu0 0.0
    %3933 = vmatpush2.msra.mxu0 0.0
    %3934 = vmatprep.subr.mxu0 0.0
    %3935 = vmatpush2.msra.mxu0 0.0
    %3936 = vmatprep.mubr.f32.mxu0 0.0
    %v3937 = vand.u32 %v1204, 4294901760
    %v3938 = vsub.f32 %v1204, %v3937
    %v3939 = vand.u32 %v3938, 4294901760
    %3940 = vmatmul.mubr.f32.gmra.mxu0 %v3939
    %v3941 = vpop.f32.mrf.mxu0
    %v3942 = vadd.f32 %v3846, %v3941
    %v3943 = vpop.f32.mrf.mxu0
    %3944 = vmatprep.mubr.f32.mxu0 0.0
    %v3945 = vand.u32 %v1207, 4294901760
    %v3946 = vsub.f32 %v1207, %v3945
    %v3947 = vand.u32 %v3946, 4294901760
    %3948 = vmatmul.mubr.f32.gmra.mxu0 %v3947
    %v3949 = vpop.f32.mrf.mxu0
    %v3950 = vadd.f32 %v3853, %v3949
    %v3951 = vpop.f32.mrf.mxu0
    %3952 = vmatprep.mubr.f32.mxu0 0.0
    %v3953 = vand.u32 %v1210, 4294901760
    %v3954 = vsub.f32 %v1210, %v3953
    %v3955 = vand.u32 %v3954, 4294901760
    %3956 = vmatmul.mubr.f32.gmra.mxu0 %v3955
    %v3957 = vpop.f32.mrf.mxu0
    %v3958 = vadd.f32 %v3860, %v3957
    %v3959 = vpop.f32.mrf.mxu0
    %3960 = vmatprep.mubr.f32.mxu0 0.0
    %v3961 = vand.u32 %v1213, 4294901760
    %v3962 = vsub.f32 %v1213, %v3961
    %v3963 = vand.u32 %v3962, 4294901760
    %3964 = vmatmul.mubr.f32.gmra.mxu0 %v3963
    %v3965 = vpop.f32.mrf.mxu0
    %v3966 = vadd.f32 %v3867, %v3965
    %v3967 = vpop.f32.mrf.mxu0
    %3968 = vdwg.mxu0
    %3969 = vmatprep.subr.mxu0 0.0
    %3970 = vmatpush1.msra.mxu0 0.0
    %3971 = vmatprep.subr.mxu0 0.0
    %3972 = vmatpush1.msra.mxu0 0.0
    %3973 = vmatprep.subr.mxu0 0.0
    %3974 = vmatpush1.msra.mxu0 0.0
    %3975 = vmatprep.subr.mxu0 0.0
    %3976 = vmatpush1.msra.mxu0 0.0
    %3977 = vmatprep.subr.mxu0 0.0
    %3978 = vmatpush1.msra.mxu0 0.0
    %3979 = vmatprep.subr.mxu0 0.0
    %3980 = vmatpush1.msra.mxu0 0.0
    %3981 = vmatprep.subr.mxu0 0.0
    %3982 = vmatpush1.msra.mxu0 0.0
    %3983 = vmatprep.subr.mxu0 0.0
    %3984 = vmatpush1.msra.mxu0 0.0
    %3985 = vmatprep.subr.mxu0 0.0
    %3986 = vmatpush1.msra.mxu0 0.0
    %3987 = vmatprep.subr.mxu0 0.0
    %3988 = vmatpush1.msra.mxu0 0.0
    %3989 = vmatprep.subr.mxu0 0.0
    %3990 = vmatpush1.msra.mxu0 0.0
    %3991 = vmatprep.subr.mxu0 0.0
    %3992 = vmatpush1.msra.mxu0 0.0
    %3993 = vmatprep.subr.mxu0 0.0
    %3994 = vmatpush1.msra.mxu0 0.0
    %3995 = vmatprep.subr.mxu0 0.0
    %3996 = vmatpush1.msra.mxu0 0.0
    %3997 = vmatprep.subr.mxu0 0.0
    %v3998 = vand.u32 %v1160, 4294901760
    %v3999 = vsub.f32 %v1160, %v3998
    %v4000 = vand.u32 %v3999, 4294901760
    %4001 = vmatpush1.msra.mxu0 %v4000
    %4002 = vmatprep.subr.mxu0 0.0
    %v4003 = vand.u32 %v1154, 4294901760
    %v4004 = vsub.f32 %v1154, %v4003
    %v4005 = vand.u32 %v4004, 4294901760
    %4006 = vmatpush1.msra.mxu0 %v4005
    %4007 = vmatprep.subr.mxu0 0.0
    %4008 = vmatpush2.msra.mxu0 0.0
    %4009 = vmatprep.subr.mxu0 0.0
    %4010 = vmatpush2.msra.mxu0 0.0
    %4011 = vmatprep.subr.mxu0 0.0
    %4012 = vmatpush2.msra.mxu0 0.0
    %4013 = vmatprep.subr.mxu0 0.0
    %4014 = vmatpush2.msra.mxu0 0.0
    %4015 = vmatprep.subr.mxu0 0.0
    %4016 = vmatpush2.msra.mxu0 0.0
    %4017 = vmatprep.subr.mxu0 0.0
    %4018 = vmatpush2.msra.mxu0 0.0
    %4019 = vmatprep.subr.mxu0 0.0
    %4020 = vmatpush2.msra.mxu0 0.0
    %4021 = vmatprep.subr.mxu0 0.0
    %4022 = vmatpush2.msra.mxu0 0.0
    %4023 = vmatprep.subr.mxu0 0.0
    %4024 = vmatpush2.msra.mxu0 0.0
    %4025 = vmatprep.subr.mxu0 0.0
    %4026 = vmatpush2.msra.mxu0 0.0
    %4027 = vmatprep.subr.mxu0 0.0
    %4028 = vmatpush2.msra.mxu0 0.0
    %4029 = vmatprep.subr.mxu0 0.0
    %4030 = vmatpush2.msra.mxu0 0.0
    %4031 = vmatprep.subr.mxu0 0.0
    %4032 = vmatpush2.msra.mxu0 0.0
    %4033 = vmatprep.subr.mxu0 0.0
    %4034 = vmatpush2.msra.mxu0 0.0
    %4035 = vmatprep.subr.mxu0 0.0
    %4036 = vmatpush2.msra.mxu0 0.0
    %4037 = vmatprep.subr.mxu0 0.0
    %4038 = vmatpush2.msra.mxu0 0.0
    %4039 = vmatprep.mubr.f32.mxu0 0.0
    %v4040 = vand.u32 %v1204, 4294901760
    %4041 = vmatmul.mubr.f32.gmra.mxu0 %v4040
    %v4042 = vpop.f32.mrf.mxu0
    %v4043 = vadd.f32 %v3942, %v4042
    %v4044 = vpop.f32.mrf.mxu0
    %4045 = vmatprep.mubr.f32.mxu0 0.0
    %v4046 = vand.u32 %v1207, 4294901760
    %4047 = vmatmul.mubr.f32.gmra.mxu0 %v4046
    %v4048 = vpop.f32.mrf.mxu0
    %v4049 = vadd.f32 %v3950, %v4048
    %v4050 = vpop.f32.mrf.mxu0
    %4051 = vmatprep.mubr.f32.mxu0 0.0
    %v4052 = vand.u32 %v1210, 4294901760
    %4053 = vmatmul.mubr.f32.gmra.mxu0 %v4052
    %v4054 = vpop.f32.mrf.mxu0
    %v4055 = vadd.f32 %v3958, %v4054
    %v4056 = vpop.f32.mrf.mxu0
    %4057 = vmatprep.mubr.f32.mxu0 0.0
    %v4058 = vand.u32 %v1213, 4294901760
    %4059 = vmatmul.mubr.f32.gmra.mxu0 %v4058
    %v4060 = vpop.f32.mrf.mxu0
    %v4061 = vadd.f32 %v3966, %v4060
    %v4062 = vpop.f32.mrf.mxu0
    %4063 = vdwg.mxu0
    %4064 = vmatprep.subr.mxu0 0.0
    %4065 = vmatpush1.msra.mxu0 0.0
    %4066 = vmatprep.subr.mxu0 0.0
    %4067 = vmatpush1.msra.mxu0 0.0
    %4068 = vmatprep.subr.mxu0 0.0
    %4069 = vmatpush1.msra.mxu0 0.0
    %4070 = vmatprep.subr.mxu0 0.0
    %4071 = vmatpush1.msra.mxu0 0.0
    %4072 = vmatprep.subr.mxu0 0.0
    %4073 = vmatpush1.msra.mxu0 0.0
    %4074 = vmatprep.subr.mxu0 0.0
    %4075 = vmatpush1.msra.mxu0 0.0
    %4076 = vmatprep.subr.mxu0 0.0
    %4077 = vmatpush1.msra.mxu0 0.0
    %4078 = vmatprep.subr.mxu0 0.0
    %4079 = vmatpush1.msra.mxu0 0.0
    %4080 = vmatprep.subr.mxu0 0.0
    %4081 = vmatpush1.msra.mxu0 0.0
    %4082 = vmatprep.subr.mxu0 0.0
    %4083 = vmatpush1.msra.mxu0 0.0
    %4084 = vmatprep.subr.mxu0 0.0
    %4085 = vmatpush1.msra.mxu0 0.0
    %4086 = vmatprep.subr.mxu0 0.0
    %4087 = vmatpush1.msra.mxu0 0.0
    %4088 = vmatprep.subr.mxu0 0.0
    %4089 = vmatpush1.msra.mxu0 0.0
    %4090 = vmatprep.subr.mxu0 0.0
    %4091 = vmatpush1.msra.mxu0 0.0
    %4092 = vmatprep.subr.mxu0 0.0
    %v4093 = vand.u32 %v1160, 4294901760
    %4094 = vmatpush1.msra.mxu0 %v4093
    %4095 = vmatprep.subr.mxu0 0.0
    %v4096 = vand.u32 %v1154, 4294901760
    %4097 = vmatpush1.msra.mxu0 %v4096
    %4098 = vmatprep.subr.mxu0 0.0
    %4099 = vmatpush2.msra.mxu0 0.0
    %4100 = vmatprep.subr.mxu0 0.0
    %4101 = vmatpush2.msra.mxu0 0.0
    %4102 = vmatprep.subr.mxu0 0.0
    %4103 = vmatpush2.msra.mxu0 0.0
    %4104 = vmatprep.subr.mxu0 0.0
    %4105 = vmatpush2.msra.mxu0 0.0
    %4106 = vmatprep.subr.mxu0 0.0
    %4107 = vmatpush2.msra.mxu0 0.0
    %4108 = vmatprep.subr.mxu0 0.0
    %4109 = vmatpush2.msra.mxu0 0.0
    %4110 = vmatprep.subr.mxu0 0.0
    %4111 = vmatpush2.msra.mxu0 0.0
    %4112 = vmatprep.subr.mxu0 0.0
    %4113 = vmatpush2.msra.mxu0 0.0
    %4114 = vmatprep.subr.mxu0 0.0
    %4115 = vmatpush2.msra.mxu0 0.0
    %4116 = vmatprep.subr.mxu0 0.0
    %4117 = vmatpush2.msra.mxu0 0.0
    %4118 = vmatprep.subr.mxu0 0.0
    %4119 = vmatpush2.msra.mxu0 0.0
    %4120 = vmatprep.subr.mxu0 0.0
    %4121 = vmatpush2.msra.mxu0 0.0
    %4122 = vmatprep.subr.mxu0 0.0
    %4123 = vmatpush2.msra.mxu0 0.0
    %4124 = vmatprep.subr.mxu0 0.0
    %4125 = vmatpush2.msra.mxu0 0.0
    %4126 = vmatprep.subr.mxu0 0.0
    %4127 = vmatpush2.msra.mxu0 0.0
    %4128 = vmatprep.subr.mxu0 0.0
    %4129 = vmatpush2.msra.mxu0 0.0
    %4130 = vmatprep.mubr.f32.mxu0 0.0
    %v4131 = vand.u32 %v1204, 4294901760
    %4132 = vmatmul.mubr.f32.gmra.mxu0 %v4131
    %v4133 = vpop.f32.mrf.mxu0
    %v4134 = vadd.f32 %v4043, %v4133
    %v4135 = vpop.f32.mrf.mxu0
    %4136 = vmatprep.mubr.f32.mxu0 0.0
    %v4137 = vand.u32 %v1207, 4294901760
    %4138 = vmatmul.mubr.f32.gmra.mxu0 %v4137
    %v4139 = vpop.f32.mrf.mxu0
    %v4140 = vadd.f32 %v4049, %v4139
    %v4141 = vpop.f32.mrf.mxu0
    %4142 = vmatprep.mubr.f32.mxu0 0.0
    %v4143 = vand.u32 %v1210, 4294901760
    %4144 = vmatmul.mubr.f32.gmra.mxu0 %v4143
    %v4145 = vpop.f32.mrf.mxu0
    %v4146 = vadd.f32 %v4055, %v4145
    %v4147 = vpop.f32.mrf.mxu0
    %4148 = vmatprep.mubr.f32.mxu0 0.0
    %v4149 = vand.u32 %v1213, 4294901760
    %4150 = vmatmul.mubr.f32.gmra.mxu0 %v4149
    %v4151 = vpop.f32.mrf.mxu0
    %v4152 = vadd.f32 %v4061, %v4151
    %v4153 = vpop.f32.mrf.mxu0
    %4154 = vdwg.mxu0
    %4155 = vmatprep.subr.mxu0 0.0
    %4156 = vmatpush1.msra.mxu0 0.0
    %4157 = vmatprep.subr.mxu0 0.0
    %4158 = vmatpush1.msra.mxu0 0.0
    %4159 = vmatprep.subr.mxu0 0.0
    %4160 = vmatpush1.msra.mxu0 0.0
    %4161 = vmatprep.subr.mxu0 0.0
    %4162 = vmatpush1.msra.mxu0 0.0
    %4163 = vmatprep.subr.mxu0 0.0
    %4164 = vmatpush1.msra.mxu0 0.0
    %4165 = vmatprep.subr.mxu0 0.0
    %4166 = vmatpush1.msra.mxu0 0.0
    %4167 = vmatprep.subr.mxu0 0.0
    %4168 = vmatpush1.msra.mxu0 0.0
    %4169 = vmatprep.subr.mxu0 0.0
    %4170 = vmatpush1.msra.mxu0 0.0
    %4171 = vmatprep.subr.mxu0 0.0
    %4172 = vmatpush1.msra.mxu0 0.0
    %4173 = vmatprep.subr.mxu0 0.0
    %4174 = vmatpush1.msra.mxu0 0.0
    %4175 = vmatprep.subr.mxu0 0.0
    %4176 = vmatpush1.msra.mxu0 0.0
    %4177 = vmatprep.subr.mxu0 0.0
    %4178 = vmatpush1.msra.mxu0 0.0
    %4179 = vmatprep.subr.mxu0 0.0
    %4180 = vmatpush1.msra.mxu0 0.0
    %4181 = vmatprep.subr.mxu0 0.0
    %4182 = vmatpush1.msra.mxu0 0.0
    %4183 = vmatprep.subr.mxu0 0.0
    %v4184 = vand.u32 %v1172, 4294901760
    %4185 = vmatpush1.msra.mxu0 %v4184
    %4186 = vmatprep.subr.mxu0 0.0
    %v4187 = vand.u32 %v1166, 4294901760
    %4188 = vmatpush1.msra.mxu0 %v4187
    %4189 = vmatprep.subr.mxu0 0.0
    %4190 = vmatpush2.msra.mxu0 0.0
    %4191 = vmatprep.subr.mxu0 0.0
    %4192 = vmatpush2.msra.mxu0 0.0
    %4193 = vmatprep.subr.mxu0 0.0
    %4194 = vmatpush2.msra.mxu0 0.0
    %4195 = vmatprep.subr.mxu0 0.0
    %4196 = vmatpush2.msra.mxu0 0.0
    %4197 = vmatprep.subr.mxu0 0.0
    %4198 = vmatpush2.msra.mxu0 0.0
    %4199 = vmatprep.subr.mxu0 0.0
    %4200 = vmatpush2.msra.mxu0 0.0
    %4201 = vmatprep.subr.mxu0 0.0
    %4202 = vmatpush2.msra.mxu0 0.0
    %4203 = vmatprep.subr.mxu0 0.0
    %4204 = vmatpush2.msra.mxu0 0.0
    %4205 = vmatprep.subr.mxu0 0.0
    %4206 = vmatpush2.msra.mxu0 0.0
    %4207 = vmatprep.subr.mxu0 0.0
    %4208 = vmatpush2.msra.mxu0 0.0
    %4209 = vmatprep.subr.mxu0 0.0
    %4210 = vmatpush2.msra.mxu0 0.0
    %4211 = vmatprep.subr.mxu0 0.0
    %4212 = vmatpush2.msra.mxu0 0.0
    %4213 = vmatprep.subr.mxu0 0.0
    %4214 = vmatpush2.msra.mxu0 0.0
    %4215 = vmatprep.subr.mxu0 0.0
    %4216 = vmatpush2.msra.mxu0 0.0
    %4217 = vmatprep.subr.mxu0 0.0
    %4218 = vmatpush2.msra.mxu0 0.0
    %4219 = vmatprep.subr.mxu0 0.0
    %4220 = vmatpush2.msra.mxu0 0.0
    %4221 = vmatprep.mubr.f32.mxu0 0.0
    %v4222 = vand.u32 %v1204, 4294901760
    %v4223 = vsub.f32 %v1204, %v4222
    %v4224 = vand.u32 %v4223, 4294901760
    %v4225 = vsub.f32 %v4223, %v4224
    %v4226 = vand.u32 %v4225, 4294901760
    %4227 = vmatmul.mubr.f32.gmra.mxu0 %v4226
    %v4228 = vpop.f32.mrf.mxu0
    %v4229 = vadd.f32 0.0, %v4228
    %v4230 = vpop.f32.mrf.mxu0
    %4231 = vmatprep.mubr.f32.mxu0 0.0
    %v4232 = vand.u32 %v1207, 4294901760
    %v4233 = vsub.f32 %v1207, %v4232
    %v4234 = vand.u32 %v4233, 4294901760
    %v4235 = vsub.f32 %v4233, %v4234
    %v4236 = vand.u32 %v4235, 4294901760
    %4237 = vmatmul.mubr.f32.gmra.mxu0 %v4236
    %v4238 = vpop.f32.mrf.mxu0
    %v4239 = vadd.f32 0.0, %v4238
    %v4240 = vpop.f32.mrf.mxu0
    %4241 = vmatprep.mubr.f32.mxu0 0.0
    %v4242 = vand.u32 %v1210, 4294901760
    %v4243 = vsub.f32 %v1210, %v4242
    %v4244 = vand.u32 %v4243, 4294901760
    %v4245 = vsub.f32 %v4243, %v4244
    %v4246 = vand.u32 %v4245, 4294901760
    %4247 = vmatmul.mubr.f32.gmra.mxu0 %v4246
    %v4248 = vpop.f32.mrf.mxu0
    %v4249 = vadd.f32 0.0, %v4248
    %v4250 = vpop.f32.mrf.mxu0
    %4251 = vmatprep.mubr.f32.mxu0 0.0
    %v4252 = vand.u32 %v1213, 4294901760
    %v4253 = vsub.f32 %v1213, %v4252
    %v4254 = vand.u32 %v4253, 4294901760
    %v4255 = vsub.f32 %v4253, %v4254
    %v4256 = vand.u32 %v4255, 4294901760
    %4257 = vmatmul.mubr.f32.gmra.mxu0 %v4256
    %v4258 = vpop.f32.mrf.mxu0
    %v4259 = vadd.f32 0.0, %v4258
    %v4260 = vpop.f32.mrf.mxu0
    %4261 = vdwg.mxu0
    %4262 = vmatprep.subr.mxu0 0.0
    %4263 = vmatpush1.msra.mxu0 0.0
    %4264 = vmatprep.subr.mxu0 0.0
    %4265 = vmatpush1.msra.mxu0 0.0
    %4266 = vmatprep.subr.mxu0 0.0
    %4267 = vmatpush1.msra.mxu0 0.0
    %4268 = vmatprep.subr.mxu0 0.0
    %4269 = vmatpush1.msra.mxu0 0.0
    %4270 = vmatprep.subr.mxu0 0.0
    %4271 = vmatpush1.msra.mxu0 0.0
    %4272 = vmatprep.subr.mxu0 0.0
    %4273 = vmatpush1.msra.mxu0 0.0
    %4274 = vmatprep.subr.mxu0 0.0
    %4275 = vmatpush1.msra.mxu0 0.0
    %4276 = vmatprep.subr.mxu0 0.0
    %4277 = vmatpush1.msra.mxu0 0.0
    %4278 = vmatprep.subr.mxu0 0.0
    %4279 = vmatpush1.msra.mxu0 0.0
    %4280 = vmatprep.subr.mxu0 0.0
    %4281 = vmatpush1.msra.mxu0 0.0
    %4282 = vmatprep.subr.mxu0 0.0
    %4283 = vmatpush1.msra.mxu0 0.0
    %4284 = vmatprep.subr.mxu0 0.0
    %4285 = vmatpush1.msra.mxu0 0.0
    %4286 = vmatprep.subr.mxu0 0.0
    %4287 = vmatpush1.msra.mxu0 0.0
    %4288 = vmatprep.subr.mxu0 0.0
    %4289 = vmatpush1.msra.mxu0 0.0
    %4290 = vmatprep.subr.mxu0 0.0
    %v4291 = vand.u32 %v1172, 4294901760
    %v4292 = vsub.f32 %v1172, %v4291
    %v4293 = vand.u32 %v4292, 4294901760
    %v4294 = vsub.f32 %v4292, %v4293
    %v4295 = vand.u32 %v4294, 4294901760
    %4296 = vmatpush1.msra.mxu0 %v4295
    %4297 = vmatprep.subr.mxu0 0.0
    %v4298 = vand.u32 %v1166, 4294901760
    %v4299 = vsub.f32 %v1166, %v4298
    %v4300 = vand.u32 %v4299, 4294901760
    %v4301 = vsub.f32 %v4299, %v4300
    %v4302 = vand.u32 %v4301, 4294901760
    %4303 = vmatpush1.msra.mxu0 %v4302
    %4304 = vmatprep.subr.mxu0 0.0
    %4305 = vmatpush2.msra.mxu0 0.0
    %4306 = vmatprep.subr.mxu0 0.0
    %4307 = vmatpush2.msra.mxu0 0.0
    %4308 = vmatprep.subr.mxu0 0.0
    %4309 = vmatpush2.msra.mxu0 0.0
    %4310 = vmatprep.subr.mxu0 0.0
    %4311 = vmatpush2.msra.mxu0 0.0
    %4312 = vmatprep.subr.mxu0 0.0
    %4313 = vmatpush2.msra.mxu0 0.0
    %4314 = vmatprep.subr.mxu0 0.0
    %4315 = vmatpush2.msra.mxu0 0.0
    %4316 = vmatprep.subr.mxu0 0.0
    %4317 = vmatpush2.msra.mxu0 0.0
    %4318 = vmatprep.subr.mxu0 0.0
    %4319 = vmatpush2.msra.mxu0 0.0
    %4320 = vmatprep.subr.mxu0 0.0
    %4321 = vmatpush2.msra.mxu0 0.0
    %4322 = vmatprep.subr.mxu0 0.0
    %4323 = vmatpush2.msra.mxu0 0.0
    %4324 = vmatprep.subr.mxu0 0.0
    %4325 = vmatpush2.msra.mxu0 0.0
    %4326 = vmatprep.subr.mxu0 0.0
    %4327 = vmatpush2.msra.mxu0 0.0
    %4328 = vmatprep.subr.mxu0 0.0
    %4329 = vmatpush2.msra.mxu0 0.0
    %4330 = vmatprep.subr.mxu0 0.0
    %4331 = vmatpush2.msra.mxu0 0.0
    %4332 = vmatprep.subr.mxu0 0.0
    %4333 = vmatpush2.msra.mxu0 0.0
    %4334 = vmatprep.subr.mxu0 0.0
    %4335 = vmatpush2.msra.mxu0 0.0
    %4336 = vmatprep.mubr.f32.mxu0 0.0
    %v4337 = vand.u32 %v1204, 4294901760
    %4338 = vmatmul.mubr.f32.gmra.mxu0 %v4337
    %v4339 = vpop.f32.mrf.mxu0
    %v4340 = vadd.f32 %v4229, %v4339
    %v4341 = vpop.f32.mrf.mxu0
    %4342 = vmatprep.mubr.f32.mxu0 0.0
    %v4343 = vand.u32 %v1207, 4294901760
    %4344 = vmatmul.mubr.f32.gmra.mxu0 %v4343
    %v4345 = vpop.f32.mrf.mxu0
    %v4346 = vadd.f32 %v4239, %v4345
    %v4347 = vpop.f32.mrf.mxu0
    %4348 = vmatprep.mubr.f32.mxu0 0.0
    %v4349 = vand.u32 %v1210, 4294901760
    %4350 = vmatmul.mubr.f32.gmra.mxu0 %v4349
    %v4351 = vpop.f32.mrf.mxu0
    %v4352 = vadd.f32 %v4249, %v4351
    %v4353 = vpop.f32.mrf.mxu0
    %4354 = vmatprep.mubr.f32.mxu0 0.0
    %v4355 = vand.u32 %v1213, 4294901760
    %4356 = vmatmul.mubr.f32.gmra.mxu0 %v4355
    %v4357 = vpop.f32.mrf.mxu0
    %v4358 = vadd.f32 %v4259, %v4357
    %v4359 = vpop.f32.mrf.mxu0
    %4360 = vdwg.mxu0
    %4361 = vmatprep.subr.mxu0 0.0
    %4362 = vmatpush1.msra.mxu0 0.0
    %4363 = vmatprep.subr.mxu0 0.0
    %4364 = vmatpush1.msra.mxu0 0.0
    %4365 = vmatprep.subr.mxu0 0.0
    %4366 = vmatpush1.msra.mxu0 0.0
    %4367 = vmatprep.subr.mxu0 0.0
    %4368 = vmatpush1.msra.mxu0 0.0
    %4369 = vmatprep.subr.mxu0 0.0
    %4370 = vmatpush1.msra.mxu0 0.0
    %4371 = vmatprep.subr.mxu0 0.0
    %4372 = vmatpush1.msra.mxu0 0.0
    %4373 = vmatprep.subr.mxu0 0.0
    %4374 = vmatpush1.msra.mxu0 0.0
    %4375 = vmatprep.subr.mxu0 0.0
    %4376 = vmatpush1.msra.mxu0 0.0
    %4377 = vmatprep.subr.mxu0 0.0
    %4378 = vmatpush1.msra.mxu0 0.0
    %4379 = vmatprep.subr.mxu0 0.0
    %4380 = vmatpush1.msra.mxu0 0.0
    %4381 = vmatprep.subr.mxu0 0.0
    %4382 = vmatpush1.msra.mxu0 0.0
    %4383 = vmatprep.subr.mxu0 0.0
    %4384 = vmatpush1.msra.mxu0 0.0
    %4385 = vmatprep.subr.mxu0 0.0
    %4386 = vmatpush1.msra.mxu0 0.0
    %4387 = vmatprep.subr.mxu0 0.0
    %4388 = vmatpush1.msra.mxu0 0.0
    %4389 = vmatprep.subr.mxu0 0.0
    %v4390 = vand.u32 %v1172, 4294901760
    %v4391 = vsub.f32 %v1172, %v4390
    %4392 = vmatpush1.msra.mxu0 %v4391
    %4393 = vmatprep.subr.mxu0 0.0
    %v4394 = vand.u32 %v1166, 4294901760
    %v4395 = vsub.f32 %v1166, %v4394
    %4396 = vmatpush1.msra.mxu0 %v4395
    %4397 = vmatprep.subr.mxu0 0.0
    %4398 = vmatpush2.msra.mxu0 0.0
    %4399 = vmatprep.subr.mxu0 0.0
    %4400 = vmatpush2.msra.mxu0 0.0
    %4401 = vmatprep.subr.mxu0 0.0
    %4402 = vmatpush2.msra.mxu0 0.0
    %4403 = vmatprep.subr.mxu0 0.0
    %4404 = vmatpush2.msra.mxu0 0.0
    %4405 = vmatprep.subr.mxu0 0.0
    %4406 = vmatpush2.msra.mxu0 0.0
    %4407 = vmatprep.subr.mxu0 0.0
    %4408 = vmatpush2.msra.mxu0 0.0
    %4409 = vmatprep.subr.mxu0 0.0
    %4410 = vmatpush2.msra.mxu0 0.0
    %4411 = vmatprep.subr.mxu0 0.0
    %4412 = vmatpush2.msra.mxu0 0.0
    %4413 = vmatprep.subr.mxu0 0.0
    %4414 = vmatpush2.msra.mxu0 0.0
    %4415 = vmatprep.subr.mxu0 0.0
    %4416 = vmatpush2.msra.mxu0 0.0
    %4417 = vmatprep.subr.mxu0 0.0
    %4418 = vmatpush2.msra.mxu0 0.0
    %4419 = vmatprep.subr.mxu0 0.0
    %4420 = vmatpush2.msra.mxu0 0.0
    %4421 = vmatprep.subr.mxu0 0.0
    %4422 = vmatpush2.msra.mxu0 0.0
    %4423 = vmatprep.subr.mxu0 0.0
    %4424 = vmatpush2.msra.mxu0 0.0
    %4425 = vmatprep.subr.mxu0 0.0
    %4426 = vmatpush2.msra.mxu0 0.0
    %4427 = vmatprep.subr.mxu0 0.0
    %4428 = vmatpush2.msra.mxu0 0.0
    %4429 = vmatprep.mubr.f32.mxu0 0.0
    %v4430 = vand.u32 %v1204, 4294901760
    %v4431 = vsub.f32 %v1204, %v4430
    %4432 = vmatmul.mubr.f32.gmra.mxu0 %v4431
    %v4433 = vpop.f32.mrf.mxu0
    %v4434 = vadd.f32 %v4340, %v4433
    %v4435 = vpop.f32.mrf.mxu0
    %4436 = vmatprep.mubr.f32.mxu0 0.0
    %v4437 = vand.u32 %v1207, 4294901760
    %v4438 = vsub.f32 %v1207, %v4437
    %4439 = vmatmul.mubr.f32.gmra.mxu0 %v4438
    %v4440 = vpop.f32.mrf.mxu0
    %v4441 = vadd.f32 %v4346, %v4440
    %v4442 = vpop.f32.mrf.mxu0
    %4443 = vmatprep.mubr.f32.mxu0 0.0
    %v4444 = vand.u32 %v1210, 4294901760
    %v4445 = vsub.f32 %v1210, %v4444
    %4446 = vmatmul.mubr.f32.gmra.mxu0 %v4445
    %v4447 = vpop.f32.mrf.mxu0
    %v4448 = vadd.f32 %v4352, %v4447
    %v4449 = vpop.f32.mrf.mxu0
    %4450 = vmatprep.mubr.f32.mxu0 0.0
    %v4451 = vand.u32 %v1213, 4294901760
    %v4452 = vsub.f32 %v1213, %v4451
    %4453 = vmatmul.mubr.f32.gmra.mxu0 %v4452
    %v4454 = vpop.f32.mrf.mxu0
    %v4455 = vadd.f32 %v4358, %v4454
    %v4456 = vpop.f32.mrf.mxu0
    %4457 = vdwg.mxu0
    %4458 = vmatprep.subr.mxu0 0.0
    %4459 = vmatpush1.msra.mxu0 0.0
    %4460 = vmatprep.subr.mxu0 0.0
    %4461 = vmatpush1.msra.mxu0 0.0
    %4462 = vmatprep.subr.mxu0 0.0
    %4463 = vmatpush1.msra.mxu0 0.0
    %4464 = vmatprep.subr.mxu0 0.0
    %4465 = vmatpush1.msra.mxu0 0.0
    %4466 = vmatprep.subr.mxu0 0.0
    %4467 = vmatpush1.msra.mxu0 0.0
    %4468 = vmatprep.subr.mxu0 0.0
    %4469 = vmatpush1.msra.mxu0 0.0
    %4470 = vmatprep.subr.mxu0 0.0
    %4471 = vmatpush1.msra.mxu0 0.0
    %4472 = vmatprep.subr.mxu0 0.0
    %4473 = vmatpush1.msra.mxu0 0.0
    %4474 = vmatprep.subr.mxu0 0.0
    %4475 = vmatpush1.msra.mxu0 0.0
    %4476 = vmatprep.subr.mxu0 0.0
    %4477 = vmatpush1.msra.mxu0 0.0
    %4478 = vmatprep.subr.mxu0 0.0
    %4479 = vmatpush1.msra.mxu0 0.0
    %4480 = vmatprep.subr.mxu0 0.0
    %4481 = vmatpush1.msra.mxu0 0.0
    %4482 = vmatprep.subr.mxu0 0.0
    %4483 = vmatpush1.msra.mxu0 0.0
    %4484 = vmatprep.subr.mxu0 0.0
    %4485 = vmatpush1.msra.mxu0 0.0
    %4486 = vmatprep.subr.mxu0 0.0
    %v4487 = vand.u32 %v1172, 4294901760
    %4488 = vmatpush1.msra.mxu0 %v4487
    %4489 = vmatprep.subr.mxu0 0.0
    %v4490 = vand.u32 %v1166, 4294901760
    %4491 = vmatpush1.msra.mxu0 %v4490
    %4492 = vmatprep.subr.mxu0 0.0
    %4493 = vmatpush2.msra.mxu0 0.0
    %4494 = vmatprep.subr.mxu0 0.0
    %4495 = vmatpush2.msra.mxu0 0.0
    %4496 = vmatprep.subr.mxu0 0.0
    %4497 = vmatpush2.msra.mxu0 0.0
    %4498 = vmatprep.subr.mxu0 0.0
    %4499 = vmatpush2.msra.mxu0 0.0
    %4500 = vmatprep.subr.mxu0 0.0
    %4501 = vmatpush2.msra.mxu0 0.0
    %4502 = vmatprep.subr.mxu0 0.0
    %4503 = vmatpush2.msra.mxu0 0.0
    %4504 = vmatprep.subr.mxu0 0.0
    %4505 = vmatpush2.msra.mxu0 0.0
    %4506 = vmatprep.subr.mxu0 0.0
    %4507 = vmatpush2.msra.mxu0 0.0
    %4508 = vmatprep.subr.mxu0 0.0
    %4509 = vmatpush2.msra.mxu0 0.0
    %4510 = vmatprep.subr.mxu0 0.0
    %4511 = vmatpush2.msra.mxu0 0.0
    %4512 = vmatprep.subr.mxu0 0.0
    %4513 = vmatpush2.msra.mxu0 0.0
    %4514 = vmatprep.subr.mxu0 0.0
    %4515 = vmatpush2.msra.mxu0 0.0
    %4516 = vmatprep.subr.mxu0 0.0
    %4517 = vmatpush2.msra.mxu0 0.0
    %4518 = vmatprep.subr.mxu0 0.0
    %4519 = vmatpush2.msra.mxu0 0.0
    %4520 = vmatprep.subr.mxu0 0.0
    %4521 = vmatpush2.msra.mxu0 0.0
    %4522 = vmatprep.subr.mxu0 0.0
    %4523 = vmatpush2.msra.mxu0 0.0
    %4524 = vmatprep.mubr.f32.mxu0 0.0
    %v4525 = vand.u32 %v1204, 4294901760
    %v4526 = vsub.f32 %v1204, %v4525
    %v4527 = vand.u32 %v4526, 4294901760
    %4528 = vmatmul.mubr.f32.gmra.mxu0 %v4527
    %v4529 = vpop.f32.mrf.mxu0
    %v4530 = vadd.f32 %v4434, %v4529
    %v4531 = vpop.f32.mrf.mxu0
    %4532 = vmatprep.mubr.f32.mxu0 0.0
    %v4533 = vand.u32 %v1207, 4294901760
    %v4534 = vsub.f32 %v1207, %v4533
    %v4535 = vand.u32 %v4534, 4294901760
    %4536 = vmatmul.mubr.f32.gmra.mxu0 %v4535
    %v4537 = vpop.f32.mrf.mxu0
    %v4538 = vadd.f32 %v4441, %v4537
    %v4539 = vpop.f32.mrf.mxu0
    %4540 = vmatprep.mubr.f32.mxu0 0.0
    %v4541 = vand.u32 %v1210, 4294901760
    %v4542 = vsub.f32 %v1210, %v4541
    %v4543 = vand.u32 %v4542, 4294901760
    %4544 = vmatmul.mubr.f32.gmra.mxu0 %v4543
    %v4545 = vpop.f32.mrf.mxu0
    %v4546 = vadd.f32 %v4448, %v4545
    %v4547 = vpop.f32.mrf.mxu0
    %4548 = vmatprep.mubr.f32.mxu0 0.0
    %v4549 = vand.u32 %v1213, 4294901760
    %v4550 = vsub.f32 %v1213, %v4549
    %v4551 = vand.u32 %v4550, 4294901760
    %4552 = vmatmul.mubr.f32.gmra.mxu0 %v4551
    %v4553 = vpop.f32.mrf.mxu0
    %v4554 = vadd.f32 %v4455, %v4553
    %v4555 = vpop.f32.mrf.mxu0
    %4556 = vdwg.mxu0
    %4557 = vmatprep.subr.mxu0 0.0
    %4558 = vmatpush1.msra.mxu0 0.0
    %4559 = vmatprep.subr.mxu0 0.0
    %4560 = vmatpush1.msra.mxu0 0.0
    %4561 = vmatprep.subr.mxu0 0.0
    %4562 = vmatpush1.msra.mxu0 0.0
    %4563 = vmatprep.subr.mxu0 0.0
    %4564 = vmatpush1.msra.mxu0 0.0
    %4565 = vmatprep.subr.mxu0 0.0
    %4566 = vmatpush1.msra.mxu0 0.0
    %4567 = vmatprep.subr.mxu0 0.0
    %4568 = vmatpush1.msra.mxu0 0.0
    %4569 = vmatprep.subr.mxu0 0.0
    %4570 = vmatpush1.msra.mxu0 0.0
    %4571 = vmatprep.subr.mxu0 0.0
    %4572 = vmatpush1.msra.mxu0 0.0
    %4573 = vmatprep.subr.mxu0 0.0
    %4574 = vmatpush1.msra.mxu0 0.0
    %4575 = vmatprep.subr.mxu0 0.0
    %4576 = vmatpush1.msra.mxu0 0.0
    %4577 = vmatprep.subr.mxu0 0.0
    %4578 = vmatpush1.msra.mxu0 0.0
    %4579 = vmatprep.subr.mxu0 0.0
    %4580 = vmatpush1.msra.mxu0 0.0
    %4581 = vmatprep.subr.mxu0 0.0
    %4582 = vmatpush1.msra.mxu0 0.0
    %4583 = vmatprep.subr.mxu0 0.0
    %4584 = vmatpush1.msra.mxu0 0.0
    %4585 = vmatprep.subr.mxu0 0.0
    %v4586 = vand.u32 %v1172, 4294901760
    %v4587 = vsub.f32 %v1172, %v4586
    %v4588 = vand.u32 %v4587, 4294901760
    %4589 = vmatpush1.msra.mxu0 %v4588
    %4590 = vmatprep.subr.mxu0 0.0
    %v4591 = vand.u32 %v1166, 4294901760
    %v4592 = vsub.f32 %v1166, %v4591
    %v4593 = vand.u32 %v4592, 4294901760
    %4594 = vmatpush1.msra.mxu0 %v4593
    %4595 = vmatprep.subr.mxu0 0.0
    %4596 = vmatpush2.msra.mxu0 0.0
    %4597 = vmatprep.subr.mxu0 0.0
    %4598 = vmatpush2.msra.mxu0 0.0
    %4599 = vmatprep.subr.mxu0 0.0
    %4600 = vmatpush2.msra.mxu0 0.0
    %4601 = vmatprep.subr.mxu0 0.0
    %4602 = vmatpush2.msra.mxu0 0.0
    %4603 = vmatprep.subr.mxu0 0.0
    %4604 = vmatpush2.msra.mxu0 0.0
    %4605 = vmatprep.subr.mxu0 0.0
    %4606 = vmatpush2.msra.mxu0 0.0
    %4607 = vmatprep.subr.mxu0 0.0
    %4608 = vmatpush2.msra.mxu0 0.0
    %4609 = vmatprep.subr.mxu0 0.0
    %4610 = vmatpush2.msra.mxu0 0.0
    %4611 = vmatprep.subr.mxu0 0.0
    %4612 = vmatpush2.msra.mxu0 0.0
    %4613 = vmatprep.subr.mxu0 0.0
    %4614 = vmatpush2.msra.mxu0 0.0
    %4615 = vmatprep.subr.mxu0 0.0
    %4616 = vmatpush2.msra.mxu0 0.0
    %4617 = vmatprep.subr.mxu0 0.0
    %4618 = vmatpush2.msra.mxu0 0.0
    %4619 = vmatprep.subr.mxu0 0.0
    %4620 = vmatpush2.msra.mxu0 0.0
    %4621 = vmatprep.subr.mxu0 0.0
    %4622 = vmatpush2.msra.mxu0 0.0
    %4623 = vmatprep.subr.mxu0 0.0
    %4624 = vmatpush2.msra.mxu0 0.0
    %4625 = vmatprep.subr.mxu0 0.0
    %4626 = vmatpush2.msra.mxu0 0.0
    %4627 = vmatprep.mubr.f32.mxu0 0.0
    %v4628 = vand.u32 %v1204, 4294901760
    %4629 = vmatmul.mubr.f32.gmra.mxu0 %v4628
    %v4630 = vpop.f32.mrf.mxu0
    %v4631 = vadd.f32 %v4530, %v4630
    %v4632 = vpop.f32.mrf.mxu0
    %4633 = vmatprep.mubr.f32.mxu0 0.0
    %v4634 = vand.u32 %v1207, 4294901760
    %4635 = vmatmul.mubr.f32.gmra.mxu0 %v4634
    %v4636 = vpop.f32.mrf.mxu0
    %v4637 = vadd.f32 %v4538, %v4636
    %v4638 = vpop.f32.mrf.mxu0
    %4639 = vmatprep.mubr.f32.mxu0 0.0
    %v4640 = vand.u32 %v1210, 4294901760
    %4641 = vmatmul.mubr.f32.gmra.mxu0 %v4640
    %v4642 = vpop.f32.mrf.mxu0
    %v4643 = vadd.f32 %v4546, %v4642
    %v4644 = vpop.f32.mrf.mxu0
    %4645 = vmatprep.mubr.f32.mxu0 0.0
    %v4646 = vand.u32 %v1213, 4294901760
    %4647 = vmatmul.mubr.f32.gmra.mxu0 %v4646
    %v4648 = vpop.f32.mrf.mxu0
    %v4649 = vadd.f32 %v4554, %v4648
    %v4650 = vpop.f32.mrf.mxu0
    %4651 = vdwg.mxu0
    %4652 = vmatprep.subr.mxu0 0.0
    %4653 = vmatpush1.msra.mxu0 0.0
    %4654 = vmatprep.subr.mxu0 0.0
    %4655 = vmatpush1.msra.mxu0 0.0
    %4656 = vmatprep.subr.mxu0 0.0
    %4657 = vmatpush1.msra.mxu0 0.0
    %4658 = vmatprep.subr.mxu0 0.0
    %4659 = vmatpush1.msra.mxu0 0.0
    %4660 = vmatprep.subr.mxu0 0.0
    %4661 = vmatpush1.msra.mxu0 0.0
    %4662 = vmatprep.subr.mxu0 0.0
    %4663 = vmatpush1.msra.mxu0 0.0
    %4664 = vmatprep.subr.mxu0 0.0
    %4665 = vmatpush1.msra.mxu0 0.0
    %4666 = vmatprep.subr.mxu0 0.0
    %4667 = vmatpush1.msra.mxu0 0.0
    %4668 = vmatprep.subr.mxu0 0.0
    %4669 = vmatpush1.msra.mxu0 0.0
    %4670 = vmatprep.subr.mxu0 0.0
    %4671 = vmatpush1.msra.mxu0 0.0
    %4672 = vmatprep.subr.mxu0 0.0
    %4673 = vmatpush1.msra.mxu0 0.0
    %4674 = vmatprep.subr.mxu0 0.0
    %4675 = vmatpush1.msra.mxu0 0.0
    %4676 = vmatprep.subr.mxu0 0.0
    %4677 = vmatpush1.msra.mxu0 0.0
    %4678 = vmatprep.subr.mxu0 0.0
    %4679 = vmatpush1.msra.mxu0 0.0
    %4680 = vmatprep.subr.mxu0 0.0
    %v4681 = vand.u32 %v1172, 4294901760
    %4682 = vmatpush1.msra.mxu0 %v4681
    %4683 = vmatprep.subr.mxu0 0.0
    %v4684 = vand.u32 %v1166, 4294901760
    %4685 = vmatpush1.msra.mxu0 %v4684
    %4686 = vmatprep.subr.mxu0 0.0
    %4687 = vmatpush2.msra.mxu0 0.0
    %4688 = vmatprep.subr.mxu0 0.0
    %4689 = vmatpush2.msra.mxu0 0.0
    %4690 = vmatprep.subr.mxu0 0.0
    %4691 = vmatpush2.msra.mxu0 0.0
    %4692 = vmatprep.subr.mxu0 0.0
    %4693 = vmatpush2.msra.mxu0 0.0
    %4694 = vmatprep.subr.mxu0 0.0
    %4695 = vmatpush2.msra.mxu0 0.0
    %4696 = vmatprep.subr.mxu0 0.0
    %4697 = vmatpush2.msra.mxu0 0.0
    %4698 = vmatprep.subr.mxu0 0.0
    %4699 = vmatpush2.msra.mxu0 0.0
    %4700 = vmatprep.subr.mxu0 0.0
    %4701 = vmatpush2.msra.mxu0 0.0
    %4702 = vmatprep.subr.mxu0 0.0
    %4703 = vmatpush2.msra.mxu0 0.0
    %4704 = vmatprep.subr.mxu0 0.0
    %4705 = vmatpush2.msra.mxu0 0.0
    %4706 = vmatprep.subr.mxu0 0.0
    %4707 = vmatpush2.msra.mxu0 0.0
    %4708 = vmatprep.subr.mxu0 0.0
    %4709 = vmatpush2.msra.mxu0 0.0
    %4710 = vmatprep.subr.mxu0 0.0
    %4711 = vmatpush2.msra.mxu0 0.0
    %4712 = vmatprep.subr.mxu0 0.0
    %4713 = vmatpush2.msra.mxu0 0.0
    %4714 = vmatprep.subr.mxu0 0.0
    %4715 = vmatpush2.msra.mxu0 0.0
    %4716 = vmatprep.subr.mxu0 0.0
    %4717 = vmatpush2.msra.mxu0 0.0
    %4718 = vmatprep.mubr.f32.mxu0 0.0
    %v4719 = vand.u32 %v1204, 4294901760
    %4720 = vmatmul.mubr.f32.gmra.mxu0 %v4719
    %v4721 = vpop.f32.mrf.mxu0
    %v4722 = vadd.f32 %v4631, %v4721
    %v4723 = vpop.f32.mrf.mxu0
    %4724 = vmatprep.mubr.f32.mxu0 0.0
    %v4725 = vand.u32 %v1207, 4294901760
    %4726 = vmatmul.mubr.f32.gmra.mxu0 %v4725
    %v4727 = vpop.f32.mrf.mxu0
    %v4728 = vadd.f32 %v4637, %v4727
    %v4729 = vpop.f32.mrf.mxu0
    %4730 = vmatprep.mubr.f32.mxu0 0.0
    %v4731 = vand.u32 %v1210, 4294901760
    %4732 = vmatmul.mubr.f32.gmra.mxu0 %v4731
    %v4733 = vpop.f32.mrf.mxu0
    %v4734 = vadd.f32 %v4643, %v4733
    %v4735 = vpop.f32.mrf.mxu0
    %4736 = vmatprep.mubr.f32.mxu0 0.0
    %v4737 = vand.u32 %v1213, 4294901760
    %4738 = vmatmul.mubr.f32.gmra.mxu0 %v4737
    %v4739 = vpop.f32.mrf.mxu0
    %v4740 = vadd.f32 %v4649, %v4739
    %v4741 = vpop.f32.mrf.mxu0
    %4742 = vdwg.mxu0
    %4743 = vmatprep.subr.mxu0 0.0
    %4744 = vmatpush1.msra.mxu0 0.0
    %4745 = vmatprep.subr.mxu0 0.0
    %4746 = vmatpush1.msra.mxu0 0.0
    %4747 = vmatprep.subr.mxu0 0.0
    %4748 = vmatpush1.msra.mxu0 0.0
    %4749 = vmatprep.subr.mxu0 0.0
    %4750 = vmatpush1.msra.mxu0 0.0
    %4751 = vmatprep.subr.mxu0 0.0
    %4752 = vmatpush1.msra.mxu0 0.0
    %4753 = vmatprep.subr.mxu0 0.0
    %4754 = vmatpush1.msra.mxu0 0.0
    %4755 = vmatprep.subr.mxu0 0.0
    %4756 = vmatpush1.msra.mxu0 0.0
    %4757 = vmatprep.subr.mxu0 0.0
    %4758 = vmatpush1.msra.mxu0 0.0
    %4759 = vmatprep.subr.mxu0 0.0
    %4760 = vmatpush1.msra.mxu0 0.0
    %4761 = vmatprep.subr.mxu0 0.0
    %4762 = vmatpush1.msra.mxu0 0.0
    %4763 = vmatprep.subr.mxu0 0.0
    %4764 = vmatpush1.msra.mxu0 0.0
    %4765 = vmatprep.subr.mxu0 0.0
    %4766 = vmatpush1.msra.mxu0 0.0
    %4767 = vmatprep.subr.mxu0 0.0
    %4768 = vmatpush1.msra.mxu0 0.0
    %4769 = vmatprep.subr.mxu0 0.0
    %4770 = vmatpush1.msra.mxu0 0.0
    %4771 = vmatprep.subr.mxu0 0.0
    %v4772 = vand.u32 %v1184, 4294901760
    %4773 = vmatpush1.msra.mxu0 %v4772
    %4774 = vmatprep.subr.mxu0 0.0
    %v4775 = vand.u32 %v1178, 4294901760
    %4776 = vmatpush1.msra.mxu0 %v4775
    %4777 = vmatprep.subr.mxu0 0.0
    %4778 = vmatpush2.msra.mxu0 0.0
    %4779 = vmatprep.subr.mxu0 0.0
    %4780 = vmatpush2.msra.mxu0 0.0
    %4781 = vmatprep.subr.mxu0 0.0
    %4782 = vmatpush2.msra.mxu0 0.0
    %4783 = vmatprep.subr.mxu0 0.0
    %4784 = vmatpush2.msra.mxu0 0.0
    %4785 = vmatprep.subr.mxu0 0.0
    %4786 = vmatpush2.msra.mxu0 0.0
    %4787 = vmatprep.subr.mxu0 0.0
    %4788 = vmatpush2.msra.mxu0 0.0
    %4789 = vmatprep.subr.mxu0 0.0
    %4790 = vmatpush2.msra.mxu0 0.0
    %4791 = vmatprep.subr.mxu0 0.0
    %4792 = vmatpush2.msra.mxu0 0.0
    %4793 = vmatprep.subr.mxu0 0.0
    %4794 = vmatpush2.msra.mxu0 0.0
    %4795 = vmatprep.subr.mxu0 0.0
    %4796 = vmatpush2.msra.mxu0 0.0
    %4797 = vmatprep.subr.mxu0 0.0
    %4798 = vmatpush2.msra.mxu0 0.0
    %4799 = vmatprep.subr.mxu0 0.0
    %4800 = vmatpush2.msra.mxu0 0.0
    %4801 = vmatprep.subr.mxu0 0.0
    %4802 = vmatpush2.msra.mxu0 0.0
    %4803 = vmatprep.subr.mxu0 0.0
    %4804 = vmatpush2.msra.mxu0 0.0
    %4805 = vmatprep.subr.mxu0 0.0
    %4806 = vmatpush2.msra.mxu0 0.0
    %4807 = vmatprep.subr.mxu0 0.0
    %4808 = vmatpush2.msra.mxu0 0.0
    %4809 = vmatprep.mubr.f32.mxu0 0.0
    %v4810 = vand.u32 %v1204, 4294901760
    %v4811 = vsub.f32 %v1204, %v4810
    %v4812 = vand.u32 %v4811, 4294901760
    %v4813 = vsub.f32 %v4811, %v4812
    %v4814 = vand.u32 %v4813, 4294901760
    %4815 = vmatmul.mubr.f32.gmra.mxu0 %v4814
    %v4816 = vpop.f32.mrf.mxu0
    %v4817 = vadd.f32 0.0, %v4816
    %v4818 = vpop.f32.mrf.mxu0
    %4819 = vmatprep.mubr.f32.mxu0 0.0
    %v4820 = vand.u32 %v1207, 4294901760
    %v4821 = vsub.f32 %v1207, %v4820
    %v4822 = vand.u32 %v4821, 4294901760
    %v4823 = vsub.f32 %v4821, %v4822
    %v4824 = vand.u32 %v4823, 4294901760
    %4825 = vmatmul.mubr.f32.gmra.mxu0 %v4824
    %v4826 = vpop.f32.mrf.mxu0
    %v4827 = vadd.f32 0.0, %v4826
    %v4828 = vpop.f32.mrf.mxu0
    %4829 = vmatprep.mubr.f32.mxu0 0.0
    %v4830 = vand.u32 %v1210, 4294901760
    %v4831 = vsub.f32 %v1210, %v4830
    %v4832 = vand.u32 %v4831, 4294901760
    %v4833 = vsub.f32 %v4831, %v4832
    %v4834 = vand.u32 %v4833, 4294901760
    %4835 = vmatmul.mubr.f32.gmra.mxu0 %v4834
    %v4836 = vpop.f32.mrf.mxu0
    %v4837 = vadd.f32 0.0, %v4836
    %v4838 = vpop.f32.mrf.mxu0
    %4839 = vmatprep.mubr.f32.mxu0 0.0
    %v4840 = vand.u32 %v1213, 4294901760
    %v4841 = vsub.f32 %v1213, %v4840
    %v4842 = vand.u32 %v4841, 4294901760
    %v4843 = vsub.f32 %v4841, %v4842
    %v4844 = vand.u32 %v4843, 4294901760
    %4845 = vmatmul.mubr.f32.gmra.mxu0 %v4844
    %v4846 = vpop.f32.mrf.mxu0
    %v4847 = vadd.f32 0.0, %v4846
    %v4848 = vpop.f32.mrf.mxu0
    %4849 = vdwg.mxu0
    %4850 = vmatprep.subr.mxu0 0.0
    %4851 = vmatpush1.msra.mxu0 0.0
    %4852 = vmatprep.subr.mxu0 0.0
    %4853 = vmatpush1.msra.mxu0 0.0
    %4854 = vmatprep.subr.mxu0 0.0
    %4855 = vmatpush1.msra.mxu0 0.0
    %4856 = vmatprep.subr.mxu0 0.0
    %4857 = vmatpush1.msra.mxu0 0.0
    %4858 = vmatprep.subr.mxu0 0.0
    %4859 = vmatpush1.msra.mxu0 0.0
    %4860 = vmatprep.subr.mxu0 0.0
    %4861 = vmatpush1.msra.mxu0 0.0
    %4862 = vmatprep.subr.mxu0 0.0
    %4863 = vmatpush1.msra.mxu0 0.0
    %4864 = vmatprep.subr.mxu0 0.0
    %4865 = vmatpush1.msra.mxu0 0.0
    %4866 = vmatprep.subr.mxu0 0.0
    %4867 = vmatpush1.msra.mxu0 0.0
    %4868 = vmatprep.subr.mxu0 0.0
    %4869 = vmatpush1.msra.mxu0 0.0
    %4870 = vmatprep.subr.mxu0 0.0
    %4871 = vmatpush1.msra.mxu0 0.0
    %4872 = vmatprep.subr.mxu0 0.0
    %4873 = vmatpush1.msra.mxu0 0.0
    %4874 = vmatprep.subr.mxu0 0.0
    %4875 = vmatpush1.msra.mxu0 0.0
    %4876 = vmatprep.subr.mxu0 0.0
    %4877 = vmatpush1.msra.mxu0 0.0
    %4878 = vmatprep.subr.mxu0 0.0
    %v4879 = vand.u32 %v1184, 4294901760
    %v4880 = vsub.f32 %v1184, %v4879
    %v4881 = vand.u32 %v4880, 4294901760
    %v4882 = vsub.f32 %v4880, %v4881
    %v4883 = vand.u32 %v4882, 4294901760
    %4884 = vmatpush1.msra.mxu0 %v4883
    %4885 = vmatprep.subr.mxu0 0.0
    %v4886 = vand.u32 %v1178, 4294901760
    %v4887 = vsub.f32 %v1178, %v4886
    %v4888 = vand.u32 %v4887, 4294901760
    %v4889 = vsub.f32 %v4887, %v4888
    %v4890 = vand.u32 %v4889, 4294901760
    %4891 = vmatpush1.msra.mxu0 %v4890
    %4892 = vmatprep.subr.mxu0 0.0
    %4893 = vmatpush2.msra.mxu0 0.0
    %4894 = vmatprep.subr.mxu0 0.0
    %4895 = vmatpush2.msra.mxu0 0.0
    %4896 = vmatprep.subr.mxu0 0.0
    %4897 = vmatpush2.msra.mxu0 0.0
    %4898 = vmatprep.subr.mxu0 0.0
    %4899 = vmatpush2.msra.mxu0 0.0
    %4900 = vmatprep.subr.mxu0 0.0
    %4901 = vmatpush2.msra.mxu0 0.0
    %4902 = vmatprep.subr.mxu0 0.0
    %4903 = vmatpush2.msra.mxu0 0.0
    %4904 = vmatprep.subr.mxu0 0.0
    %4905 = vmatpush2.msra.mxu0 0.0
    %4906 = vmatprep.subr.mxu0 0.0
    %4907 = vmatpush2.msra.mxu0 0.0
    %4908 = vmatprep.subr.mxu0 0.0
    %4909 = vmatpush2.msra.mxu0 0.0
    %4910 = vmatprep.subr.mxu0 0.0
    %4911 = vmatpush2.msra.mxu0 0.0
    %4912 = vmatprep.subr.mxu0 0.0
    %4913 = vmatpush2.msra.mxu0 0.0
    %4914 = vmatprep.subr.mxu0 0.0
    %4915 = vmatpush2.msra.mxu0 0.0
    %4916 = vmatprep.subr.mxu0 0.0
    %4917 = vmatpush2.msra.mxu0 0.0
    %4918 = vmatprep.subr.mxu0 0.0
    %4919 = vmatpush2.msra.mxu0 0.0
    %4920 = vmatprep.subr.mxu0 0.0
    %4921 = vmatpush2.msra.mxu0 0.0
    %4922 = vmatprep.subr.mxu0 0.0
    %4923 = vmatpush2.msra.mxu0 0.0
    %4924 = vmatprep.mubr.f32.mxu0 0.0
    %v4925 = vand.u32 %v1204, 4294901760
    %4926 = vmatmul.mubr.f32.gmra.mxu0 %v4925
    %v4927 = vpop.f32.mrf.mxu0
    %v4928 = vadd.f32 %v4817, %v4927
    %v4929 = vpop.f32.mrf.mxu0
    %4930 = vmatprep.mubr.f32.mxu0 0.0
    %v4931 = vand.u32 %v1207, 4294901760
    %4932 = vmatmul.mubr.f32.gmra.mxu0 %v4931
    %v4933 = vpop.f32.mrf.mxu0
    %v4934 = vadd.f32 %v4827, %v4933
    %v4935 = vpop.f32.mrf.mxu0
    %4936 = vmatprep.mubr.f32.mxu0 0.0
    %v4937 = vand.u32 %v1210, 4294901760
    %4938 = vmatmul.mubr.f32.gmra.mxu0 %v4937
    %v4939 = vpop.f32.mrf.mxu0
    %v4940 = vadd.f32 %v4837, %v4939
    %v4941 = vpop.f32.mrf.mxu0
    %4942 = vmatprep.mubr.f32.mxu0 0.0
    %v4943 = vand.u32 %v1213, 4294901760
    %4944 = vmatmul.mubr.f32.gmra.mxu0 %v4943
    %v4945 = vpop.f32.mrf.mxu0
    %v4946 = vadd.f32 %v4847, %v4945
    %v4947 = vpop.f32.mrf.mxu0
    %4948 = vdwg.mxu0
    %4949 = vmatprep.subr.mxu0 0.0
    %4950 = vmatpush1.msra.mxu0 0.0
    %4951 = vmatprep.subr.mxu0 0.0
    %4952 = vmatpush1.msra.mxu0 0.0
    %4953 = vmatprep.subr.mxu0 0.0
    %4954 = vmatpush1.msra.mxu0 0.0
    %4955 = vmatprep.subr.mxu0 0.0
    %4956 = vmatpush1.msra.mxu0 0.0
    %4957 = vmatprep.subr.mxu0 0.0
    %4958 = vmatpush1.msra.mxu0 0.0
    %4959 = vmatprep.subr.mxu0 0.0
    %4960 = vmatpush1.msra.mxu0 0.0
    %4961 = vmatprep.subr.mxu0 0.0
    %4962 = vmatpush1.msra.mxu0 0.0
    %4963 = vmatprep.subr.mxu0 0.0
    %4964 = vmatpush1.msra.mxu0 0.0
    %4965 = vmatprep.subr.mxu0 0.0
    %4966 = vmatpush1.msra.mxu0 0.0
    %4967 = vmatprep.subr.mxu0 0.0
    %4968 = vmatpush1.msra.mxu0 0.0
    %4969 = vmatprep.subr.mxu0 0.0
    %4970 = vmatpush1.msra.mxu0 0.0
    %4971 = vmatprep.subr.mxu0 0.0
    %4972 = vmatpush1.msra.mxu0 0.0
    %4973 = vmatprep.subr.mxu0 0.0
    %4974 = vmatpush1.msra.mxu0 0.0
    %4975 = vmatprep.subr.mxu0 0.0
    %4976 = vmatpush1.msra.mxu0 0.0
    %4977 = vmatprep.subr.mxu0 0.0
    %v4978 = vand.u32 %v1184, 4294901760
    %v4979 = vsub.f32 %v1184, %v4978
    %4980 = vmatpush1.msra.mxu0 %v4979
    %4981 = vmatprep.subr.mxu0 0.0
    %v4982 = vand.u32 %v1178, 4294901760
    %v4983 = vsub.f32 %v1178, %v4982
    %4984 = vmatpush1.msra.mxu0 %v4983
    %4985 = vmatprep.subr.mxu0 0.0
    %4986 = vmatpush2.msra.mxu0 0.0
    %4987 = vmatprep.subr.mxu0 0.0
    %4988 = vmatpush2.msra.mxu0 0.0
    %4989 = vmatprep.subr.mxu0 0.0
    %4990 = vmatpush2.msra.mxu0 0.0
    %4991 = vmatprep.subr.mxu0 0.0
    %4992 = vmatpush2.msra.mxu0 0.0
    %4993 = vmatprep.subr.mxu0 0.0
    %4994 = vmatpush2.msra.mxu0 0.0
    %4995 = vmatprep.subr.mxu0 0.0
    %4996 = vmatpush2.msra.mxu0 0.0
    %4997 = vmatprep.subr.mxu0 0.0
    %4998 = vmatpush2.msra.mxu0 0.0
    %4999 = vmatprep.subr.mxu0 0.0
    %5000 = vmatpush2.msra.mxu0 0.0
    %5001 = vmatprep.subr.mxu0 0.0
    %5002 = vmatpush2.msra.mxu0 0.0
    %5003 = vmatprep.subr.mxu0 0.0
    %5004 = vmatpush2.msra.mxu0 0.0
    %5005 = vmatprep.subr.mxu0 0.0
    %5006 = vmatpush2.msra.mxu0 0.0
    %5007 = vmatprep.subr.mxu0 0.0
    %5008 = vmatpush2.msra.mxu0 0.0
    %5009 = vmatprep.subr.mxu0 0.0
    %5010 = vmatpush2.msra.mxu0 0.0
    %5011 = vmatprep.subr.mxu0 0.0
    %5012 = vmatpush2.msra.mxu0 0.0
    %5013 = vmatprep.subr.mxu0 0.0
    %5014 = vmatpush2.msra.mxu0 0.0
    %5015 = vmatprep.subr.mxu0 0.0
    %5016 = vmatpush2.msra.mxu0 0.0
    %5017 = vmatprep.mubr.f32.mxu0 0.0
    %v5018 = vand.u32 %v1204, 4294901760
    %v5019 = vsub.f32 %v1204, %v5018
    %5020 = vmatmul.mubr.f32.gmra.mxu0 %v5019
    %v5021 = vpop.f32.mrf.mxu0
    %v5022 = vadd.f32 %v4928, %v5021
    %v5023 = vpop.f32.mrf.mxu0
    %5024 = vmatprep.mubr.f32.mxu0 0.0
    %v5025 = vand.u32 %v1207, 4294901760
    %v5026 = vsub.f32 %v1207, %v5025
    %5027 = vmatmul.mubr.f32.gmra.mxu0 %v5026
    %v5028 = vpop.f32.mrf.mxu0
    %v5029 = vadd.f32 %v4934, %v5028
    %v5030 = vpop.f32.mrf.mxu0
    %5031 = vmatprep.mubr.f32.mxu0 0.0
    %v5032 = vand.u32 %v1210, 4294901760
    %v5033 = vsub.f32 %v1210, %v5032
    %5034 = vmatmul.mubr.f32.gmra.mxu0 %v5033
    %v5035 = vpop.f32.mrf.mxu0
    %v5036 = vadd.f32 %v4940, %v5035
    %v5037 = vpop.f32.mrf.mxu0
    %5038 = vmatprep.mubr.f32.mxu0 0.0
    %v5039 = vand.u32 %v1213, 4294901760
    %v5040 = vsub.f32 %v1213, %v5039
    %5041 = vmatmul.mubr.f32.gmra.mxu0 %v5040
    %v5042 = vpop.f32.mrf.mxu0
    %v5043 = vadd.f32 %v4946, %v5042
    %v5044 = vpop.f32.mrf.mxu0
    %5045 = vdwg.mxu0
    %5046 = vmatprep.subr.mxu0 0.0
    %5047 = vmatpush1.msra.mxu0 0.0
    %5048 = vmatprep.subr.mxu0 0.0
    %5049 = vmatpush1.msra.mxu0 0.0
    %5050 = vmatprep.subr.mxu0 0.0
    %5051 = vmatpush1.msra.mxu0 0.0
    %5052 = vmatprep.subr.mxu0 0.0
    %5053 = vmatpush1.msra.mxu0 0.0
    %5054 = vmatprep.subr.mxu0 0.0
    %5055 = vmatpush1.msra.mxu0 0.0
    %5056 = vmatprep.subr.mxu0 0.0
    %5057 = vmatpush1.msra.mxu0 0.0
    %5058 = vmatprep.subr.mxu0 0.0
    %5059 = vmatpush1.msra.mxu0 0.0
    %5060 = vmatprep.subr.mxu0 0.0
    %5061 = vmatpush1.msra.mxu0 0.0
    %5062 = vmatprep.subr.mxu0 0.0
    %5063 = vmatpush1.msra.mxu0 0.0
    %5064 = vmatprep.subr.mxu0 0.0
    %5065 = vmatpush1.msra.mxu0 0.0
    %5066 = vmatprep.subr.mxu0 0.0
    %5067 = vmatpush1.msra.mxu0 0.0
    %5068 = vmatprep.subr.mxu0 0.0
    %5069 = vmatpush1.msra.mxu0 0.0
    %5070 = vmatprep.subr.mxu0 0.0
    %5071 = vmatpush1.msra.mxu0 0.0
    %5072 = vmatprep.subr.mxu0 0.0
    %5073 = vmatpush1.msra.mxu0 0.0
    %5074 = vmatprep.subr.mxu0 0.0
    %v5075 = vand.u32 %v1184, 4294901760
    %5076 = vmatpush1.msra.mxu0 %v5075
    %5077 = vmatprep.subr.mxu0 0.0
    %v5078 = vand.u32 %v1178, 4294901760
    %5079 = vmatpush1.msra.mxu0 %v5078
    %5080 = vmatprep.subr.mxu0 0.0
    %5081 = vmatpush2.msra.mxu0 0.0
    %5082 = vmatprep.subr.mxu0 0.0
    %5083 = vmatpush2.msra.mxu0 0.0
    %5084 = vmatprep.subr.mxu0 0.0
    %5085 = vmatpush2.msra.mxu0 0.0
    %5086 = vmatprep.subr.mxu0 0.0
    %5087 = vmatpush2.msra.mxu0 0.0
    %5088 = vmatprep.subr.mxu0 0.0
    %5089 = vmatpush2.msra.mxu0 0.0
    %5090 = vmatprep.subr.mxu0 0.0
    %5091 = vmatpush2.msra.mxu0 0.0
    %5092 = vmatprep.subr.mxu0 0.0
    %5093 = vmatpush2.msra.mxu0 0.0
    %5094 = vmatprep.subr.mxu0 0.0
    %5095 = vmatpush2.msra.mxu0 0.0
    %5096 = vmatprep.subr.mxu0 0.0
    %5097 = vmatpush2.msra.mxu0 0.0
    %5098 = vmatprep.subr.mxu0 0.0
    %5099 = vmatpush2.msra.mxu0 0.0
    %5100 = vmatprep.subr.mxu0 0.0
    %5101 = vmatpush2.msra.mxu0 0.0
    %5102 = vmatprep.subr.mxu0 0.0
    %5103 = vmatpush2.msra.mxu0 0.0
    %5104 = vmatprep.subr.mxu0 0.0
    %5105 = vmatpush2.msra.mxu0 0.0
    %5106 = vmatprep.subr.mxu0 0.0
    %5107 = vmatpush2.msra.mxu0 0.0
    %5108 = vmatprep.subr.mxu0 0.0
    %5109 = vmatpush2.msra.mxu0 0.0
    %5110 = vmatprep.subr.mxu0 0.0
    %5111 = vmatpush2.msra.mxu0 0.0
    %5112 = vmatprep.mubr.f32.mxu0 0.0
    %v5113 = vand.u32 %v1204, 4294901760
    %v5114 = vsub.f32 %v1204, %v5113
    %v5115 = vand.u32 %v5114, 4294901760
    %5116 = vmatmul.mubr.f32.gmra.mxu0 %v5115
    %v5117 = vpop.f32.mrf.mxu0
    %v5118 = vadd.f32 %v5022, %v5117
    %v5119 = vpop.f32.mrf.mxu0
    %5120 = vmatprep.mubr.f32.mxu0 0.0
    %v5121 = vand.u32 %v1207, 4294901760
    %v5122 = vsub.f32 %v1207, %v5121
    %v5123 = vand.u32 %v5122, 4294901760
    %5124 = vmatmul.mubr.f32.gmra.mxu0 %v5123
    %v5125 = vpop.f32.mrf.mxu0
    %v5126 = vadd.f32 %v5029, %v5125
    %v5127 = vpop.f32.mrf.mxu0
    %5128 = vmatprep.mubr.f32.mxu0 0.0
    %v5129 = vand.u32 %v1210, 4294901760
    %v5130 = vsub.f32 %v1210, %v5129
    %v5131 = vand.u32 %v5130, 4294901760
    %5132 = vmatmul.mubr.f32.gmra.mxu0 %v5131
    %v5133 = vpop.f32.mrf.mxu0
    %v5134 = vadd.f32 %v5036, %v5133
    %v5135 = vpop.f32.mrf.mxu0
    %5136 = vmatprep.mubr.f32.mxu0 0.0
    %v5137 = vand.u32 %v1213, 4294901760
    %v5138 = vsub.f32 %v1213, %v5137
    %v5139 = vand.u32 %v5138, 4294901760
    %5140 = vmatmul.mubr.f32.gmra.mxu0 %v5139
    %v5141 = vpop.f32.mrf.mxu0
    %v5142 = vadd.f32 %v5043, %v5141
    %v5143 = vpop.f32.mrf.mxu0
    %5144 = vdwg.mxu0
    %5145 = vmatprep.subr.mxu0 0.0
    %5146 = vmatpush1.msra.mxu0 0.0
    %5147 = vmatprep.subr.mxu0 0.0
    %5148 = vmatpush1.msra.mxu0 0.0
    %5149 = vmatprep.subr.mxu0 0.0
    %5150 = vmatpush1.msra.mxu0 0.0
    %5151 = vmatprep.subr.mxu0 0.0
    %5152 = vmatpush1.msra.mxu0 0.0
    %5153 = vmatprep.subr.mxu0 0.0
    %5154 = vmatpush1.msra.mxu0 0.0
    %5155 = vmatprep.subr.mxu0 0.0
    %5156 = vmatpush1.msra.mxu0 0.0
    %5157 = vmatprep.subr.mxu0 0.0
    %5158 = vmatpush1.msra.mxu0 0.0
    %5159 = vmatprep.subr.mxu0 0.0
    %5160 = vmatpush1.msra.mxu0 0.0
    %5161 = vmatprep.subr.mxu0 0.0
    %5162 = vmatpush1.msra.mxu0 0.0
    %5163 = vmatprep.subr.mxu0 0.0
    %5164 = vmatpush1.msra.mxu0 0.0
    %5165 = vmatprep.subr.mxu0 0.0
    %5166 = vmatpush1.msra.mxu0 0.0
    %5167 = vmatprep.subr.mxu0 0.0
    %5168 = vmatpush1.msra.mxu0 0.0
    %5169 = vmatprep.subr.mxu0 0.0
    %5170 = vmatpush1.msra.mxu0 0.0
    %5171 = vmatprep.subr.mxu0 0.0
    %5172 = vmatpush1.msra.mxu0 0.0
    %5173 = vmatprep.subr.mxu0 0.0
    %v5174 = vand.u32 %v1184, 4294901760
    %v5175 = vsub.f32 %v1184, %v5174
    %v5176 = vand.u32 %v5175, 4294901760
    %5177 = vmatpush1.msra.mxu0 %v5176
    %5178 = vmatprep.subr.mxu0 0.0
    %v5179 = vand.u32 %v1178, 4294901760
    %v5180 = vsub.f32 %v1178, %v5179
    %v5181 = vand.u32 %v5180, 4294901760
    %5182 = vmatpush1.msra.mxu0 %v5181
    %5183 = vmatprep.subr.mxu0 0.0
    %5184 = vmatpush2.msra.mxu0 0.0
    %5185 = vmatprep.subr.mxu0 0.0
    %5186 = vmatpush2.msra.mxu0 0.0
    %5187 = vmatprep.subr.mxu0 0.0
    %5188 = vmatpush2.msra.mxu0 0.0
    %5189 = vmatprep.subr.mxu0 0.0
    %5190 = vmatpush2.msra.mxu0 0.0
    %5191 = vmatprep.subr.mxu0 0.0
    %5192 = vmatpush2.msra.mxu0 0.0
    %5193 = vmatprep.subr.mxu0 0.0
    %5194 = vmatpush2.msra.mxu0 0.0
    %5195 = vmatprep.subr.mxu0 0.0
    %5196 = vmatpush2.msra.mxu0 0.0
    %5197 = vmatprep.subr.mxu0 0.0
    %5198 = vmatpush2.msra.mxu0 0.0
    %5199 = vmatprep.subr.mxu0 0.0
    %5200 = vmatpush2.msra.mxu0 0.0
    %5201 = vmatprep.subr.mxu0 0.0
    %5202 = vmatpush2.msra.mxu0 0.0
    %5203 = vmatprep.subr.mxu0 0.0
    %5204 = vmatpush2.msra.mxu0 0.0
    %5205 = vmatprep.subr.mxu0 0.0
    %5206 = vmatpush2.msra.mxu0 0.0
    %5207 = vmatprep.subr.mxu0 0.0
    %5208 = vmatpush2.msra.mxu0 0.0
    %5209 = vmatprep.subr.mxu0 0.0
    %5210 = vmatpush2.msra.mxu0 0.0
    %5211 = vmatprep.subr.mxu0 0.0
    %5212 = vmatpush2.msra.mxu0 0.0
    %5213 = vmatprep.subr.mxu0 0.0
    %5214 = vmatpush2.msra.mxu0 0.0
    %5215 = vmatprep.mubr.f32.mxu0 0.0
    %v5216 = vand.u32 %v1204, 4294901760
    %5217 = vmatmul.mubr.f32.gmra.mxu0 %v5216
    %v5218 = vpop.f32.mrf.mxu0
    %v5219 = vadd.f32 %v5118, %v5218
    %v5220 = vpop.f32.mrf.mxu0
    %5221 = vmatprep.mubr.f32.mxu0 0.0
    %v5222 = vand.u32 %v1207, 4294901760
    %5223 = vmatmul.mubr.f32.gmra.mxu0 %v5222
    %v5224 = vpop.f32.mrf.mxu0
    %v5225 = vadd.f32 %v5126, %v5224
    %v5226 = vpop.f32.mrf.mxu0
    %5227 = vmatprep.mubr.f32.mxu0 0.0
    %v5228 = vand.u32 %v1210, 4294901760
    %5229 = vmatmul.mubr.f32.gmra.mxu0 %v5228
    %v5230 = vpop.f32.mrf.mxu0
    %v5231 = vadd.f32 %v5134, %v5230
    %v5232 = vpop.f32.mrf.mxu0
    %5233 = vmatprep.mubr.f32.mxu0 0.0
    %v5234 = vand.u32 %v1213, 4294901760
    %5235 = vmatmul.mubr.f32.gmra.mxu0 %v5234
    %v5236 = vpop.f32.mrf.mxu0
    %v5237 = vadd.f32 %v5142, %v5236
    %v5238 = vpop.f32.mrf.mxu0
    %5239 = vdwg.mxu0
    %5240 = vmatprep.subr.mxu0 0.0
    %5241 = vmatpush1.msra.mxu0 0.0
    %5242 = vmatprep.subr.mxu0 0.0
    %5243 = vmatpush1.msra.mxu0 0.0
    %5244 = vmatprep.subr.mxu0 0.0
    %5245 = vmatpush1.msra.mxu0 0.0
    %5246 = vmatprep.subr.mxu0 0.0
    %5247 = vmatpush1.msra.mxu0 0.0
    %5248 = vmatprep.subr.mxu0 0.0
    %5249 = vmatpush1.msra.mxu0 0.0
    %5250 = vmatprep.subr.mxu0 0.0
    %5251 = vmatpush1.msra.mxu0 0.0
    %5252 = vmatprep.subr.mxu0 0.0
    %5253 = vmatpush1.msra.mxu0 0.0
    %5254 = vmatprep.subr.mxu0 0.0
    %5255 = vmatpush1.msra.mxu0 0.0
    %5256 = vmatprep.subr.mxu0 0.0
    %5257 = vmatpush1.msra.mxu0 0.0
    %5258 = vmatprep.subr.mxu0 0.0
    %5259 = vmatpush1.msra.mxu0 0.0
    %5260 = vmatprep.subr.mxu0 0.0
    %5261 = vmatpush1.msra.mxu0 0.0
    %5262 = vmatprep.subr.mxu0 0.0
    %5263 = vmatpush1.msra.mxu0 0.0
    %5264 = vmatprep.subr.mxu0 0.0
    %5265 = vmatpush1.msra.mxu0 0.0
    %5266 = vmatprep.subr.mxu0 0.0
    %5267 = vmatpush1.msra.mxu0 0.0
    %5268 = vmatprep.subr.mxu0 0.0
    %v5269 = vand.u32 %v1184, 4294901760
    %5270 = vmatpush1.msra.mxu0 %v5269
    %5271 = vmatprep.subr.mxu0 0.0
    %v5272 = vand.u32 %v1178, 4294901760
    %5273 = vmatpush1.msra.mxu0 %v5272
    %5274 = vmatprep.subr.mxu0 0.0
    %5275 = vmatpush2.msra.mxu0 0.0
    %5276 = vmatprep.subr.mxu0 0.0
    %5277 = vmatpush2.msra.mxu0 0.0
    %5278 = vmatprep.subr.mxu0 0.0
    %5279 = vmatpush2.msra.mxu0 0.0
    %5280 = vmatprep.subr.mxu0 0.0
    %5281 = vmatpush2.msra.mxu0 0.0
    %5282 = vmatprep.subr.mxu0 0.0
    %5283 = vmatpush2.msra.mxu0 0.0
    %5284 = vmatprep.subr.mxu0 0.0
    %5285 = vmatpush2.msra.mxu0 0.0
    %5286 = vmatprep.subr.mxu0 0.0
    %5287 = vmatpush2.msra.mxu0 0.0
    %5288 = vmatprep.subr.mxu0 0.0
    %5289 = vmatpush2.msra.mxu0 0.0
    %5290 = vmatprep.subr.mxu0 0.0
    %5291 = vmatpush2.msra.mxu0 0.0
    %5292 = vmatprep.subr.mxu0 0.0
    %5293 = vmatpush2.msra.mxu0 0.0
    %5294 = vmatprep.subr.mxu0 0.0
    %5295 = vmatpush2.msra.mxu0 0.0
    %5296 = vmatprep.subr.mxu0 0.0
    %5297 = vmatpush2.msra.mxu0 0.0
    %5298 = vmatprep.subr.mxu0 0.0
    %5299 = vmatpush2.msra.mxu0 0.0
    %5300 = vmatprep.subr.mxu0 0.0
    %5301 = vmatpush2.msra.mxu0 0.0
    %5302 = vmatprep.subr.mxu0 0.0
    %5303 = vmatpush2.msra.mxu0 0.0
    %5304 = vmatprep.subr.mxu0 0.0
    %5305 = vmatpush2.msra.mxu0 0.0
    %5306 = vmatprep.mubr.f32.mxu0 0.0
    %v5307 = vand.u32 %v1204, 4294901760
    %5308 = vmatmul.mubr.f32.gmra.mxu0 %v5307
    %v5309 = vpop.f32.mrf.mxu0
    %v5310 = vadd.f32 %v5219, %v5309
    %v5311 = vpop.f32.mrf.mxu0
    %5312 = vmatprep.mubr.f32.mxu0 0.0
    %v5313 = vand.u32 %v1207, 4294901760
    %5314 = vmatmul.mubr.f32.gmra.mxu0 %v5313
    %v5315 = vpop.f32.mrf.mxu0
    %v5316 = vadd.f32 %v5225, %v5315
    %v5317 = vpop.f32.mrf.mxu0
    %5318 = vmatprep.mubr.f32.mxu0 0.0
    %v5319 = vand.u32 %v1210, 4294901760
    %5320 = vmatmul.mubr.f32.gmra.mxu0 %v5319
    %v5321 = vpop.f32.mrf.mxu0
    %v5322 = vadd.f32 %v5231, %v5321
    %v5323 = vpop.f32.mrf.mxu0
    %5324 = vmatprep.mubr.f32.mxu0 0.0
    %v5325 = vand.u32 %v1213, 4294901760
    %5326 = vmatmul.mubr.f32.gmra.mxu0 %v5325
    %v5327 = vpop.f32.mrf.mxu0
    %v5328 = vadd.f32 %v5237, %v5327
    %v5329 = vpop.f32.mrf.mxu0
    %5330 = vdwg.mxu0
    %5331 = vmatprep.subr.mxu0 0.0
    %5332 = vmatpush1.msra.mxu0 0.0
    %5333 = vmatprep.subr.mxu0 0.0
    %5334 = vmatpush1.msra.mxu0 0.0
    %5335 = vmatprep.subr.mxu0 0.0
    %5336 = vmatpush1.msra.mxu0 0.0
    %5337 = vmatprep.subr.mxu0 0.0
    %5338 = vmatpush1.msra.mxu0 0.0
    %5339 = vmatprep.subr.mxu0 0.0
    %5340 = vmatpush1.msra.mxu0 0.0
    %5341 = vmatprep.subr.mxu0 0.0
    %5342 = vmatpush1.msra.mxu0 0.0
    %5343 = vmatprep.subr.mxu0 0.0
    %5344 = vmatpush1.msra.mxu0 0.0
    %5345 = vmatprep.subr.mxu0 0.0
    %5346 = vmatpush1.msra.mxu0 0.0
    %5347 = vmatprep.subr.mxu0 0.0
    %5348 = vmatpush1.msra.mxu0 0.0
    %5349 = vmatprep.subr.mxu0 0.0
    %5350 = vmatpush1.msra.mxu0 0.0
    %5351 = vmatprep.subr.mxu0 0.0
    %5352 = vmatpush1.msra.mxu0 0.0
    %5353 = vmatprep.subr.mxu0 0.0
    %5354 = vmatpush1.msra.mxu0 0.0
    %5355 = vmatprep.subr.mxu0 0.0
    %5356 = vmatpush1.msra.mxu0 0.0
    %5357 = vmatprep.subr.mxu0 0.0
    %5358 = vmatpush1.msra.mxu0 0.0
    %5359 = vmatprep.subr.mxu0 0.0
    %v5360 = vand.u32 %v1196, 4294901760
    %5361 = vmatpush1.msra.mxu0 %v5360
    %5362 = vmatprep.subr.mxu0 0.0
    %v5363 = vand.u32 %v1190, 4294901760
    %5364 = vmatpush1.msra.mxu0 %v5363
    %5365 = vmatprep.subr.mxu0 0.0
    %5366 = vmatpush2.msra.mxu0 0.0
    %5367 = vmatprep.subr.mxu0 0.0
    %5368 = vmatpush2.msra.mxu0 0.0
    %5369 = vmatprep.subr.mxu0 0.0
    %5370 = vmatpush2.msra.mxu0 0.0
    %5371 = vmatprep.subr.mxu0 0.0
    %5372 = vmatpush2.msra.mxu0 0.0
    %5373 = vmatprep.subr.mxu0 0.0
    %5374 = vmatpush2.msra.mxu0 0.0
    %5375 = vmatprep.subr.mxu0 0.0
    %5376 = vmatpush2.msra.mxu0 0.0
    %5377 = vmatprep.subr.mxu0 0.0
    %5378 = vmatpush2.msra.mxu0 0.0
    %5379 = vmatprep.subr.mxu0 0.0
    %5380 = vmatpush2.msra.mxu0 0.0
    %5381 = vmatprep.subr.mxu0 0.0
    %5382 = vmatpush2.msra.mxu0 0.0
    %5383 = vmatprep.subr.mxu0 0.0
    %5384 = vmatpush2.msra.mxu0 0.0
    %5385 = vmatprep.subr.mxu0 0.0
    %5386 = vmatpush2.msra.mxu0 0.0
    %5387 = vmatprep.subr.mxu0 0.0
    %5388 = vmatpush2.msra.mxu0 0.0
    %5389 = vmatprep.subr.mxu0 0.0
    %5390 = vmatpush2.msra.mxu0 0.0
    %5391 = vmatprep.subr.mxu0 0.0
    %5392 = vmatpush2.msra.mxu0 0.0
    %5393 = vmatprep.subr.mxu0 0.0
    %5394 = vmatpush2.msra.mxu0 0.0
    %5395 = vmatprep.subr.mxu0 0.0
    %5396 = vmatpush2.msra.mxu0 0.0
    %5397 = vmatprep.mubr.f32.mxu0 0.0
    %v5398 = vand.u32 %v1204, 4294901760
    %v5399 = vsub.f32 %v1204, %v5398
    %v5400 = vand.u32 %v5399, 4294901760
    %v5401 = vsub.f32 %v5399, %v5400
    %v5402 = vand.u32 %v5401, 4294901760
    %5403 = vmatmul.mubr.f32.gmra.mxu0 %v5402
    %v5404 = vpop.f32.mrf.mxu0
    %v5405 = vadd.f32 0.0, %v5404
    %v5406 = vpop.f32.mrf.mxu0
    %5407 = vmatprep.mubr.f32.mxu0 0.0
    %v5408 = vand.u32 %v1207, 4294901760
    %v5409 = vsub.f32 %v1207, %v5408
    %v5410 = vand.u32 %v5409, 4294901760
    %v5411 = vsub.f32 %v5409, %v5410
    %v5412 = vand.u32 %v5411, 4294901760
    %5413 = vmatmul.mubr.f32.gmra.mxu0 %v5412
    %v5414 = vpop.f32.mrf.mxu0
    %v5415 = vadd.f32 0.0, %v5414
    %v5416 = vpop.f32.mrf.mxu0
    %5417 = vmatprep.mubr.f32.mxu0 0.0
    %v5418 = vand.u32 %v1210, 4294901760
    %v5419 = vsub.f32 %v1210, %v5418
    %v5420 = vand.u32 %v5419, 4294901760
    %v5421 = vsub.f32 %v5419, %v5420
    %v5422 = vand.u32 %v5421, 4294901760
    %5423 = vmatmul.mubr.f32.gmra.mxu0 %v5422
    %v5424 = vpop.f32.mrf.mxu0
    %v5425 = vadd.f32 0.0, %v5424
    %v5426 = vpop.f32.mrf.mxu0
    %5427 = vmatprep.mubr.f32.mxu0 0.0
    %v5428 = vand.u32 %v1213, 4294901760
    %v5429 = vsub.f32 %v1213, %v5428
    %v5430 = vand.u32 %v5429, 4294901760
    %v5431 = vsub.f32 %v5429, %v5430
    %v5432 = vand.u32 %v5431, 4294901760
    %5433 = vmatmul.mubr.f32.gmra.mxu0 %v5432
    %v5434 = vpop.f32.mrf.mxu0
    %v5435 = vadd.f32 0.0, %v5434
    %v5436 = vpop.f32.mrf.mxu0
    %5437 = vdwg.mxu0
    %5438 = vmatprep.subr.mxu0 0.0
    %5439 = vmatpush1.msra.mxu0 0.0
    %5440 = vmatprep.subr.mxu0 0.0
    %5441 = vmatpush1.msra.mxu0 0.0
    %5442 = vmatprep.subr.mxu0 0.0
    %5443 = vmatpush1.msra.mxu0 0.0
    %5444 = vmatprep.subr.mxu0 0.0
    %5445 = vmatpush1.msra.mxu0 0.0
    %5446 = vmatprep.subr.mxu0 0.0
    %5447 = vmatpush1.msra.mxu0 0.0
    %5448 = vmatprep.subr.mxu0 0.0
    %5449 = vmatpush1.msra.mxu0 0.0
    %5450 = vmatprep.subr.mxu0 0.0
    %5451 = vmatpush1.msra.mxu0 0.0
    %5452 = vmatprep.subr.mxu0 0.0
    %5453 = vmatpush1.msra.mxu0 0.0
    %5454 = vmatprep.subr.mxu0 0.0
    %5455 = vmatpush1.msra.mxu0 0.0
    %5456 = vmatprep.subr.mxu0 0.0
    %5457 = vmatpush1.msra.mxu0 0.0
    %5458 = vmatprep.subr.mxu0 0.0
    %5459 = vmatpush1.msra.mxu0 0.0
    %5460 = vmatprep.subr.mxu0 0.0
    %5461 = vmatpush1.msra.mxu0 0.0
    %5462 = vmatprep.subr.mxu0 0.0
    %5463 = vmatpush1.msra.mxu0 0.0
    %5464 = vmatprep.subr.mxu0 0.0
    %5465 = vmatpush1.msra.mxu0 0.0
    %5466 = vmatprep.subr.mxu0 0.0
    %v5467 = vand.u32 %v1196, 4294901760
    %v5468 = vsub.f32 %v1196, %v5467
    %v5469 = vand.u32 %v5468, 4294901760
    %v5470 = vsub.f32 %v5468, %v5469
    %v5471 = vand.u32 %v5470, 4294901760
    %5472 = vmatpush1.msra.mxu0 %v5471
    %5473 = vmatprep.subr.mxu0 0.0
    %v5474 = vand.u32 %v1190, 4294901760
    %v5475 = vsub.f32 %v1190, %v5474
    %v5476 = vand.u32 %v5475, 4294901760
    %v5477 = vsub.f32 %v5475, %v5476
    %v5478 = vand.u32 %v5477, 4294901760
    %5479 = vmatpush1.msra.mxu0 %v5478
    %5480 = vmatprep.subr.mxu0 0.0
    %5481 = vmatpush2.msra.mxu0 0.0
    %5482 = vmatprep.subr.mxu0 0.0
    %5483 = vmatpush2.msra.mxu0 0.0
    %5484 = vmatprep.subr.mxu0 0.0
    %5485 = vmatpush2.msra.mxu0 0.0
    %5486 = vmatprep.subr.mxu0 0.0
    %5487 = vmatpush2.msra.mxu0 0.0
    %5488 = vmatprep.subr.mxu0 0.0
    %5489 = vmatpush2.msra.mxu0 0.0
    %5490 = vmatprep.subr.mxu0 0.0
    %5491 = vmatpush2.msra.mxu0 0.0
    %5492 = vmatprep.subr.mxu0 0.0
    %5493 = vmatpush2.msra.mxu0 0.0
    %5494 = vmatprep.subr.mxu0 0.0
    %5495 = vmatpush2.msra.mxu0 0.0
    %5496 = vmatprep.subr.mxu0 0.0
    %5497 = vmatpush2.msra.mxu0 0.0
    %5498 = vmatprep.subr.mxu0 0.0
    %5499 = vmatpush2.msra.mxu0 0.0
    %5500 = vmatprep.subr.mxu0 0.0
    %5501 = vmatpush2.msra.mxu0 0.0
    %5502 = vmatprep.subr.mxu0 0.0
    %5503 = vmatpush2.msra.mxu0 0.0
    %5504 = vmatprep.subr.mxu0 0.0
    %5505 = vmatpush2.msra.mxu0 0.0
    %5506 = vmatprep.subr.mxu0 0.0
    %5507 = vmatpush2.msra.mxu0 0.0
    %5508 = vmatprep.subr.mxu0 0.0
    %5509 = vmatpush2.msra.mxu0 0.0
    %5510 = vmatprep.subr.mxu0 0.0
    %5511 = vmatpush2.msra.mxu0 0.0
    %5512 = vmatprep.mubr.f32.mxu0 0.0
    %v5513 = vand.u32 %v1204, 4294901760
    %5514 = vmatmul.mubr.f32.gmra.mxu0 %v5513
    %v5515 = vpop.f32.mrf.mxu0
    %v5516 = vadd.f32 %v5405, %v5515
    %v5517 = vpop.f32.mrf.mxu0
    %5518 = vmatprep.mubr.f32.mxu0 0.0
    %v5519 = vand.u32 %v1207, 4294901760
    %5520 = vmatmul.mubr.f32.gmra.mxu0 %v5519
    %v5521 = vpop.f32.mrf.mxu0
    %v5522 = vadd.f32 %v5415, %v5521
    %v5523 = vpop.f32.mrf.mxu0
    %5524 = vmatprep.mubr.f32.mxu0 0.0
    %v5525 = vand.u32 %v1210, 4294901760
    %5526 = vmatmul.mubr.f32.gmra.mxu0 %v5525
    %v5527 = vpop.f32.mrf.mxu0
    %v5528 = vadd.f32 %v5425, %v5527
    %v5529 = vpop.f32.mrf.mxu0
    %5530 = vmatprep.mubr.f32.mxu0 0.0
    %v5531 = vand.u32 %v1213, 4294901760
    %5532 = vmatmul.mubr.f32.gmra.mxu0 %v5531
    %v5533 = vpop.f32.mrf.mxu0
    %v5534 = vadd.f32 %v5435, %v5533
    %v5535 = vpop.f32.mrf.mxu0
    %5536 = vdwg.mxu0
    %5537 = vmatprep.subr.mxu0 0.0
    %5538 = vmatpush1.msra.mxu0 0.0
    %5539 = vmatprep.subr.mxu0 0.0
    %5540 = vmatpush1.msra.mxu0 0.0
    %5541 = vmatprep.subr.mxu0 0.0
    %5542 = vmatpush1.msra.mxu0 0.0
    %5543 = vmatprep.subr.mxu0 0.0
    %5544 = vmatpush1.msra.mxu0 0.0
    %5545 = vmatprep.subr.mxu0 0.0
    %5546 = vmatpush1.msra.mxu0 0.0
    %5547 = vmatprep.subr.mxu0 0.0
    %5548 = vmatpush1.msra.mxu0 0.0
    %5549 = vmatprep.subr.mxu0 0.0
    %5550 = vmatpush1.msra.mxu0 0.0
    %5551 = vmatprep.subr.mxu0 0.0
    %5552 = vmatpush1.msra.mxu0 0.0
    %5553 = vmatprep.subr.mxu0 0.0
    %5554 = vmatpush1.msra.mxu0 0.0
    %5555 = vmatprep.subr.mxu0 0.0
    %5556 = vmatpush1.msra.mxu0 0.0
    %5557 = vmatprep.subr.mxu0 0.0
    %5558 = vmatpush1.msra.mxu0 0.0
    %5559 = vmatprep.subr.mxu0 0.0
    %5560 = vmatpush1.msra.mxu0 0.0
    %5561 = vmatprep.subr.mxu0 0.0
    %5562 = vmatpush1.msra.mxu0 0.0
    %5563 = vmatprep.subr.mxu0 0.0
    %5564 = vmatpush1.msra.mxu0 0.0
    %5565 = vmatprep.subr.mxu0 0.0
    %v5566 = vand.u32 %v1196, 4294901760
    %v5567 = vsub.f32 %v1196, %v5566
    %5568 = vmatpush1.msra.mxu0 %v5567
    %5569 = vmatprep.subr.mxu0 0.0
    %v5570 = vand.u32 %v1190, 4294901760
    %v5571 = vsub.f32 %v1190, %v5570
    %5572 = vmatpush1.msra.mxu0 %v5571
    %5573 = vmatprep.subr.mxu0 0.0
    %5574 = vmatpush2.msra.mxu0 0.0
    %5575 = vmatprep.subr.mxu0 0.0
    %5576 = vmatpush2.msra.mxu0 0.0
    %5577 = vmatprep.subr.mxu0 0.0
    %5578 = vmatpush2.msra.mxu0 0.0
    %5579 = vmatprep.subr.mxu0 0.0
    %5580 = vmatpush2.msra.mxu0 0.0
    %5581 = vmatprep.subr.mxu0 0.0
    %5582 = vmatpush2.msra.mxu0 0.0
    %5583 = vmatprep.subr.mxu0 0.0
    %5584 = vmatpush2.msra.mxu0 0.0
    %5585 = vmatprep.subr.mxu0 0.0
    %5586 = vmatpush2.msra.mxu0 0.0
    %5587 = vmatprep.subr.mxu0 0.0
    %5588 = vmatpush2.msra.mxu0 0.0
    %5589 = vmatprep.subr.mxu0 0.0
    %5590 = vmatpush2.msra.mxu0 0.0
    %5591 = vmatprep.subr.mxu0 0.0
    %5592 = vmatpush2.msra.mxu0 0.0
    %5593 = vmatprep.subr.mxu0 0.0
    %5594 = vmatpush2.msra.mxu0 0.0
    %5595 = vmatprep.subr.mxu0 0.0
    %5596 = vmatpush2.msra.mxu0 0.0
    %5597 = vmatprep.subr.mxu0 0.0
    %5598 = vmatpush2.msra.mxu0 0.0
    %5599 = vmatprep.subr.mxu0 0.0
    %5600 = vmatpush2.msra.mxu0 0.0
    %5601 = vmatprep.subr.mxu0 0.0
    %5602 = vmatpush2.msra.mxu0 0.0
    %5603 = vmatprep.subr.mxu0 0.0
    %5604 = vmatpush2.msra.mxu0 0.0
    %5605 = vmatprep.mubr.f32.mxu0 0.0
    %v5606 = vand.u32 %v1204, 4294901760
    %v5607 = vsub.f32 %v1204, %v5606
    %5608 = vmatmul.mubr.f32.gmra.mxu0 %v5607
    %v5609 = vpop.f32.mrf.mxu0
    %v5610 = vadd.f32 %v5516, %v5609
    %v5611 = vpop.f32.mrf.mxu0
    %5612 = vmatprep.mubr.f32.mxu0 0.0
    %v5613 = vand.u32 %v1207, 4294901760
    %v5614 = vsub.f32 %v1207, %v5613
    %5615 = vmatmul.mubr.f32.gmra.mxu0 %v5614
    %v5616 = vpop.f32.mrf.mxu0
    %v5617 = vadd.f32 %v5522, %v5616
    %v5618 = vpop.f32.mrf.mxu0
    %5619 = vmatprep.mubr.f32.mxu0 0.0
    %v5620 = vand.u32 %v1210, 4294901760
    %v5621 = vsub.f32 %v1210, %v5620
    %5622 = vmatmul.mubr.f32.gmra.mxu0 %v5621
    %v5623 = vpop.f32.mrf.mxu0
    %v5624 = vadd.f32 %v5528, %v5623
    %v5625 = vpop.f32.mrf.mxu0
    %5626 = vmatprep.mubr.f32.mxu0 0.0
    %v5627 = vand.u32 %v1213, 4294901760
    %v5628 = vsub.f32 %v1213, %v5627
    %5629 = vmatmul.mubr.f32.gmra.mxu0 %v5628
    %v5630 = vpop.f32.mrf.mxu0
    %v5631 = vadd.f32 %v5534, %v5630
    %v5632 = vpop.f32.mrf.mxu0
    %5633 = vdwg.mxu0
    %5634 = vmatprep.subr.mxu0 0.0
    %5635 = vmatpush1.msra.mxu0 0.0
    %5636 = vmatprep.subr.mxu0 0.0
    %5637 = vmatpush1.msra.mxu0 0.0
    %5638 = vmatprep.subr.mxu0 0.0
    %5639 = vmatpush1.msra.mxu0 0.0
    %5640 = vmatprep.subr.mxu0 0.0
    %5641 = vmatpush1.msra.mxu0 0.0
    %5642 = vmatprep.subr.mxu0 0.0
    %5643 = vmatpush1.msra.mxu0 0.0
    %5644 = vmatprep.subr.mxu0 0.0
    %5645 = vmatpush1.msra.mxu0 0.0
    %5646 = vmatprep.subr.mxu0 0.0
    %5647 = vmatpush1.msra.mxu0 0.0
    %5648 = vmatprep.subr.mxu0 0.0
    %5649 = vmatpush1.msra.mxu0 0.0
    %5650 = vmatprep.subr.mxu0 0.0
    %5651 = vmatpush1.msra.mxu0 0.0
    %5652 = vmatprep.subr.mxu0 0.0
    %5653 = vmatpush1.msra.mxu0 0.0
    %5654 = vmatprep.subr.mxu0 0.0
    %5655 = vmatpush1.msra.mxu0 0.0
    %5656 = vmatprep.subr.mxu0 0.0
    %5657 = vmatpush1.msra.mxu0 0.0
    %5658 = vmatprep.subr.mxu0 0.0
    %5659 = vmatpush1.msra.mxu0 0.0
    %5660 = vmatprep.subr.mxu0 0.0
    %5661 = vmatpush1.msra.mxu0 0.0
    %5662 = vmatprep.subr.mxu0 0.0
    %v5663 = vand.u32 %v1196, 4294901760
    %5664 = vmatpush1.msra.mxu0 %v5663
    %5665 = vmatprep.subr.mxu0 0.0
    %v5666 = vand.u32 %v1190, 4294901760
    %5667 = vmatpush1.msra.mxu0 %v5666
    %5668 = vmatprep.subr.mxu0 0.0
    %5669 = vmatpush2.msra.mxu0 0.0
    %5670 = vmatprep.subr.mxu0 0.0
    %5671 = vmatpush2.msra.mxu0 0.0
    %5672 = vmatprep.subr.mxu0 0.0
    %5673 = vmatpush2.msra.mxu0 0.0
    %5674 = vmatprep.subr.mxu0 0.0
    %5675 = vmatpush2.msra.mxu0 0.0
    %5676 = vmatprep.subr.mxu0 0.0
    %5677 = vmatpush2.msra.mxu0 0.0
    %5678 = vmatprep.subr.mxu0 0.0
    %5679 = vmatpush2.msra.mxu0 0.0
    %5680 = vmatprep.subr.mxu0 0.0
    %5681 = vmatpush2.msra.mxu0 0.0
    %5682 = vmatprep.subr.mxu0 0.0
    %5683 = vmatpush2.msra.mxu0 0.0
    %5684 = vmatprep.subr.mxu0 0.0
    %5685 = vmatpush2.msra.mxu0 0.0
    %5686 = vmatprep.subr.mxu0 0.0
    %5687 = vmatpush2.msra.mxu0 0.0
    %5688 = vmatprep.subr.mxu0 0.0
    %5689 = vmatpush2.msra.mxu0 0.0
    %5690 = vmatprep.subr.mxu0 0.0
    %5691 = vmatpush2.msra.mxu0 0.0
    %5692 = vmatprep.subr.mxu0 0.0
    %5693 = vmatpush2.msra.mxu0 0.0
    %5694 = vmatprep.subr.mxu0 0.0
    %5695 = vmatpush2.msra.mxu0 0.0
    %5696 = vmatprep.subr.mxu0 0.0
    %5697 = vmatpush2.msra.mxu0 0.0
    %5698 = vmatprep.subr.mxu0 0.0
    %5699 = vmatpush2.msra.mxu0 0.0
    %5700 = vmatprep.mubr.f32.mxu0 0.0
    %v5701 = vand.u32 %v1204, 4294901760
    %v5702 = vsub.f32 %v1204, %v5701
    %v5703 = vand.u32 %v5702, 4294901760
    %5704 = vmatmul.mubr.f32.gmra.mxu0 %v5703
    %v5705 = vpop.f32.mrf.mxu0
    %v5706 = vadd.f32 %v5610, %v5705
    %v5707 = vpop.f32.mrf.mxu0
    %5708 = vmatprep.mubr.f32.mxu0 0.0
    %v5709 = vand.u32 %v1207, 4294901760
    %v5710 = vsub.f32 %v1207, %v5709
    %v5711 = vand.u32 %v5710, 4294901760
    %5712 = vmatmul.mubr.f32.gmra.mxu0 %v5711
    %v5713 = vpop.f32.mrf.mxu0
    %v5714 = vadd.f32 %v5617, %v5713
    %v5715 = vpop.f32.mrf.mxu0
    %5716 = vmatprep.mubr.f32.mxu0 0.0
    %v5717 = vand.u32 %v1210, 4294901760
    %v5718 = vsub.f32 %v1210, %v5717
    %v5719 = vand.u32 %v5718, 4294901760
    %5720 = vmatmul.mubr.f32.gmra.mxu0 %v5719
    %v5721 = vpop.f32.mrf.mxu0
    %v5722 = vadd.f32 %v5624, %v5721
    %v5723 = vpop.f32.mrf.mxu0
    %5724 = vmatprep.mubr.f32.mxu0 0.0
    %v5725 = vand.u32 %v1213, 4294901760
    %v5726 = vsub.f32 %v1213, %v5725
    %v5727 = vand.u32 %v5726, 4294901760
    %5728 = vmatmul.mubr.f32.gmra.mxu0 %v5727
    %v5729 = vpop.f32.mrf.mxu0
    %v5730 = vadd.f32 %v5631, %v5729
    %v5731 = vpop.f32.mrf.mxu0
    %5732 = vdwg.mxu0
    %5733 = vmatprep.subr.mxu0 0.0
    %5734 = vmatpush1.msra.mxu0 0.0
    %5735 = vmatprep.subr.mxu0 0.0
    %5736 = vmatpush1.msra.mxu0 0.0
    %5737 = vmatprep.subr.mxu0 0.0
    %5738 = vmatpush1.msra.mxu0 0.0
    %5739 = vmatprep.subr.mxu0 0.0
    %5740 = vmatpush1.msra.mxu0 0.0
    %5741 = vmatprep.subr.mxu0 0.0
    %5742 = vmatpush1.msra.mxu0 0.0
    %5743 = vmatprep.subr.mxu0 0.0
    %5744 = vmatpush1.msra.mxu0 0.0
    %5745 = vmatprep.subr.mxu0 0.0
    %5746 = vmatpush1.msra.mxu0 0.0
    %5747 = vmatprep.subr.mxu0 0.0
    %5748 = vmatpush1.msra.mxu0 0.0
    %5749 = vmatprep.subr.mxu0 0.0
    %5750 = vmatpush1.msra.mxu0 0.0
    %5751 = vmatprep.subr.mxu0 0.0
    %5752 = vmatpush1.msra.mxu0 0.0
    %5753 = vmatprep.subr.mxu0 0.0
    %5754 = vmatpush1.msra.mxu0 0.0
    %5755 = vmatprep.subr.mxu0 0.0
    %5756 = vmatpush1.msra.mxu0 0.0
    %5757 = vmatprep.subr.mxu0 0.0
    %5758 = vmatpush1.msra.mxu0 0.0
    %5759 = vmatprep.subr.mxu0 0.0
    %5760 = vmatpush1.msra.mxu0 0.0
    %5761 = vmatprep.subr.mxu0 0.0
    %v5762 = vand.u32 %v1196, 4294901760
    %v5763 = vsub.f32 %v1196, %v5762
    %v5764 = vand.u32 %v5763, 4294901760
    %5765 = vmatpush1.msra.mxu0 %v5764
    %5766 = vmatprep.subr.mxu0 0.0
    %v5767 = vand.u32 %v1190, 4294901760
    %v5768 = vsub.f32 %v1190, %v5767
    %v5769 = vand.u32 %v5768, 4294901760
    %5770 = vmatpush1.msra.mxu0 %v5769
    %5771 = vmatprep.subr.mxu0 0.0
    %5772 = vmatpush2.msra.mxu0 0.0
    %5773 = vmatprep.subr.mxu0 0.0
    %5774 = vmatpush2.msra.mxu0 0.0
    %5775 = vmatprep.subr.mxu0 0.0
    %5776 = vmatpush2.msra.mxu0 0.0
    %5777 = vmatprep.subr.mxu0 0.0
    %5778 = vmatpush2.msra.mxu0 0.0
    %5779 = vmatprep.subr.mxu0 0.0
    %5780 = vmatpush2.msra.mxu0 0.0
    %5781 = vmatprep.subr.mxu0 0.0
    %5782 = vmatpush2.msra.mxu0 0.0
    %5783 = vmatprep.subr.mxu0 0.0
    %5784 = vmatpush2.msra.mxu0 0.0
    %5785 = vmatprep.subr.mxu0 0.0
    %5786 = vmatpush2.msra.mxu0 0.0
    %5787 = vmatprep.subr.mxu0 0.0
    %5788 = vmatpush2.msra.mxu0 0.0
    %5789 = vmatprep.subr.mxu0 0.0
    %5790 = vmatpush2.msra.mxu0 0.0
    %5791 = vmatprep.subr.mxu0 0.0
    %5792 = vmatpush2.msra.mxu0 0.0
    %5793 = vmatprep.subr.mxu0 0.0
    %5794 = vmatpush2.msra.mxu0 0.0
    %5795 = vmatprep.subr.mxu0 0.0
    %5796 = vmatpush2.msra.mxu0 0.0
    %5797 = vmatprep.subr.mxu0 0.0
    %5798 = vmatpush2.msra.mxu0 0.0
    %5799 = vmatprep.subr.mxu0 0.0
    %5800 = vmatpush2.msra.mxu0 0.0
    %5801 = vmatprep.subr.mxu0 0.0
    %5802 = vmatpush2.msra.mxu0 0.0
    %5803 = vmatprep.mubr.f32.mxu0 0.0
    %v5804 = vand.u32 %v1204, 4294901760
    %5805 = vmatmul.mubr.f32.gmra.mxu0 %v5804
    %v5806 = vpop.f32.mrf.mxu0
    %v5807 = vadd.f32 %v5706, %v5806
    %v5808 = vpop.f32.mrf.mxu0
    %5809 = vmatprep.mubr.f32.mxu0 0.0
    %v5810 = vand.u32 %v1207, 4294901760
    %5811 = vmatmul.mubr.f32.gmra.mxu0 %v5810
    %v5812 = vpop.f32.mrf.mxu0
    %v5813 = vadd.f32 %v5714, %v5812
    %v5814 = vpop.f32.mrf.mxu0
    %5815 = vmatprep.mubr.f32.mxu0 0.0
    %v5816 = vand.u32 %v1210, 4294901760
    %5817 = vmatmul.mubr.f32.gmra.mxu0 %v5816
    %v5818 = vpop.f32.mrf.mxu0
    %v5819 = vadd.f32 %v5722, %v5818
    %v5820 = vpop.f32.mrf.mxu0
    %5821 = vmatprep.mubr.f32.mxu0 0.0
    %v5822 = vand.u32 %v1213, 4294901760
    %5823 = vmatmul.mubr.f32.gmra.mxu0 %v5822
    %v5824 = vpop.f32.mrf.mxu0
    %v5825 = vadd.f32 %v5730, %v5824
    %v5826 = vpop.f32.mrf.mxu0
    %5827 = vdwg.mxu0
    %5828 = vmatprep.subr.mxu0 0.0
    %5829 = vmatpush1.msra.mxu0 0.0
    %5830 = vmatprep.subr.mxu0 0.0
    %5831 = vmatpush1.msra.mxu0 0.0
    %5832 = vmatprep.subr.mxu0 0.0
    %5833 = vmatpush1.msra.mxu0 0.0
    %5834 = vmatprep.subr.mxu0 0.0
    %5835 = vmatpush1.msra.mxu0 0.0
    %5836 = vmatprep.subr.mxu0 0.0
    %5837 = vmatpush1.msra.mxu0 0.0
    %5838 = vmatprep.subr.mxu0 0.0
    %5839 = vmatpush1.msra.mxu0 0.0
    %5840 = vmatprep.subr.mxu0 0.0
    %5841 = vmatpush1.msra.mxu0 0.0
    %5842 = vmatprep.subr.mxu0 0.0
    %5843 = vmatpush1.msra.mxu0 0.0
    %5844 = vmatprep.subr.mxu0 0.0
    %5845 = vmatpush1.msra.mxu0 0.0
    %5846 = vmatprep.subr.mxu0 0.0
    %5847 = vmatpush1.msra.mxu0 0.0
    %5848 = vmatprep.subr.mxu0 0.0
    %5849 = vmatpush1.msra.mxu0 0.0
    %5850 = vmatprep.subr.mxu0 0.0
    %5851 = vmatpush1.msra.mxu0 0.0
    %5852 = vmatprep.subr.mxu0 0.0
    %5853 = vmatpush1.msra.mxu0 0.0
    %5854 = vmatprep.subr.mxu0 0.0
    %5855 = vmatpush1.msra.mxu0 0.0
    %5856 = vmatprep.subr.mxu0 0.0
    %v5857 = vand.u32 %v1196, 4294901760
    %5858 = vmatpush1.msra.mxu0 %v5857
    %5859 = vmatprep.subr.mxu0 0.0
    %v5860 = vand.u32 %v1190, 4294901760
    %5861 = vmatpush1.msra.mxu0 %v5860
    %5862 = vmatprep.subr.mxu0 0.0
    %5863 = vmatpush2.msra.mxu0 0.0
    %5864 = vmatprep.subr.mxu0 0.0
    %5865 = vmatpush2.msra.mxu0 0.0
    %5866 = vmatprep.subr.mxu0 0.0
    %5867 = vmatpush2.msra.mxu0 0.0
    %5868 = vmatprep.subr.mxu0 0.0
    %5869 = vmatpush2.msra.mxu0 0.0
    %5870 = vmatprep.subr.mxu0 0.0
    %5871 = vmatpush2.msra.mxu0 0.0
    %5872 = vmatprep.subr.mxu0 0.0
    %5873 = vmatpush2.msra.mxu0 0.0
    %5874 = vmatprep.subr.mxu0 0.0
    %5875 = vmatpush2.msra.mxu0 0.0
    %5876 = vmatprep.subr.mxu0 0.0
    %5877 = vmatpush2.msra.mxu0 0.0
    %5878 = vmatprep.subr.mxu0 0.0
    %5879 = vmatpush2.msra.mxu0 0.0
    %5880 = vmatprep.subr.mxu0 0.0
    %5881 = vmatpush2.msra.mxu0 0.0
    %5882 = vmatprep.subr.mxu0 0.0
    %5883 = vmatpush2.msra.mxu0 0.0
    %5884 = vmatprep.subr.mxu0 0.0
    %5885 = vmatpush2.msra.mxu0 0.0
    %5886 = vmatprep.subr.mxu0 0.0
    %5887 = vmatpush2.msra.mxu0 0.0
    %5888 = vmatprep.subr.mxu0 0.0
    %5889 = vmatpush2.msra.mxu0 0.0
    %5890 = vmatprep.subr.mxu0 0.0
    %5891 = vmatpush2.msra.mxu0 0.0
    %5892 = vmatprep.subr.mxu0 0.0
    %5893 = vmatpush2.msra.mxu0 0.0
    %5894 = vmatprep.mubr.f32.mxu0 0.0
    %v5895 = vand.u32 %v1204, 4294901760
    %5896 = vmatmul.mubr.f32.gmra.mxu0 %v5895
    %v5897 = vpop.f32.mrf.mxu0
    %v5898 = vadd.f32 %v5807, %v5897
    %v5899 = vpop.f32.mrf.mxu0
    %5900 = vmatprep.mubr.f32.mxu0 0.0
    %v5901 = vand.u32 %v1207, 4294901760
    %5902 = vmatmul.mubr.f32.gmra.mxu0 %v5901
    %v5903 = vpop.f32.mrf.mxu0
    %v5904 = vadd.f32 %v5813, %v5903
    %v5905 = vpop.f32.mrf.mxu0
    %5906 = vmatprep.mubr.f32.mxu0 0.0
    %v5907 = vand.u32 %v1210, 4294901760
    %5908 = vmatmul.mubr.f32.gmra.mxu0 %v5907
    %v5909 = vpop.f32.mrf.mxu0
    %v5910 = vadd.f32 %v5819, %v5909
    %v5911 = vpop.f32.mrf.mxu0
    %5912 = vmatprep.mubr.f32.mxu0 0.0
    %v5913 = vand.u32 %v1213, 4294901760
    %5914 = vmatmul.mubr.f32.gmra.mxu0 %v5913
    %v5915 = vpop.f32.mrf.mxu0
    %v5916 = vadd.f32 %v5825, %v5915
    %v5917 = vpop.f32.mrf.mxu0
    %5918 = vdwg.mxu0
    %vm5919 = vcmask 195584
    %5920 = vst.msk [vmem:[%s3] sm:$0xff] %vm5919, %v1782
    %5921 = vst.msk [vmem:[%s3 + $0x8] sm:$0xff] %vm5919, %v1788
    %5922 = vst.msk [vmem:[%s3 + $0x10] sm:$0xff] %vm5919, %v1794
    %5923 = vst.msk [vmem:[%s3 + $0x18] sm:$0xff] %vm5919, %v1800
    %5924 = vst.msk [vmem:[%s3 + $0x20] sm:$0xff] %vm5919, %v2370
    %5925 = vst.msk [vmem:[%s3 + $0x28] sm:$0xff] %vm5919, %v2376
    %5926 = vst.msk [vmem:[%s3 + $0x30] sm:$0xff] %vm5919, %v2382
    %5927 = vst.msk [vmem:[%s3 + $0x38] sm:$0xff] %vm5919, %v2388
    %5928 = vst.msk [vmem:[%s3 + $0x40] sm:$0xff] %vm5919, %v2958
    %5929 = vst.msk [vmem:[%s3 + $0x48] sm:$0xff] %vm5919, %v2964
    %5930 = vst.msk [vmem:[%s3 + $0x50] sm:$0xff] %vm5919, %v2970
    %5931 = vst.msk [vmem:[%s3 + $0x58] sm:$0xff] %vm5919, %v2976
    %5932 = vst.msk [vmem:[%s3 + $0x60] sm:$0xff] %vm5919, %v3546
    %5933 = vst.msk [vmem:[%s3 + $0x68] sm:$0xff] %vm5919, %v3552
    %5934 = vst.msk [vmem:[%s3 + $0x70] sm:$0xff] %vm5919, %v3558
    %5935 = vst.msk [vmem:[%s3 + $0x78] sm:$0xff] %vm5919, %v3564
    %5936 = vst.msk [vmem:[%s3 + $0x80] sm:$0xff] %vm5919, %v4134
    %5937 = vst.msk [vmem:[%s3 + $0x88] sm:$0xff] %vm5919, %v4140
    %5938 = vst.msk [vmem:[%s3 + $0x90] sm:$0xff] %vm5919, %v4146
    %5939 = vst.msk [vmem:[%s3 + $0x98] sm:$0xff] %vm5919, %v4152
    %5940 = vst.msk [vmem:[%s3 + $0xa0] sm:$0xff] %vm5919, %v4722
    %5941 = vst.msk [vmem:[%s3 + $0xa8] sm:$0xff] %vm5919, %v4728
    %5942 = vst.msk [vmem:[%s3 + $0xb0] sm:$0xff] %vm5919, %v4734
    %5943 = vst.msk [vmem:[%s3 + $0xb8] sm:$0xff] %vm5919, %v4740
    %5944 = vst.msk [vmem:[%s3 + $0xc0] sm:$0xff] %vm5919, %v5310
    %5945 = vst.msk [vmem:[%s3 + $0xc8] sm:$0xff] %vm5919, %v5316
    %5946 = vst.msk [vmem:[%s3 + $0xd0] sm:$0xff] %vm5919, %v5322
    %5947 = vst.msk [vmem:[%s3 + $0xd8] sm:$0xff] %vm5919, %v5328
    %5948 = vst.msk [vmem:[%s3 + $0xe0] sm:$0xff] %vm5919, %v5898
    %5949 = vst.msk [vmem:[%s3 + $0xe8] sm:$0xff] %vm5919, %v5904
    %5950 = vst.msk [vmem:[%s3 + $0xf0] sm:$0xff] %vm5919, %v5910
    %5951 = vst.msk [vmem:[%s3 + $0xf8] sm:$0xff] %vm5919, %v5916
    // Predicated region
    $region18: #{tpu_custom_call.1} parent=1 // pred_check
      _
    $region19: #{tpu_custom_call.1} parent=1 // pred_check_branch
      %5953 = sbr.rel (0) target = $region21
    $region20: #{tpu_custom_call.1} parent=1 // pred_region
      _
    $region21: #{tpu_custom_call.1} parent=1 // pred_fallthru
      _
    // Predicated region
    $region22: #{tpu_custom_call.1} parent=1 // pred_check
      _
    $region23: #{tpu_custom_call.1} parent=1 // pred_check_branch
      %5955 = sbr.rel (0) target = $region25
    $region24: #{tpu_custom_call.1} parent=1 // pred_region
      _
    $region25: #{tpu_custom_call.1} parent=1 // pred_fallthru
      _
    %5956 = vsyncpa [#allocation3], 1

</llo_original>
